<compile_context>
chip_gen: v7x
topology: tpu7x:2x2x1
jax: 0.10.0
libtpu: 0.0.40
codegen_flags: <defaults>
</compile_context>

<pallas_src>
import functools

import jax
import jax.numpy as jnp
from jax.experimental import pallas as pl
from jax.experimental.pallas import tpu as pltpu


def _round_up(x, m):
    return (x + m - 1) // m * m


def _cbow_vmem_kernel(b_tile, context_len,
                      idx_ref,    # SMEM  (B*L,) int32  (scalar prefetch)
                      emb_ref,    # VMEM  (Vp//8, 8, D) resident embedding table
                      w_ref,      # VMEM  (D, O) mxu dtype, resident
                      b_ref,      # VMEM  (1, O) f32, resident
                      out_ref,    # VMEM  (b_tile, O) f32
                      sum_ref):   # VMEM  (b_tile, D) f32 scratch
    bt = pl.program_id(0)
    base = bt * (b_tile * context_len)
    sub_iota = jax.lax.broadcasted_iota(jnp.int32, (8, 1), 0)   # hoisted

    # Gather + context-window sum, one sublane-aligned (8, D) output slab per
    # loop iteration (bounded code size; no full unroll at b_tile=128).
    @pl.loop(0, b_tile // 8)
    def _gather(g):
        rows = []
        for r in range(8):
            flat = base + (g * 8 + r) * context_len
            acc = None
            for l in range(context_len):
                token = idx_ref[flat + l]
                # Aligned (8, D) load of the vocab tile containing `token`,
                # then a sublane one-hot select + XLU reduce picks the row.
                # (Leading-dim dynamic ref indexing + reduce always lower; no
                # reliance on unaligned dynamic-sublane loads.)
                block = emb_ref[token >> 3].astype(jnp.float32)          # (8, D)
                row = jnp.sum(jnp.where(sub_iota == (token & 7), block, 0.0),
                              axis=0, keepdims=True)                     # (1, D)
                acc = row if acc is None else acc + row                  # f32 sum
            rows.append(acc)
        row0 = pl.multiple_of(g * 8, 8)
        sum_ref[pl.ds(row0, 8), :] = jnp.concatenate(rows, axis=0)

    # Linear layer on the MXU: bf16 operands, f32 accumulation, bias added once.
    out_ref[...] = (
        jnp.dot(sum_ref[...].astype(w_ref.dtype), w_ref[...],
                preferred_element_type=jnp.float32)
        + b_ref[...]
    )


def _cbow_hbm_kernel(b_tile, context_len,
                     idx_ref,     # SMEM (B*L,) int32 (scalar prefetch)
                     emb_hbm,     # HBM  (V, D) f32   (memory_space=pl.ANY)
                     w_ref,       # VMEM (D, O) mxu dtype, resident
                     b_ref,       # VMEM (1, O) f32, resident
                     out_ref,     # VMEM (b_tile, O) f32
                     gather_ref,  # VMEM (b_tile*L, D) f32 scratch
                     copy_sem):   # DMA semaphore shared by all row gathers
    bt = pl.program_id(0)
    base = bt * (b_tile * context_len)

    # Issue all row-gather DMAs.  All SMEM index reads happen before any wait.
    # Rows for context position l land in the contiguous slab [l*b_tile, ...).
    @pl.loop(0, b_tile)
    def _issue(j):
        for l in range(context_len):
            token = idx_ref[base + j * context_len + l]
            pltpu.make_async_copy(
                emb_hbm.at[pl.ds(token, 1), :],
                gather_ref.at[pl.ds(l * b_tile + j, 1), :],
                copy_sem,
            ).start()

    # Wait for every copy (descriptor reconstructed; dst/shape/sem are what
    # matter for the wait, as in the paged-attention pattern).
    @pl.loop(0, b_tile)
    def _drain(j):
        for l in range(context_len):
            pltpu.make_async_copy(
                emb_hbm.at[pl.ds(0, 1), :],
                gather_ref.at[pl.ds(l * b_tile + j, 1), :],
                copy_sem,
            ).wait()

    # Context-window sum: full-slab VPU adds, f32.
    summed = gather_ref[0:b_tile, :]
    for l in range(1, context_len):
        summed = summed + gather_ref[l * b_tile:(l + 1) * b_tile, :]

    out_ref[...] = (
        jnp.dot(summed.astype(w_ref.dtype), w_ref[...],
                preferred_element_type=jnp.float32)
        + b_ref[...]
    )


@functools.partial(jax.jit,
                   static_argnames=("b_tile", "mxu_dtype", "force_hbm_gather"))
def cbow_forward(indices, emb_table, w_t, bias, *, b_tile=128,
                 mxu_dtype=jnp.bfloat16, force_hbm_gather=False):
    """indices (B, L) int, emb_table (V, D) f32, w_t (D, O) = linear.weight.T,
    bias (1, O) or (O,) f32.  Returns logits (B, O) f32."""
    B, L = indices.shape
    V, D = emb_table.shape
    O = w_t.shape[1]
    assert B % b_tile == 0, "batch must be a multiple of the batch tile"
    assert b_tile % 8 == 0, "batch tile must be sublane aligned"

    idx_flat = indices.reshape(-1).astype(jnp.int32)   # 1-D -> pow2 SMEM padding
    w_mxu = w_t.astype(mxu_dtype)                      # bf16 MXU operand
    bias2 = bias.reshape(1, O).astype(jnp.float32)

    # Small-vocab fast path: table resident in VMEM (budget sized for v7x).
    table_bytes = _round_up(V, 8) * D * emb_table.dtype.itemsize
    use_vmem_table = (not force_hbm_gather) and table_bytes <= (8 << 20)

    # Explicit VMEM budget (v5e default scoped limit is 16 MiB; v7x has 64 MiB).
    w_bytes = D * O * jnp.dtype(mxu_dtype).itemsize
    out_bytes = b_tile * O * 4
    if use_vmem_table:
        scratch_bytes = b_tile * D * 4
        resident_bytes = table_bytes
    else:
        scratch_bytes = b_tile * L * D * 4
        resident_bytes = 0
    needed = 2 * (resident_bytes + w_bytes + O * 4 + out_bytes) + scratch_bytes
    vmem_limit = int(min(max(needed + (8 << 20), 32 << 20), 64 << 20))

    compiler_params = pltpu.CompilerParams(
        dimension_semantics=("parallel",),   # batch tiles -> megacore / 2 TCs
        vmem_limit_bytes=vmem_limit,
    )

    if use_vmem_table:
        Vp = _round_up(V, 8)
        emb_p = emb_table if Vp == V else jnp.pad(emb_table, ((0, Vp - V), (0, 0)))
        emb3 = emb_p.reshape(Vp // 8, 8, D)   # (vocab tile, sublane, lane)

        grid_spec = pltpu.PrefetchScalarGridSpec(
            num_scalar_prefetch=1,            # flattened indices -> SMEM
            grid=(B // b_tile,),
            in_specs=[
                pl.BlockSpec((Vp // 8, 8, D), lambda bt, idx: (0, 0, 0)),  # table resident
                pl.BlockSpec((D, O), lambda bt, idx: (0, 0)),              # W resident
                pl.BlockSpec((1, O), lambda bt, idx: (0, 0)),              # bias resident
            ],
            out_specs=pl.BlockSpec((b_tile, O), lambda bt, idx: (bt, 0)),
            scratch_shapes=[pltpu.VMEM((b_tile, D), jnp.float32)],
        )
        kernel = functools.partial(_cbow_vmem_kernel, b_tile, L)
        operands = (idx_flat, emb3, w_mxu, bias2)
    else:
        grid_spec = pltpu.PrefetchScalarGridSpec(
            num_scalar_prefetch=1,
            grid=(B // b_tile,),
            in_specs=[
                pl.BlockSpec(memory_space=pl.ANY),               # table stays in HBM
                pl.BlockSpec((D, O), lambda bt, idx: (0, 0)),
                pl.BlockSpec((1, O), lambda bt, idx: (0, 0)),
            ],
            out_specs=pl.BlockSpec((b_tile, O), lambda bt, idx: (bt, 0)),
            scratch_shapes=[
                pltpu.VMEM((b_tile * L, D), jnp.float32),        # gathered rows
                pltpu.SemaphoreType.DMA(()),                     # shared DMA sem
            ],
        )
        kernel = functools.partial(_cbow_hbm_kernel, b_tile, L)
        operands = (idx_flat, emb_table, w_mxu, bias2)

    return pl.pallas_call(
        kernel,
        out_shape=jax.ShapeDtypeStruct((B, O), jnp.float32),
        grid_spec=grid_spec,
        compiler_params=compiler_params,
    )(*operands)


if __name__ == "__main__":
    # Small, lane/sublane-aligned shapes; batch chosen so b_tile=128 still
    # leaves a >= 2-step grid (both v7x TensorCores get a tile).
    vocab_size = 512
    embedding_dim = 128
    output_dim = 128
    batch = 256
    context_len = 8

    key = jax.random.PRNGKey(0)
    k_emb, k_w, k_idx = jax.random.split(key, 3)

    # nn.Embedding default init: N(0, 1)
    emb_table = jax.random.normal(
        k_emb, (vocab_size, embedding_dim), dtype=jnp.float32)

    # nn.Linear weight (output_dim, embedding_dim) with xavier_uniform_, zero
    # bias; the kernel consumes the weight pre-transposed as (D, O).
    fan_in, fan_out = embedding_dim, output_dim
    bound = (6.0 / (fan_in + fan_out)) ** 0.5
    w = jax.random.uniform(k_w, (output_dim, embedding_dim),
                           minval=-bound, maxval=bound, dtype=jnp.float32)
    w_t = jnp.transpose(w)                                   # (D, O)
    bias = jnp.zeros((1, output_dim), dtype=jnp.float32)

    # Integer context-word indices (B, L)
    indices = jax.random.randint(k_idx, (batch, context_len), 0, vocab_size,
                                 dtype=jnp.int32)

    # Pure-JAX f32 reference (PyTorch semantics).
    ref = jnp.take(emb_table, indices, axis=0).sum(axis=1) @ w_t + bias

    # Fast path: table resident in VMEM, b_tile=128 -> 2 grid steps.
    logits = cbow_forward(indices, emb_table, w_t, bias, b_tile=128)
    jax.block_until_ready(logits)
    assert jnp.allclose(logits, ref, atol=5e-2, rtol=2e-2), "vmem-path mismatch"

    # Large-vocab fallback: HBM DMA row gather (exercised here with a smaller
    # tile to keep the number of in-flight row DMAs modest).
    logits_hbm = cbow_forward(indices, emb_table, w_t, bias,
                              b_tile=32, force_hbm_gather=True)
    jax.block_until_ready(logits_hbm)
    assert jnp.allclose(logits_hbm, ref, atol=5e-2, rtol=2e-2), "hbm-path mismatch"

    print("KERNEL_OK")
</pallas_src>

<mosaic_0001>
module attributes {stable_mosaic.version = 11 : i64} {
  func.func @_cbow_vmem_kernel(%arg0: i32, %arg1: memref<2048xi32, #tpu.memory_space<smem>>, %arg2: memref<64x8x128xf32, #tpu.memory_space<vmem>>, %arg3: memref<128x128xbf16, #tpu.memory_space<vmem>>, %arg4: memref<1x128xf32, #tpu.memory_space<vmem>>, %arg5: memref<128x128xf32, #tpu.memory_space<vmem>>, %arg6: memref<128x128xf32, #tpu.memory_space<vmem>>) attributes {dimension_semantics = [#tpu.dimension_semantics<parallel>], iteration_bounds = array<i64: 2>, scalar_prefetch = 1 : i64, scratch_operands = 1 : i64, tpu.core_type = #tpu.core_type<tc>, window_params = [{pipeline_mode = #tpu.pipeline_mode<synchronous>, transform_indices = @transform_0, window_bounds = array<i64: 64, 8, 128>}, {pipeline_mode = #tpu.pipeline_mode<synchronous>, transform_indices = @transform_1, window_bounds = array<i64: 128, 128>}, {pipeline_mode = #tpu.pipeline_mode<synchronous>, transform_indices = @transform_2, window_bounds = array<i64: 1, 128>}, {transform_indices = @transform_3, window_bounds = array<i64: 128, 128>}]} {
    %c1024_i32 = arith.constant 1024 : i32
    %0 = arith.muli %arg0, %c1024_i32 : i32
    %1 = tpu.iota {dimensions = array<i32: 0>} : vector<8x1xi32>
    %c0_i32 = arith.constant 0 : i32
    %c16_i32 = arith.constant 16 : i32
    %2 = arith.addi %c0_i32, %c16_i32 : i32
    %c1_i32 = arith.constant 1 : i32
    scf.for %arg7 = %c0_i32 to %2 step %c1_i32  : i32 {
      %c1_i32_8 = arith.constant 1 : i32
      %11 = arith.muli %arg7, %c1_i32_8 : i32
      %c0_i32_9 = arith.constant 0 : i32
      %12 = arith.addi %c0_i32_9, %11 : i32
      %c8_i32 = arith.constant 8 : i32
      %13 = arith.muli %12, %c8_i32 : i32
      %c0_i32_10 = arith.constant 0 : i32
      %14 = arith.addi %13, %c0_i32_10 : i32
      %c8_i32_11 = arith.constant 8 : i32
      %15 = arith.muli %14, %c8_i32_11 : i32
      %16 = arith.addi %0, %15 : i32
      %c0_i32_12 = arith.constant 0 : i32
      %17 = arith.addi %16, %c0_i32_12 : i32
      %18 = arith.index_cast %17 : i32 to index
      %19 = memref.load %arg1[%18] : memref<2048xi32, #tpu.memory_space<smem>>
      %c3_i32 = arith.constant 3 : i32
      %20 = arith.shrsi %19, %c3_i32 : i32
      %21 = arith.index_cast %20 : i32 to index
      %c0_13 = arith.constant 0 : index
      %c0_14 = arith.constant 0 : index
      %22 = vector.load %arg2[%21, %c0_13, %c0_14] : memref<64x8x128xf32, #tpu.memory_space<vmem>>, vector<1x8x128xf32>
      %23 = vector.shape_cast %22 : vector<1x8x128xf32> to vector<8x128xf32>
      %c7_i32 = arith.constant 7 : i32
      %24 = arith.andi %19, %c7_i32 : i32
      %25 = vector.broadcast %24 : i32 to vector<8x1xi32>
      %26 = arith.cmpi eq, %1, %25 : vector<8x1xi32>
      %cst_15 = arith.constant 0.000000e+00 : f32
      %27 = vector.shape_cast %26 : vector<8x1xi1> to vector<8x1xi1>
      %28 = vector.broadcast %27 : vector<8x1xi1> to vector<8x128xi1>
      %29 = vector.broadcast %cst_15 : f32 to vector<8x128xf32>
      %30 = arith.select %28, %23, %29 : vector<8x128xi1>, vector<8x128xf32>
      %cst_16 = arith.constant dense<0.000000e+00> : vector<128xf32>
      %31 = vector.multi_reduction <add>, %30, %cst_16 [0] : vector<8x128xf32> to vector<128xf32>
      %32 = vector.shape_cast %31 : vector<128xf32> to vector<1x128xf32>
      %c1_i32_17 = arith.constant 1 : i32
      %33 = arith.addi %16, %c1_i32_17 : i32
      %34 = arith.index_cast %33 : i32 to index
      %35 = memref.load %arg1[%34] : memref<2048xi32, #tpu.memory_space<smem>>
      %c3_i32_18 = arith.constant 3 : i32
      %36 = arith.shrsi %35, %c3_i32_18 : i32
      %37 = arith.index_cast %36 : i32 to index
      %c0_19 = arith.constant 0 : index
      %c0_20 = arith.constant 0 : index
      %38 = vector.load %arg2[%37, %c0_19, %c0_20] : memref<64x8x128xf32, #tpu.memory_space<vmem>>, vector<1x8x128xf32>
      %39 = vector.shape_cast %38 : vector<1x8x128xf32> to vector<8x128xf32>
      %c7_i32_21 = arith.constant 7 : i32
      %40 = arith.andi %35, %c7_i32_21 : i32
      %41 = vector.broadcast %40 : i32 to vector<8x1xi32>
      %42 = arith.cmpi eq, %1, %41 : vector<8x1xi32>
      %cst_22 = arith.constant 0.000000e+00 : f32
      %43 = vector.shape_cast %42 : vector<8x1xi1> to vector<8x1xi1>
      %44 = vector.broadcast %43 : vector<8x1xi1> to vector<8x128xi1>
      %45 = vector.broadcast %cst_22 : f32 to vector<8x128xf32>
      %46 = arith.select %44, %39, %45 : vector<8x128xi1>, vector<8x128xf32>
      %cst_23 = arith.constant dense<0.000000e+00> : vector<128xf32>
      %47 = vector.multi_reduction <add>, %46, %cst_23 [0] : vector<8x128xf32> to vector<128xf32>
      %48 = vector.shape_cast %47 : vector<128xf32> to vector<1x128xf32>
      %49 = arith.addf %32, %48 : vector<1x128xf32>
      %c2_i32 = arith.constant 2 : i32
      %50 = arith.addi %16, %c2_i32 : i32
      %51 = arith.index_cast %50 : i32 to index
      %52 = memref.load %arg1[%51] : memref<2048xi32, #tpu.memory_space<smem>>
      %c3_i32_24 = arith.constant 3 : i32
      %53 = arith.shrsi %52, %c3_i32_24 : i32
      %54 = arith.index_cast %53 : i32 to index
      %c0_25 = arith.constant 0 : index
      %c0_26 = arith.constant 0 : index
      %55 = vector.load %arg2[%54, %c0_25, %c0_26] : memref<64x8x128xf32, #tpu.memory_space<vmem>>, vector<1x8x128xf32>
      %56 = vector.shape_cast %55 : vector<1x8x128xf32> to vector<8x128xf32>
      %c7_i32_27 = arith.constant 7 : i32
      %57 = arith.andi %52, %c7_i32_27 : i32
      %58 = vector.broadcast %57 : i32 to vector<8x1xi32>
      %59 = arith.cmpi eq, %1, %58 : vector<8x1xi32>
      %cst_28 = arith.constant 0.000000e+00 : f32
      %60 = vector.shape_cast %59 : vector<8x1xi1> to vector<8x1xi1>
      %61 = vector.broadcast %60 : vector<8x1xi1> to vector<8x128xi1>
      %62 = vector.broadcast %cst_28 : f32 to vector<8x128xf32>
      %63 = arith.select %61, %56, %62 : vector<8x128xi1>, vector<8x128xf32>
      %cst_29 = arith.constant dense<0.000000e+00> : vector<128xf32>
      %64 = vector.multi_reduction <add>, %63, %cst_29 [0] : vector<8x128xf32> to vector<128xf32>
      %65 = vector.shape_cast %64 : vector<128xf32> to vector<1x128xf32>
      %66 = arith.addf %49, %65 : vector<1x128xf32>
      %c3_i32_30 = arith.constant 3 : i32
      %67 = arith.addi %16, %c3_i32_30 : i32
      %68 = arith.index_cast %67 : i32 to index
      %69 = memref.load %arg1[%68] : memref<2048xi32, #tpu.memory_space<smem>>
      %c3_i32_31 = arith.constant 3 : i32
      %70 = arith.shrsi %69, %c3_i32_31 : i32
      %71 = arith.index_cast %70 : i32 to index
      %c0_32 = arith.constant 0 : index
      %c0_33 = arith.constant 0 : index
      %72 = vector.load %arg2[%71, %c0_32, %c0_33] : memref<64x8x128xf32, #tpu.memory_space<vmem>>, vector<1x8x128xf32>
      %73 = vector.shape_cast %72 : vector<1x8x128xf32> to vector<8x128xf32>
      %c7_i32_34 = arith.constant 7 : i32
      %74 = arith.andi %69, %c7_i32_34 : i32
      %75 = vector.broadcast %74 : i32 to vector<8x1xi32>
      %76 = arith.cmpi eq, %1, %75 : vector<8x1xi32>
      %cst_35 = arith.constant 0.000000e+00 : f32
      %77 = vector.shape_cast %76 : vector<8x1xi1> to vector<8x1xi1>
      %78 = vector.broadcast %77 : vector<8x1xi1> to vector<8x128xi1>
      %79 = vector.broadcast %cst_35 : f32 to vector<8x128xf32>
      %80 = arith.select %78, %73, %79 : vector<8x128xi1>, vector<8x128xf32>
      %cst_36 = arith.constant dense<0.000000e+00> : vector<128xf32>
      %81 = vector.multi_reduction <add>, %80, %cst_36 [0] : vector<8x128xf32> to vector<128xf32>
      %82 = vector.shape_cast %81 : vector<128xf32> to vector<1x128xf32>
      %83 = arith.addf %66, %82 : vector<1x128xf32>
      %c4_i32 = arith.constant 4 : i32
      %84 = arith.addi %16, %c4_i32 : i32
      %85 = arith.index_cast %84 : i32 to index
      %86 = memref.load %arg1[%85] : memref<2048xi32, #tpu.memory_space<smem>>
      %c3_i32_37 = arith.constant 3 : i32
      %87 = arith.shrsi %86, %c3_i32_37 : i32
      %88 = arith.index_cast %87 : i32 to index
      %c0_38 = arith.constant 0 : index
      %c0_39 = arith.constant 0 : index
      %89 = vector.load %arg2[%88, %c0_38, %c0_39] : memref<64x8x128xf32, #tpu.memory_space<vmem>>, vector<1x8x128xf32>
      %90 = vector.shape_cast %89 : vector<1x8x128xf32> to vector<8x128xf32>
      %c7_i32_40 = arith.constant 7 : i32
      %91 = arith.andi %86, %c7_i32_40 : i32
      %92 = vector.broadcast %91 : i32 to vector<8x1xi32>
      %93 = arith.cmpi eq, %1, %92 : vector<8x1xi32>
      %cst_41 = arith.constant 0.000000e+00 : f32
      %94 = vector.shape_cast %93 : vector<8x1xi1> to vector<8x1xi1>
      %95 = vector.broadcast %94 : vector<8x1xi1> to vector<8x128xi1>
      %96 = vector.broadcast %cst_41 : f32 to vector<8x128xf32>
      %97 = arith.select %95, %90, %96 : vector<8x128xi1>, vector<8x128xf32>
      %cst_42 = arith.constant dense<0.000000e+00> : vector<128xf32>
      %98 = vector.multi_reduction <add>, %97, %cst_42 [0] : vector<8x128xf32> to vector<128xf32>
      %99 = vector.shape_cast %98 : vector<128xf32> to vector<1x128xf32>
      %100 = arith.addf %83, %99 : vector<1x128xf32>
      %c5_i32 = arith.constant 5 : i32
      %101 = arith.addi %16, %c5_i32 : i32
      %102 = arith.index_cast %101 : i32 to index
      %103 = memref.load %arg1[%102] : memref<2048xi32, #tpu.memory_space<smem>>
      %c3_i32_43 = arith.constant 3 : i32
      %104 = arith.shrsi %103, %c3_i32_43 : i32
      %105 = arith.index_cast %104 : i32 to index
      %c0_44 = arith.constant 0 : index
      %c0_45 = arith.constant 0 : index
      %106 = vector.load %arg2[%105, %c0_44, %c0_45] : memref<64x8x128xf32, #tpu.memory_space<vmem>>, vector<1x8x128xf32>
      %107 = vector.shape_cast %106 : vector<1x8x128xf32> to vector<8x128xf32>
      %c7_i32_46 = arith.constant 7 : i32
      %108 = arith.andi %103, %c7_i32_46 : i32
      %109 = vector.broadcast %108 : i32 to vector<8x1xi32>
      %110 = arith.cmpi eq, %1, %109 : vector<8x1xi32>
      %cst_47 = arith.constant 0.000000e+00 : f32
      %111 = vector.shape_cast %110 : vector<8x1xi1> to vector<8x1xi1>
      %112 = vector.broadcast %111 : vector<8x1xi1> to vector<8x128xi1>
      %113 = vector.broadcast %cst_47 : f32 to vector<8x128xf32>
      %114 = arith.select %112, %107, %113 : vector<8x128xi1>, vector<8x128xf32>
      %cst_48 = arith.constant dense<0.000000e+00> : vector<128xf32>
      %115 = vector.multi_reduction <add>, %114, %cst_48 [0] : vector<8x128xf32> to vector<128xf32>
      %116 = vector.shape_cast %115 : vector<128xf32> to vector<1x128xf32>
      %117 = arith.addf %100, %116 : vector<1x128xf32>
      %c6_i32 = arith.constant 6 : i32
      %118 = arith.addi %16, %c6_i32 : i32
      %119 = arith.index_cast %118 : i32 to index
      %120 = memref.load %arg1[%119] : memref<2048xi32, #tpu.memory_space<smem>>
      %c3_i32_49 = arith.constant 3 : i32
      %121 = arith.shrsi %120, %c3_i32_49 : i32
      %122 = arith.index_cast %121 : i32 to index
      %c0_50 = arith.constant 0 : index
      %c0_51 = arith.constant 0 : index
      %123 = vector.load %arg2[%122, %c0_50, %c0_51] : memref<64x8x128xf32, #tpu.memory_space<vmem>>, vector<1x8x128xf32>
      %124 = vector.shape_cast %123 : vector<1x8x128xf32> to vector<8x128xf32>
      %c7_i32_52 = arith.constant 7 : i32
      %125 = arith.andi %120, %c7_i32_52 : i32
      %126 = vector.broadcast %125 : i32 to vector<8x1xi32>
      %127 = arith.cmpi eq, %1, %126 : vector<8x1xi32>
      %cst_53 = arith.constant 0.000000e+00 : f32
      %128 = vector.shape_cast %127 : vector<8x1xi1> to vector<8x1xi1>
      %129 = vector.broadcast %128 : vector<8x1xi1> to vector<8x128xi1>
      %130 = vector.broadcast %cst_53 : f32 to vector<8x128xf32>
      %131 = arith.select %129, %124, %130 : vector<8x128xi1>, vector<8x128xf32>
      %cst_54 = arith.constant dense<0.000000e+00> : vector<128xf32>
      %132 = vector.multi_reduction <add>, %131, %cst_54 [0] : vector<8x128xf32> to vector<128xf32>
      %133 = vector.shape_cast %132 : vector<128xf32> to vector<1x128xf32>
      %134 = arith.addf %117, %133 : vector<1x128xf32>
      %c7_i32_55 = arith.constant 7 : i32
      %135 = arith.addi %16, %c7_i32_55 : i32
      %136 = arith.index_cast %135 : i32 to index
      %137 = memref.load %arg1[%136] : memref<2048xi32, #tpu.memory_space<smem>>
      %c3_i32_56 = arith.constant 3 : i32
      %138 = arith.shrsi %137, %c3_i32_56 : i32
      %139 = arith.index_cast %138 : i32 to index
      %c0_57 = arith.constant 0 : index
      %c0_58 = arith.constant 0 : index
      %140 = vector.load %arg2[%139, %c0_57, %c0_58] : memref<64x8x128xf32, #tpu.memory_space<vmem>>, vector<1x8x128xf32>
      %141 = vector.shape_cast %140 : vector<1x8x128xf32> to vector<8x128xf32>
      %c7_i32_59 = arith.constant 7 : i32
      %142 = arith.andi %137, %c7_i32_59 : i32
      %143 = vector.broadcast %142 : i32 to vector<8x1xi32>
      %144 = arith.cmpi eq, %1, %143 : vector<8x1xi32>
      %cst_60 = arith.constant 0.000000e+00 : f32
      %145 = vector.shape_cast %144 : vector<8x1xi1> to vector<8x1xi1>
      %146 = vector.broadcast %145 : vector<8x1xi1> to vector<8x128xi1>
      %147 = vector.broadcast %cst_60 : f32 to vector<8x128xf32>
      %148 = arith.select %146, %141, %147 : vector<8x128xi1>, vector<8x128xf32>
      %cst_61 = arith.constant dense<0.000000e+00> : vector<128xf32>
      %149 = vector.multi_reduction <add>, %148, %cst_61 [0] : vector<8x128xf32> to vector<128xf32>
      %150 = vector.shape_cast %149 : vector<128xf32> to vector<1x128xf32>
      %151 = arith.addf %134, %150 : vector<1x128xf32>
      %c8_i32_62 = arith.constant 8 : i32
      %152 = arith.muli %12, %c8_i32_62 : i32
      %c1_i32_63 = arith.constant 1 : i32
      %153 = arith.addi %152, %c1_i32_63 : i32
      %c8_i32_64 = arith.constant 8 : i32
      %154 = arith.muli %153, %c8_i32_64 : i32
      %155 = arith.addi %0, %154 : i32
      %c0_i32_65 = arith.constant 0 : i32
      %156 = arith.addi %155, %c0_i32_65 : i32
      %157 = arith.index_cast %156 : i32 to index
      %158 = memref.load %arg1[%157] : memref<2048xi32, #tpu.memory_space<smem>>
      %c3_i32_66 = arith.constant 3 : i32
      %159 = arith.shrsi %158, %c3_i32_66 : i32
      %160 = arith.index_cast %159 : i32 to index
      %c0_67 = arith.constant 0 : index
      %c0_68 = arith.constant 0 : index
      %161 = vector.load %arg2[%160, %c0_67, %c0_68] : memref<64x8x128xf32, #tpu.memory_space<vmem>>, vector<1x8x128xf32>
      %162 = vector.shape_cast %161 : vector<1x8x128xf32> to vector<8x128xf32>
      %c7_i32_69 = arith.constant 7 : i32
      %163 = arith.andi %158, %c7_i32_69 : i32
      %164 = vector.broadcast %163 : i32 to vector<8x1xi32>
      %165 = arith.cmpi eq, %1, %164 : vector<8x1xi32>
      %cst_70 = arith.constant 0.000000e+00 : f32
      %166 = vector.shape_cast %165 : vector<8x1xi1> to vector<8x1xi1>
      %167 = vector.broadcast %166 : vector<8x1xi1> to vector<8x128xi1>
      %168 = vector.broadcast %cst_70 : f32 to vector<8x128xf32>
      %169 = arith.select %167, %162, %168 : vector<8x128xi1>, vector<8x128xf32>
      %cst_71 = arith.constant dense<0.000000e+00> : vector<128xf32>
      %170 = vector.multi_reduction <add>, %169, %cst_71 [0] : vector<8x128xf32> to vector<128xf32>
      %171 = vector.shape_cast %170 : vector<128xf32> to vector<1x128xf32>
      %c1_i32_72 = arith.constant 1 : i32
      %172 = arith.addi %155, %c1_i32_72 : i32
      %173 = arith.index_cast %172 : i32 to index
      %174 = memref.load %arg1[%173] : memref<2048xi32, #tpu.memory_space<smem>>
      %c3_i32_73 = arith.constant 3 : i32
      %175 = arith.shrsi %174, %c3_i32_73 : i32
      %176 = arith.index_cast %175 : i32 to index
      %c0_74 = arith.constant 0 : index
      %c0_75 = arith.constant 0 : index
      %177 = vector.load %arg2[%176, %c0_74, %c0_75] : memref<64x8x128xf32, #tpu.memory_space<vmem>>, vector<1x8x128xf32>
      %178 = vector.shape_cast %177 : vector<1x8x128xf32> to vector<8x128xf32>
      %c7_i32_76 = arith.constant 7 : i32
      %179 = arith.andi %174, %c7_i32_76 : i32
      %180 = vector.broadcast %179 : i32 to vector<8x1xi32>
      %181 = arith.cmpi eq, %1, %180 : vector<8x1xi32>
      %cst_77 = arith.constant 0.000000e+00 : f32
      %182 = vector.shape_cast %181 : vector<8x1xi1> to vector<8x1xi1>
      %183 = vector.broadcast %182 : vector<8x1xi1> to vector<8x128xi1>
      %184 = vector.broadcast %cst_77 : f32 to vector<8x128xf32>
      %185 = arith.select %183, %178, %184 : vector<8x128xi1>, vector<8x128xf32>
      %cst_78 = arith.constant dense<0.000000e+00> : vector<128xf32>
      %186 = vector.multi_reduction <add>, %185, %cst_78 [0] : vector<8x128xf32> to vector<128xf32>
      %187 = vector.shape_cast %186 : vector<128xf32> to vector<1x128xf32>
      %188 = arith.addf %171, %187 : vector<1x128xf32>
      %c2_i32_79 = arith.constant 2 : i32
      %189 = arith.addi %155, %c2_i32_79 : i32
      %190 = arith.index_cast %189 : i32 to index
      %191 = memref.load %arg1[%190] : memref<2048xi32, #tpu.memory_space<smem>>
      %c3_i32_80 = arith.constant 3 : i32
      %192 = arith.shrsi %191, %c3_i32_80 : i32
      %193 = arith.index_cast %192 : i32 to index
      %c0_81 = arith.constant 0 : index
      %c0_82 = arith.constant 0 : index
      %194 = vector.load %arg2[%193, %c0_81, %c0_82] : memref<64x8x128xf32, #tpu.memory_space<vmem>>, vector<1x8x128xf32>
      %195 = vector.shape_cast %194 : vector<1x8x128xf32> to vector<8x128xf32>
      %c7_i32_83 = arith.constant 7 : i32
      %196 = arith.andi %191, %c7_i32_83 : i32
      %197 = vector.broadcast %196 : i32 to vector<8x1xi32>
      %198 = arith.cmpi eq, %1, %197 : vector<8x1xi32>
      %cst_84 = arith.constant 0.000000e+00 : f32
      %199 = vector.shape_cast %198 : vector<8x1xi1> to vector<8x1xi1>
      %200 = vector.broadcast %199 : vector<8x1xi1> to vector<8x128xi1>
      %201 = vector.broadcast %cst_84 : f32 to vector<8x128xf32>
      %202 = arith.select %200, %195, %201 : vector<8x128xi1>, vector<8x128xf32>
      %cst_85 = arith.constant dense<0.000000e+00> : vector<128xf32>
      %203 = vector.multi_reduction <add>, %202, %cst_85 [0] : vector<8x128xf32> to vector<128xf32>
      %204 = vector.shape_cast %203 : vector<128xf32> to vector<1x128xf32>
      %205 = arith.addf %188, %204 : vector<1x128xf32>
      %c3_i32_86 = arith.constant 3 : i32
      %206 = arith.addi %155, %c3_i32_86 : i32
      %207 = arith.index_cast %206 : i32 to index
      %208 = memref.load %arg1[%207] : memref<2048xi32, #tpu.memory_space<smem>>
      %c3_i32_87 = arith.constant 3 : i32
      %209 = arith.shrsi %208, %c3_i32_87 : i32
      %210 = arith.index_cast %209 : i32 to index
      %c0_88 = arith.constant 0 : index
      %c0_89 = arith.constant 0 : index
      %211 = vector.load %arg2[%210, %c0_88, %c0_89] : memref<64x8x128xf32, #tpu.memory_space<vmem>>, vector<1x8x128xf32>
      %212 = vector.shape_cast %211 : vector<1x8x128xf32> to vector<8x128xf32>
      %c7_i32_90 = arith.constant 7 : i32
      %213 = arith.andi %208, %c7_i32_90 : i32
      %214 = vector.broadcast %213 : i32 to vector<8x1xi32>
      %215 = arith.cmpi eq, %1, %214 : vector<8x1xi32>
      %cst_91 = arith.constant 0.000000e+00 : f32
      %216 = vector.shape_cast %215 : vector<8x1xi1> to vector<8x1xi1>
      %217 = vector.broadcast %216 : vector<8x1xi1> to vector<8x128xi1>
      %218 = vector.broadcast %cst_91 : f32 to vector<8x128xf32>
      %219 = arith.select %217, %212, %218 : vector<8x128xi1>, vector<8x128xf32>
      %cst_92 = arith.constant dense<0.000000e+00> : vector<128xf32>
      %220 = vector.multi_reduction <add>, %219, %cst_92 [0] : vector<8x128xf32> to vector<128xf32>
      %221 = vector.shape_cast %220 : vector<128xf32> to vector<1x128xf32>
      %222 = arith.addf %205, %221 : vector<1x128xf32>
      %c4_i32_93 = arith.constant 4 : i32
      %223 = arith.addi %155, %c4_i32_93 : i32
      %224 = arith.index_cast %223 : i32 to index
      %225 = memref.load %arg1[%224] : memref<2048xi32, #tpu.memory_space<smem>>
      %c3_i32_94 = arith.constant 3 : i32
      %226 = arith.shrsi %225, %c3_i32_94 : i32
      %227 = arith.index_cast %226 : i32 to index
      %c0_95 = arith.constant 0 : index
      %c0_96 = arith.constant 0 : index
      %228 = vector.load %arg2[%227, %c0_95, %c0_96] : memref<64x8x128xf32, #tpu.memory_space<vmem>>, vector<1x8x128xf32>
      %229 = vector.shape_cast %228 : vector<1x8x128xf32> to vector<8x128xf32>
      %c7_i32_97 = arith.constant 7 : i32
      %230 = arith.andi %225, %c7_i32_97 : i32
      %231 = vector.broadcast %230 : i32 to vector<8x1xi32>
      %232 = arith.cmpi eq, %1, %231 : vector<8x1xi32>
      %cst_98 = arith.constant 0.000000e+00 : f32
      %233 = vector.shape_cast %232 : vector<8x1xi1> to vector<8x1xi1>
      %234 = vector.broadcast %233 : vector<8x1xi1> to vector<8x128xi1>
      %235 = vector.broadcast %cst_98 : f32 to vector<8x128xf32>
      %236 = arith.select %234, %229, %235 : vector<8x128xi1>, vector<8x128xf32>
      %cst_99 = arith.constant dense<0.000000e+00> : vector<128xf32>
      %237 = vector.multi_reduction <add>, %236, %cst_99 [0] : vector<8x128xf32> to vector<128xf32>
      %238 = vector.shape_cast %237 : vector<128xf32> to vector<1x128xf32>
      %239 = arith.addf %222, %238 : vector<1x128xf32>
      %c5_i32_100 = arith.constant 5 : i32
      %240 = arith.addi %155, %c5_i32_100 : i32
      %241 = arith.index_cast %240 : i32 to index
      %242 = memref.load %arg1[%241] : memref<2048xi32, #tpu.memory_space<smem>>
      %c3_i32_101 = arith.constant 3 : i32
      %243 = arith.shrsi %242, %c3_i32_101 : i32
      %244 = arith.index_cast %243 : i32 to index
      %c0_102 = arith.constant 0 : index
      %c0_103 = arith.constant 0 : index
      %245 = vector.load %arg2[%244, %c0_102, %c0_103] : memref<64x8x128xf32, #tpu.memory_space<vmem>>, vector<1x8x128xf32>
      %246 = vector.shape_cast %245 : vector<1x8x128xf32> to vector<8x128xf32>
      %c7_i32_104 = arith.constant 7 : i32
      %247 = arith.andi %242, %c7_i32_104 : i32
      %248 = vector.broadcast %247 : i32 to vector<8x1xi32>
      %249 = arith.cmpi eq, %1, %248 : vector<8x1xi32>
      %cst_105 = arith.constant 0.000000e+00 : f32
      %250 = vector.shape_cast %249 : vector<8x1xi1> to vector<8x1xi1>
      %251 = vector.broadcast %250 : vector<8x1xi1> to vector<8x128xi1>
      %252 = vector.broadcast %cst_105 : f32 to vector<8x128xf32>
      %253 = arith.select %251, %246, %252 : vector<8x128xi1>, vector<8x128xf32>
      %cst_106 = arith.constant dense<0.000000e+00> : vector<128xf32>
      %254 = vector.multi_reduction <add>, %253, %cst_106 [0] : vector<8x128xf32> to vector<128xf32>
      %255 = vector.shape_cast %254 : vector<128xf32> to vector<1x128xf32>
      %256 = arith.addf %239, %255 : vector<1x128xf32>
      %c6_i32_107 = arith.constant 6 : i32
      %257 = arith.addi %155, %c6_i32_107 : i32
      %258 = arith.index_cast %257 : i32 to index
      %259 = memref.load %arg1[%258] : memref<2048xi32, #tpu.memory_space<smem>>
      %c3_i32_108 = arith.constant 3 : i32
      %260 = arith.shrsi %259, %c3_i32_108 : i32
      %261 = arith.index_cast %260 : i32 to index
      %c0_109 = arith.constant 0 : index
      %c0_110 = arith.constant 0 : index
      %262 = vector.load %arg2[%261, %c0_109, %c0_110] : memref<64x8x128xf32, #tpu.memory_space<vmem>>, vector<1x8x128xf32>
      %263 = vector.shape_cast %262 : vector<1x8x128xf32> to vector<8x128xf32>
      %c7_i32_111 = arith.constant 7 : i32
      %264 = arith.andi %259, %c7_i32_111 : i32
      %265 = vector.broadcast %264 : i32 to vector<8x1xi32>
      %266 = arith.cmpi eq, %1, %265 : vector<8x1xi32>
      %cst_112 = arith.constant 0.000000e+00 : f32
      %267 = vector.shape_cast %266 : vector<8x1xi1> to vector<8x1xi1>
      %268 = vector.broadcast %267 : vector<8x1xi1> to vector<8x128xi1>
      %269 = vector.broadcast %cst_112 : f32 to vector<8x128xf32>
      %270 = arith.select %268, %263, %269 : vector<8x128xi1>, vector<8x128xf32>
      %cst_113 = arith.constant dense<0.000000e+00> : vector<128xf32>
      %271 = vector.multi_reduction <add>, %270, %cst_113 [0] : vector<8x128xf32> to vector<128xf32>
      %272 = vector.shape_cast %271 : vector<128xf32> to vector<1x128xf32>
      %273 = arith.addf %256, %272 : vector<1x128xf32>
      %c7_i32_114 = arith.constant 7 : i32
      %274 = arith.addi %155, %c7_i32_114 : i32
      %275 = arith.index_cast %274 : i32 to index
      %276 = memref.load %arg1[%275] : memref<2048xi32, #tpu.memory_space<smem>>
      %c3_i32_115 = arith.constant 3 : i32
      %277 = arith.shrsi %276, %c3_i32_115 : i32
      %278 = arith.index_cast %277 : i32 to index
      %c0_116 = arith.constant 0 : index
      %c0_117 = arith.constant 0 : index
      %279 = vector.load %arg2[%278, %c0_116, %c0_117] : memref<64x8x128xf32, #tpu.memory_space<vmem>>, vector<1x8x128xf32>
      %280 = vector.shape_cast %279 : vector<1x8x128xf32> to vector<8x128xf32>
      %c7_i32_118 = arith.constant 7 : i32
      %281 = arith.andi %276, %c7_i32_118 : i32
      %282 = vector.broadcast %281 : i32 to vector<8x1xi32>
      %283 = arith.cmpi eq, %1, %282 : vector<8x1xi32>
      %cst_119 = arith.constant 0.000000e+00 : f32
      %284 = vector.shape_cast %283 : vector<8x1xi1> to vector<8x1xi1>
      %285 = vector.broadcast %284 : vector<8x1xi1> to vector<8x128xi1>
      %286 = vector.broadcast %cst_119 : f32 to vector<8x128xf32>
      %287 = arith.select %285, %280, %286 : vector<8x128xi1>, vector<8x128xf32>
      %cst_120 = arith.constant dense<0.000000e+00> : vector<128xf32>
      %288 = vector.multi_reduction <add>, %287, %cst_120 [0] : vector<8x128xf32> to vector<128xf32>
      %289 = vector.shape_cast %288 : vector<128xf32> to vector<1x128xf32>
      %290 = arith.addf %273, %289 : vector<1x128xf32>
      %c8_i32_121 = arith.constant 8 : i32
      %291 = arith.muli %12, %c8_i32_121 : i32
      %c2_i32_122 = arith.constant 2 : i32
      %292 = arith.addi %291, %c2_i32_122 : i32
      %c8_i32_123 = arith.constant 8 : i32
      %293 = arith.muli %292, %c8_i32_123 : i32
      %294 = arith.addi %0, %293 : i32
      %c0_i32_124 = arith.constant 0 : i32
      %295 = arith.addi %294, %c0_i32_124 : i32
      %296 = arith.index_cast %295 : i32 to index
      %297 = memref.load %arg1[%296] : memref<2048xi32, #tpu.memory_space<smem>>
      %c3_i32_125 = arith.constant 3 : i32
      %298 = arith.shrsi %297, %c3_i32_125 : i32
      %299 = arith.index_cast %298 : i32 to index
      %c0_126 = arith.constant 0 : index
      %c0_127 = arith.constant 0 : index
      %300 = vector.load %arg2[%299, %c0_126, %c0_127] : memref<64x8x128xf32, #tpu.memory_space<vmem>>, vector<1x8x128xf32>
      %301 = vector.shape_cast %300 : vector<1x8x128xf32> to vector<8x128xf32>
      %c7_i32_128 = arith.constant 7 : i32
      %302 = arith.andi %297, %c7_i32_128 : i32
      %303 = vector.broadcast %302 : i32 to vector<8x1xi32>
      %304 = arith.cmpi eq, %1, %303 : vector<8x1xi32>
      %cst_129 = arith.constant 0.000000e+00 : f32
      %305 = vector.shape_cast %304 : vector<8x1xi1> to vector<8x1xi1>
      %306 = vector.broadcast %305 : vector<8x1xi1> to vector<8x128xi1>
      %307 = vector.broadcast %cst_129 : f32 to vector<8x128xf32>
      %308 = arith.select %306, %301, %307 : vector<8x128xi1>, vector<8x128xf32>
      %cst_130 = arith.constant dense<0.000000e+00> : vector<128xf32>
      %309 = vector.multi_reduction <add>, %308, %cst_130 [0] : vector<8x128xf32> to vector<128xf32>
      %310 = vector.shape_cast %309 : vector<128xf32> to vector<1x128xf32>
      %c1_i32_131 = arith.constant 1 : i32
      %311 = arith.addi %294, %c1_i32_131 : i32
      %312 = arith.index_cast %311 : i32 to index
      %313 = memref.load %arg1[%312] : memref<2048xi32, #tpu.memory_space<smem>>
      %c3_i32_132 = arith.constant 3 : i32
      %314 = arith.shrsi %313, %c3_i32_132 : i32
      %315 = arith.index_cast %314 : i32 to index
      %c0_133 = arith.constant 0 : index
      %c0_134 = arith.constant 0 : index
      %316 = vector.load %arg2[%315, %c0_133, %c0_134] : memref<64x8x128xf32, #tpu.memory_space<vmem>>, vector<1x8x128xf32>
      %317 = vector.shape_cast %316 : vector<1x8x128xf32> to vector<8x128xf32>
      %c7_i32_135 = arith.constant 7 : i32
      %318 = arith.andi %313, %c7_i32_135 : i32
      %319 = vector.broadcast %318 : i32 to vector<8x1xi32>
      %320 = arith.cmpi eq, %1, %319 : vector<8x1xi32>
      %cst_136 = arith.constant 0.000000e+00 : f32
      %321 = vector.shape_cast %320 : vector<8x1xi1> to vector<8x1xi1>
      %322 = vector.broadcast %321 : vector<8x1xi1> to vector<8x128xi1>
      %323 = vector.broadcast %cst_136 : f32 to vector<8x128xf32>
      %324 = arith.select %322, %317, %323 : vector<8x128xi1>, vector<8x128xf32>
      %cst_137 = arith.constant dense<0.000000e+00> : vector<128xf32>
      %325 = vector.multi_reduction <add>, %324, %cst_137 [0] : vector<8x128xf32> to vector<128xf32>
      %326 = vector.shape_cast %325 : vector<128xf32> to vector<1x128xf32>
      %327 = arith.addf %310, %326 : vector<1x128xf32>
      %c2_i32_138 = arith.constant 2 : i32
      %328 = arith.addi %294, %c2_i32_138 : i32
      %329 = arith.index_cast %328 : i32 to index
      %330 = memref.load %arg1[%329] : memref<2048xi32, #tpu.memory_space<smem>>
      %c3_i32_139 = arith.constant 3 : i32
      %331 = arith.shrsi %330, %c3_i32_139 : i32
      %332 = arith.index_cast %331 : i32 to index
      %c0_140 = arith.constant 0 : index
      %c0_141 = arith.constant 0 : index
      %333 = vector.load %arg2[%332, %c0_140, %c0_141] : memref<64x8x128xf32, #tpu.memory_space<vmem>>, vector<1x8x128xf32>
      %334 = vector.shape_cast %333 : vector<1x8x128xf32> to vector<8x128xf32>
      %c7_i32_142 = arith.constant 7 : i32
      %335 = arith.andi %330, %c7_i32_142 : i32
      %336 = vector.broadcast %335 : i32 to vector<8x1xi32>
      %337 = arith.cmpi eq, %1, %336 : vector<8x1xi32>
      %cst_143 = arith.constant 0.000000e+00 : f32
      %338 = vector.shape_cast %337 : vector<8x1xi1> to vector<8x1xi1>
      %339 = vector.broadcast %338 : vector<8x1xi1> to vector<8x128xi1>
      %340 = vector.broadcast %cst_143 : f32 to vector<8x128xf32>
      %341 = arith.select %339, %334, %340 : vector<8x128xi1>, vector<8x128xf32>
      %cst_144 = arith.constant dense<0.000000e+00> : vector<128xf32>
      %342 = vector.multi_reduction <add>, %341, %cst_144 [0] : vector<8x128xf32> to vector<128xf32>
      %343 = vector.shape_cast %342 : vector<128xf32> to vector<1x128xf32>
      %344 = arith.addf %327, %343 : vector<1x128xf32>
      %c3_i32_145 = arith.constant 3 : i32
      %345 = arith.addi %294, %c3_i32_145 : i32
      %346 = arith.index_cast %345 : i32 to index
      %347 = memref.load %arg1[%346] : memref<2048xi32, #tpu.memory_space<smem>>
      %c3_i32_146 = arith.constant 3 : i32
      %348 = arith.shrsi %347, %c3_i32_146 : i32
      %349 = arith.index_cast %348 : i32 to index
      %c0_147 = arith.constant 0 : index
      %c0_148 = arith.constant 0 : index
      %350 = vector.load %arg2[%349, %c0_147, %c0_148] : memref<64x8x128xf32, #tpu.memory_space<vmem>>, vector<1x8x128xf32>
      %351 = vector.shape_cast %350 : vector<1x8x128xf32> to vector<8x128xf32>
      %c7_i32_149 = arith.constant 7 : i32
      %352 = arith.andi %347, %c7_i32_149 : i32
      %353 = vector.broadcast %352 : i32 to vector<8x1xi32>
      %354 = arith.cmpi eq, %1, %353 : vector<8x1xi32>
      %cst_150 = arith.constant 0.000000e+00 : f32
      %355 = vector.shape_cast %354 : vector<8x1xi1> to vector<8x1xi1>
      %356 = vector.broadcast %355 : vector<8x1xi1> to vector<8x128xi1>
      %357 = vector.broadcast %cst_150 : f32 to vector<8x128xf32>
      %358 = arith.select %356, %351, %357 : vector<8x128xi1>, vector<8x128xf32>
      %cst_151 = arith.constant dense<0.000000e+00> : vector<128xf32>
      %359 = vector.multi_reduction <add>, %358, %cst_151 [0] : vector<8x128xf32> to vector<128xf32>
      %360 = vector.shape_cast %359 : vector<128xf32> to vector<1x128xf32>
      %361 = arith.addf %344, %360 : vector<1x128xf32>
      %c4_i32_152 = arith.constant 4 : i32
      %362 = arith.addi %294, %c4_i32_152 : i32
      %363 = arith.index_cast %362 : i32 to index
      %364 = memref.load %arg1[%363] : memref<2048xi32, #tpu.memory_space<smem>>
      %c3_i32_153 = arith.constant 3 : i32
      %365 = arith.shrsi %364, %c3_i32_153 : i32
      %366 = arith.index_cast %365 : i32 to index
      %c0_154 = arith.constant 0 : index
      %c0_155 = arith.constant 0 : index
      %367 = vector.load %arg2[%366, %c0_154, %c0_155] : memref<64x8x128xf32, #tpu.memory_space<vmem>>, vector<1x8x128xf32>
      %368 = vector.shape_cast %367 : vector<1x8x128xf32> to vector<8x128xf32>
      %c7_i32_156 = arith.constant 7 : i32
      %369 = arith.andi %364, %c7_i32_156 : i32
      %370 = vector.broadcast %369 : i32 to vector<8x1xi32>
      %371 = arith.cmpi eq, %1, %370 : vector<8x1xi32>
      %cst_157 = arith.constant 0.000000e+00 : f32
      %372 = vector.shape_cast %371 : vector<8x1xi1> to vector<8x1xi1>
      %373 = vector.broadcast %372 : vector<8x1xi1> to vector<8x128xi1>
      %374 = vector.broadcast %cst_157 : f32 to vector<8x128xf32>
      %375 = arith.select %373, %368, %374 : vector<8x128xi1>, vector<8x128xf32>
      %cst_158 = arith.constant dense<0.000000e+00> : vector<128xf32>
      %376 = vector.multi_reduction <add>, %375, %cst_158 [0] : vector<8x128xf32> to vector<128xf32>
      %377 = vector.shape_cast %376 : vector<128xf32> to vector<1x128xf32>
      %378 = arith.addf %361, %377 : vector<1x128xf32>
      %c5_i32_159 = arith.constant 5 : i32
      %379 = arith.addi %294, %c5_i32_159 : i32
      %380 = arith.index_cast %379 : i32 to index
      %381 = memref.load %arg1[%380] : memref<2048xi32, #tpu.memory_space<smem>>
      %c3_i32_160 = arith.constant 3 : i32
      %382 = arith.shrsi %381, %c3_i32_160 : i32
      %383 = arith.index_cast %382 : i32 to index
      %c0_161 = arith.constant 0 : index
      %c0_162 = arith.constant 0 : index
      %384 = vector.load %arg2[%383, %c0_161, %c0_162] : memref<64x8x128xf32, #tpu.memory_space<vmem>>, vector<1x8x128xf32>
      %385 = vector.shape_cast %384 : vector<1x8x128xf32> to vector<8x128xf32>
      %c7_i32_163 = arith.constant 7 : i32
      %386 = arith.andi %381, %c7_i32_163 : i32
      %387 = vector.broadcast %386 : i32 to vector<8x1xi32>
      %388 = arith.cmpi eq, %1, %387 : vector<8x1xi32>
      %cst_164 = arith.constant 0.000000e+00 : f32
      %389 = vector.shape_cast %388 : vector<8x1xi1> to vector<8x1xi1>
      %390 = vector.broadcast %389 : vector<8x1xi1> to vector<8x128xi1>
      %391 = vector.broadcast %cst_164 : f32 to vector<8x128xf32>
      %392 = arith.select %390, %385, %391 : vector<8x128xi1>, vector<8x128xf32>
      %cst_165 = arith.constant dense<0.000000e+00> : vector<128xf32>
      %393 = vector.multi_reduction <add>, %392, %cst_165 [0] : vector<8x128xf32> to vector<128xf32>
      %394 = vector.shape_cast %393 : vector<128xf32> to vector<1x128xf32>
      %395 = arith.addf %378, %394 : vector<1x128xf32>
      %c6_i32_166 = arith.constant 6 : i32
      %396 = arith.addi %294, %c6_i32_166 : i32
      %397 = arith.index_cast %396 : i32 to index
      %398 = memref.load %arg1[%397] : memref<2048xi32, #tpu.memory_space<smem>>
      %c3_i32_167 = arith.constant 3 : i32
      %399 = arith.shrsi %398, %c3_i32_167 : i32
      %400 = arith.index_cast %399 : i32 to index
      %c0_168 = arith.constant 0 : index
      %c0_169 = arith.constant 0 : index
      %401 = vector.load %arg2[%400, %c0_168, %c0_169] : memref<64x8x128xf32, #tpu.memory_space<vmem>>, vector<1x8x128xf32>
      %402 = vector.shape_cast %401 : vector<1x8x128xf32> to vector<8x128xf32>
      %c7_i32_170 = arith.constant 7 : i32
      %403 = arith.andi %398, %c7_i32_170 : i32
      %404 = vector.broadcast %403 : i32 to vector<8x1xi32>
      %405 = arith.cmpi eq, %1, %404 : vector<8x1xi32>
      %cst_171 = arith.constant 0.000000e+00 : f32
      %406 = vector.shape_cast %405 : vector<8x1xi1> to vector<8x1xi1>
      %407 = vector.broadcast %406 : vector<8x1xi1> to vector<8x128xi1>
      %408 = vector.broadcast %cst_171 : f32 to vector<8x128xf32>
      %409 = arith.select %407, %402, %408 : vector<8x128xi1>, vector<8x128xf32>
      %cst_172 = arith.constant dense<0.000000e+00> : vector<128xf32>
      %410 = vector.multi_reduction <add>, %409, %cst_172 [0] : vector<8x128xf32> to vector<128xf32>
      %411 = vector.shape_cast %410 : vector<128xf32> to vector<1x128xf32>
      %412 = arith.addf %395, %411 : vector<1x128xf32>
      %c7_i32_173 = arith.constant 7 : i32
      %413 = arith.addi %294, %c7_i32_173 : i32
      %414 = arith.index_cast %413 : i32 to index
      %415 = memref.load %arg1[%414] : memref<2048xi32, #tpu.memory_space<smem>>
      %c3_i32_174 = arith.constant 3 : i32
      %416 = arith.shrsi %415, %c3_i32_174 : i32
      %417 = arith.index_cast %416 : i32 to index
      %c0_175 = arith.constant 0 : index
      %c0_176 = arith.constant 0 : index
      %418 = vector.load %arg2[%417, %c0_175, %c0_176] : memref<64x8x128xf32, #tpu.memory_space<vmem>>, vector<1x8x128xf32>
      %419 = vector.shape_cast %418 : vector<1x8x128xf32> to vector<8x128xf32>
      %c7_i32_177 = arith.constant 7 : i32
      %420 = arith.andi %415, %c7_i32_177 : i32
      %421 = vector.broadcast %420 : i32 to vector<8x1xi32>
      %422 = arith.cmpi eq, %1, %421 : vector<8x1xi32>
      %cst_178 = arith.constant 0.000000e+00 : f32
      %423 = vector.shape_cast %422 : vector<8x1xi1> to vector<8x1xi1>
      %424 = vector.broadcast %423 : vector<8x1xi1> to vector<8x128xi1>
      %425 = vector.broadcast %cst_178 : f32 to vector<8x128xf32>
      %426 = arith.select %424, %419, %425 : vector<8x128xi1>, vector<8x128xf32>
      %cst_179 = arith.constant dense<0.000000e+00> : vector<128xf32>
      %427 = vector.multi_reduction <add>, %426, %cst_179 [0] : vector<8x128xf32> to vector<128xf32>
      %428 = vector.shape_cast %427 : vector<128xf32> to vector<1x128xf32>
      %429 = arith.addf %412, %428 : vector<1x128xf32>
      %c8_i32_180 = arith.constant 8 : i32
      %430 = arith.muli %12, %c8_i32_180 : i32
      %c3_i32_181 = arith.constant 3 : i32
      %431 = arith.addi %430, %c3_i32_181 : i32
      %c8_i32_182 = arith.constant 8 : i32
      %432 = arith.muli %431, %c8_i32_182 : i32
      %433 = arith.addi %0, %432 : i32
      %c0_i32_183 = arith.constant 0 : i32
      %434 = arith.addi %433, %c0_i32_183 : i32
      %435 = arith.index_cast %434 : i32 to index
      %436 = memref.load %arg1[%435] : memref<2048xi32, #tpu.memory_space<smem>>
      %c3_i32_184 = arith.constant 3 : i32
      %437 = arith.shrsi %436, %c3_i32_184 : i32
      %438 = arith.index_cast %437 : i32 to index
      %c0_185 = arith.constant 0 : index
      %c0_186 = arith.constant 0 : index
      %439 = vector.load %arg2[%438, %c0_185, %c0_186] : memref<64x8x128xf32, #tpu.memory_space<vmem>>, vector<1x8x128xf32>
      %440 = vector.shape_cast %439 : vector<1x8x128xf32> to vector<8x128xf32>
      %c7_i32_187 = arith.constant 7 : i32
      %441 = arith.andi %436, %c7_i32_187 : i32
      %442 = vector.broadcast %441 : i32 to vector<8x1xi32>
      %443 = arith.cmpi eq, %1, %442 : vector<8x1xi32>
      %cst_188 = arith.constant 0.000000e+00 : f32
      %444 = vector.shape_cast %443 : vector<8x1xi1> to vector<8x1xi1>
      %445 = vector.broadcast %444 : vector<8x1xi1> to vector<8x128xi1>
      %446 = vector.broadcast %cst_188 : f32 to vector<8x128xf32>
      %447 = arith.select %445, %440, %446 : vector<8x128xi1>, vector<8x128xf32>
      %cst_189 = arith.constant dense<0.000000e+00> : vector<128xf32>
      %448 = vector.multi_reduction <add>, %447, %cst_189 [0] : vector<8x128xf32> to vector<128xf32>
      %449 = vector.shape_cast %448 : vector<128xf32> to vector<1x128xf32>
      %c1_i32_190 = arith.constant 1 : i32
      %450 = arith.addi %433, %c1_i32_190 : i32
      %451 = arith.index_cast %450 : i32 to index
      %452 = memref.load %arg1[%451] : memref<2048xi32, #tpu.memory_space<smem>>
      %c3_i32_191 = arith.constant 3 : i32
      %453 = arith.shrsi %452, %c3_i32_191 : i32
      %454 = arith.index_cast %453 : i32 to index
      %c0_192 = arith.constant 0 : index
      %c0_193 = arith.constant 0 : index
      %455 = vector.load %arg2[%454, %c0_192, %c0_193] : memref<64x8x128xf32, #tpu.memory_space<vmem>>, vector<1x8x128xf32>
      %456 = vector.shape_cast %455 : vector<1x8x128xf32> to vector<8x128xf32>
      %c7_i32_194 = arith.constant 7 : i32
      %457 = arith.andi %452, %c7_i32_194 : i32
      %458 = vector.broadcast %457 : i32 to vector<8x1xi32>
      %459 = arith.cmpi eq, %1, %458 : vector<8x1xi32>
      %cst_195 = arith.constant 0.000000e+00 : f32
      %460 = vector.shape_cast %459 : vector<8x1xi1> to vector<8x1xi1>
      %461 = vector.broadcast %460 : vector<8x1xi1> to vector<8x128xi1>
      %462 = vector.broadcast %cst_195 : f32 to vector<8x128xf32>
      %463 = arith.select %461, %456, %462 : vector<8x128xi1>, vector<8x128xf32>
      %cst_196 = arith.constant dense<0.000000e+00> : vector<128xf32>
      %464 = vector.multi_reduction <add>, %463, %cst_196 [0] : vector<8x128xf32> to vector<128xf32>
      %465 = vector.shape_cast %464 : vector<128xf32> to vector<1x128xf32>
      %466 = arith.addf %449, %465 : vector<1x128xf32>
      %c2_i32_197 = arith.constant 2 : i32
      %467 = arith.addi %433, %c2_i32_197 : i32
      %468 = arith.index_cast %467 : i32 to index
      %469 = memref.load %arg1[%468] : memref<2048xi32, #tpu.memory_space<smem>>
      %c3_i32_198 = arith.constant 3 : i32
      %470 = arith.shrsi %469, %c3_i32_198 : i32
      %471 = arith.index_cast %470 : i32 to index
      %c0_199 = arith.constant 0 : index
      %c0_200 = arith.constant 0 : index
      %472 = vector.load %arg2[%471, %c0_199, %c0_200] : memref<64x8x128xf32, #tpu.memory_space<vmem>>, vector<1x8x128xf32>
      %473 = vector.shape_cast %472 : vector<1x8x128xf32> to vector<8x128xf32>
      %c7_i32_201 = arith.constant 7 : i32
      %474 = arith.andi %469, %c7_i32_201 : i32
      %475 = vector.broadcast %474 : i32 to vector<8x1xi32>
      %476 = arith.cmpi eq, %1, %475 : vector<8x1xi32>
      %cst_202 = arith.constant 0.000000e+00 : f32
      %477 = vector.shape_cast %476 : vector<8x1xi1> to vector<8x1xi1>
      %478 = vector.broadcast %477 : vector<8x1xi1> to vector<8x128xi1>
      %479 = vector.broadcast %cst_202 : f32 to vector<8x128xf32>
      %480 = arith.select %478, %473, %479 : vector<8x128xi1>, vector<8x128xf32>
      %cst_203 = arith.constant dense<0.000000e+00> : vector<128xf32>
      %481 = vector.multi_reduction <add>, %480, %cst_203 [0] : vector<8x128xf32> to vector<128xf32>
      %482 = vector.shape_cast %481 : vector<128xf32> to vector<1x128xf32>
      %483 = arith.addf %466, %482 : vector<1x128xf32>
      %c3_i32_204 = arith.constant 3 : i32
      %484 = arith.addi %433, %c3_i32_204 : i32
      %485 = arith.index_cast %484 : i32 to index
      %486 = memref.load %arg1[%485] : memref<2048xi32, #tpu.memory_space<smem>>
      %c3_i32_205 = arith.constant 3 : i32
      %487 = arith.shrsi %486, %c3_i32_205 : i32
      %488 = arith.index_cast %487 : i32 to index
      %c0_206 = arith.constant 0 : index
      %c0_207 = arith.constant 0 : index
      %489 = vector.load %arg2[%488, %c0_206, %c0_207] : memref<64x8x128xf32, #tpu.memory_space<vmem>>, vector<1x8x128xf32>
      %490 = vector.shape_cast %489 : vector<1x8x128xf32> to vector<8x128xf32>
      %c7_i32_208 = arith.constant 7 : i32
      %491 = arith.andi %486, %c7_i32_208 : i32
      %492 = vector.broadcast %491 : i32 to vector<8x1xi32>
      %493 = arith.cmpi eq, %1, %492 : vector<8x1xi32>
      %cst_209 = arith.constant 0.000000e+00 : f32
      %494 = vector.shape_cast %493 : vector<8x1xi1> to vector<8x1xi1>
      %495 = vector.broadcast %494 : vector<8x1xi1> to vector<8x128xi1>
      %496 = vector.broadcast %cst_209 : f32 to vector<8x128xf32>
      %497 = arith.select %495, %490, %496 : vector<8x128xi1>, vector<8x128xf32>
      %cst_210 = arith.constant dense<0.000000e+00> : vector<128xf32>
      %498 = vector.multi_reduction <add>, %497, %cst_210 [0] : vector<8x128xf32> to vector<128xf32>
      %499 = vector.shape_cast %498 : vector<128xf32> to vector<1x128xf32>
      %500 = arith.addf %483, %499 : vector<1x128xf32>
      %c4_i32_211 = arith.constant 4 : i32
      %501 = arith.addi %433, %c4_i32_211 : i32
      %502 = arith.index_cast %501 : i32 to index
      %503 = memref.load %arg1[%502] : memref<2048xi32, #tpu.memory_space<smem>>
      %c3_i32_212 = arith.constant 3 : i32
      %504 = arith.shrsi %503, %c3_i32_212 : i32
      %505 = arith.index_cast %504 : i32 to index
      %c0_213 = arith.constant 0 : index
      %c0_214 = arith.constant 0 : index
      %506 = vector.load %arg2[%505, %c0_213, %c0_214] : memref<64x8x128xf32, #tpu.memory_space<vmem>>, vector<1x8x128xf32>
      %507 = vector.shape_cast %506 : vector<1x8x128xf32> to vector<8x128xf32>
      %c7_i32_215 = arith.constant 7 : i32
      %508 = arith.andi %503, %c7_i32_215 : i32
      %509 = vector.broadcast %508 : i32 to vector<8x1xi32>
      %510 = arith.cmpi eq, %1, %509 : vector<8x1xi32>
      %cst_216 = arith.constant 0.000000e+00 : f32
      %511 = vector.shape_cast %510 : vector<8x1xi1> to vector<8x1xi1>
      %512 = vector.broadcast %511 : vector<8x1xi1> to vector<8x128xi1>
      %513 = vector.broadcast %cst_216 : f32 to vector<8x128xf32>
      %514 = arith.select %512, %507, %513 : vector<8x128xi1>, vector<8x128xf32>
      %cst_217 = arith.constant dense<0.000000e+00> : vector<128xf32>
      %515 = vector.multi_reduction <add>, %514, %cst_217 [0] : vector<8x128xf32> to vector<128xf32>
      %516 = vector.shape_cast %515 : vector<128xf32> to vector<1x128xf32>
      %517 = arith.addf %500, %516 : vector<1x128xf32>
      %c5_i32_218 = arith.constant 5 : i32
      %518 = arith.addi %433, %c5_i32_218 : i32
      %519 = arith.index_cast %518 : i32 to index
      %520 = memref.load %arg1[%519] : memref<2048xi32, #tpu.memory_space<smem>>
      %c3_i32_219 = arith.constant 3 : i32
      %521 = arith.shrsi %520, %c3_i32_219 : i32
      %522 = arith.index_cast %521 : i32 to index
      %c0_220 = arith.constant 0 : index
      %c0_221 = arith.constant 0 : index
      %523 = vector.load %arg2[%522, %c0_220, %c0_221] : memref<64x8x128xf32, #tpu.memory_space<vmem>>, vector<1x8x128xf32>
      %524 = vector.shape_cast %523 : vector<1x8x128xf32> to vector<8x128xf32>
      %c7_i32_222 = arith.constant 7 : i32
      %525 = arith.andi %520, %c7_i32_222 : i32
      %526 = vector.broadcast %525 : i32 to vector<8x1xi32>
      %527 = arith.cmpi eq, %1, %526 : vector<8x1xi32>
      %cst_223 = arith.constant 0.000000e+00 : f32
      %528 = vector.shape_cast %527 : vector<8x1xi1> to vector<8x1xi1>
      %529 = vector.broadcast %528 : vector<8x1xi1> to vector<8x128xi1>
      %530 = vector.broadcast %cst_223 : f32 to vector<8x128xf32>
      %531 = arith.select %529, %524, %530 : vector<8x128xi1>, vector<8x128xf32>
      %cst_224 = arith.constant dense<0.000000e+00> : vector<128xf32>
      %532 = vector.multi_reduction <add>, %531, %cst_224 [0] : vector<8x128xf32> to vector<128xf32>
      %533 = vector.shape_cast %532 : vector<128xf32> to vector<1x128xf32>
      %534 = arith.addf %517, %533 : vector<1x128xf32>
      %c6_i32_225 = arith.constant 6 : i32
      %535 = arith.addi %433, %c6_i32_225 : i32
      %536 = arith.index_cast %535 : i32 to index
      %537 = memref.load %arg1[%536] : memref<2048xi32, #tpu.memory_space<smem>>
      %c3_i32_226 = arith.constant 3 : i32
      %538 = arith.shrsi %537, %c3_i32_226 : i32
      %539 = arith.index_cast %538 : i32 to index
      %c0_227 = arith.constant 0 : index
      %c0_228 = arith.constant 0 : index
      %540 = vector.load %arg2[%539, %c0_227, %c0_228] : memref<64x8x128xf32, #tpu.memory_space<vmem>>, vector<1x8x128xf32>
      %541 = vector.shape_cast %540 : vector<1x8x128xf32> to vector<8x128xf32>
      %c7_i32_229 = arith.constant 7 : i32
      %542 = arith.andi %537, %c7_i32_229 : i32
      %543 = vector.broadcast %542 : i32 to vector<8x1xi32>
      %544 = arith.cmpi eq, %1, %543 : vector<8x1xi32>
      %cst_230 = arith.constant 0.000000e+00 : f32
      %545 = vector.shape_cast %544 : vector<8x1xi1> to vector<8x1xi1>
      %546 = vector.broadcast %545 : vector<8x1xi1> to vector<8x128xi1>
      %547 = vector.broadcast %cst_230 : f32 to vector<8x128xf32>
      %548 = arith.select %546, %541, %547 : vector<8x128xi1>, vector<8x128xf32>
      %cst_231 = arith.constant dense<0.000000e+00> : vector<128xf32>
      %549 = vector.multi_reduction <add>, %548, %cst_231 [0] : vector<8x128xf32> to vector<128xf32>
      %550 = vector.shape_cast %549 : vector<128xf32> to vector<1x128xf32>
      %551 = arith.addf %534, %550 : vector<1x128xf32>
      %c7_i32_232 = arith.constant 7 : i32
      %552 = arith.addi %433, %c7_i32_232 : i32
      %553 = arith.index_cast %552 : i32 to index
      %554 = memref.load %arg1[%553] : memref<2048xi32, #tpu.memory_space<smem>>
      %c3_i32_233 = arith.constant 3 : i32
      %555 = arith.shrsi %554, %c3_i32_233 : i32
      %556 = arith.index_cast %555 : i32 to index
      %c0_234 = arith.constant 0 : index
      %c0_235 = arith.constant 0 : index
      %557 = vector.load %arg2[%556, %c0_234, %c0_235] : memref<64x8x128xf32, #tpu.memory_space<vmem>>, vector<1x8x128xf32>
      %558 = vector.shape_cast %557 : vector<1x8x128xf32> to vector<8x128xf32>
      %c7_i32_236 = arith.constant 7 : i32
      %559 = arith.andi %554, %c7_i32_236 : i32
      %560 = vector.broadcast %559 : i32 to vector<8x1xi32>
      %561 = arith.cmpi eq, %1, %560 : vector<8x1xi32>
      %cst_237 = arith.constant 0.000000e+00 : f32
      %562 = vector.shape_cast %561 : vector<8x1xi1> to vector<8x1xi1>
      %563 = vector.broadcast %562 : vector<8x1xi1> to vector<8x128xi1>
      %564 = vector.broadcast %cst_237 : f32 to vector<8x128xf32>
      %565 = arith.select %563, %558, %564 : vector<8x128xi1>, vector<8x128xf32>
      %cst_238 = arith.constant dense<0.000000e+00> : vector<128xf32>
      %566 = vector.multi_reduction <add>, %565, %cst_238 [0] : vector<8x128xf32> to vector<128xf32>
      %567 = vector.shape_cast %566 : vector<128xf32> to vector<1x128xf32>
      %568 = arith.addf %551, %567 : vector<1x128xf32>
      %c8_i32_239 = arith.constant 8 : i32
      %569 = arith.muli %12, %c8_i32_239 : i32
      %c4_i32_240 = arith.constant 4 : i32
      %570 = arith.addi %569, %c4_i32_240 : i32
      %c8_i32_241 = arith.constant 8 : i32
      %571 = arith.muli %570, %c8_i32_241 : i32
      %572 = arith.addi %0, %571 : i32
      %c0_i32_242 = arith.constant 0 : i32
      %573 = arith.addi %572, %c0_i32_242 : i32
      %574 = arith.index_cast %573 : i32 to index
      %575 = memref.load %arg1[%574] : memref<2048xi32, #tpu.memory_space<smem>>
      %c3_i32_243 = arith.constant 3 : i32
      %576 = arith.shrsi %575, %c3_i32_243 : i32
      %577 = arith.index_cast %576 : i32 to index
      %c0_244 = arith.constant 0 : index
      %c0_245 = arith.constant 0 : index
      %578 = vector.load %arg2[%577, %c0_244, %c0_245] : memref<64x8x128xf32, #tpu.memory_space<vmem>>, vector<1x8x128xf32>
      %579 = vector.shape_cast %578 : vector<1x8x128xf32> to vector<8x128xf32>
      %c7_i32_246 = arith.constant 7 : i32
      %580 = arith.andi %575, %c7_i32_246 : i32
      %581 = vector.broadcast %580 : i32 to vector<8x1xi32>
      %582 = arith.cmpi eq, %1, %581 : vector<8x1xi32>
      %cst_247 = arith.constant 0.000000e+00 : f32
      %583 = vector.shape_cast %582 : vector<8x1xi1> to vector<8x1xi1>
      %584 = vector.broadcast %583 : vector<8x1xi1> to vector<8x128xi1>
      %585 = vector.broadcast %cst_247 : f32 to vector<8x128xf32>
      %586 = arith.select %584, %579, %585 : vector<8x128xi1>, vector<8x128xf32>
      %cst_248 = arith.constant dense<0.000000e+00> : vector<128xf32>
      %587 = vector.multi_reduction <add>, %586, %cst_248 [0] : vector<8x128xf32> to vector<128xf32>
      %588 = vector.shape_cast %587 : vector<128xf32> to vector<1x128xf32>
      %c1_i32_249 = arith.constant 1 : i32
      %589 = arith.addi %572, %c1_i32_249 : i32
      %590 = arith.index_cast %589 : i32 to index
      %591 = memref.load %arg1[%590] : memref<2048xi32, #tpu.memory_space<smem>>
      %c3_i32_250 = arith.constant 3 : i32
      %592 = arith.shrsi %591, %c3_i32_250 : i32
      %593 = arith.index_cast %592 : i32 to index
      %c0_251 = arith.constant 0 : index
      %c0_252 = arith.constant 0 : index
      %594 = vector.load %arg2[%593, %c0_251, %c0_252] : memref<64x8x128xf32, #tpu.memory_space<vmem>>, vector<1x8x128xf32>
      %595 = vector.shape_cast %594 : vector<1x8x128xf32> to vector<8x128xf32>
      %c7_i32_253 = arith.constant 7 : i32
      %596 = arith.andi %591, %c7_i32_253 : i32
      %597 = vector.broadcast %596 : i32 to vector<8x1xi32>
      %598 = arith.cmpi eq, %1, %597 : vector<8x1xi32>
      %cst_254 = arith.constant 0.000000e+00 : f32
      %599 = vector.shape_cast %598 : vector<8x1xi1> to vector<8x1xi1>
      %600 = vector.broadcast %599 : vector<8x1xi1> to vector<8x128xi1>
      %601 = vector.broadcast %cst_254 : f32 to vector<8x128xf32>
      %602 = arith.select %600, %595, %601 : vector<8x128xi1>, vector<8x128xf32>
      %cst_255 = arith.constant dense<0.000000e+00> : vector<128xf32>
      %603 = vector.multi_reduction <add>, %602, %cst_255 [0] : vector<8x128xf32> to vector<128xf32>
      %604 = vector.shape_cast %603 : vector<128xf32> to vector<1x128xf32>
      %605 = arith.addf %588, %604 : vector<1x128xf32>
      %c2_i32_256 = arith.constant 2 : i32
      %606 = arith.addi %572, %c2_i32_256 : i32
      %607 = arith.index_cast %606 : i32 to index
      %608 = memref.load %arg1[%607] : memref<2048xi32, #tpu.memory_space<smem>>
      %c3_i32_257 = arith.constant 3 : i32
      %609 = arith.shrsi %608, %c3_i32_257 : i32
      %610 = arith.index_cast %609 : i32 to index
      %c0_258 = arith.constant 0 : index
      %c0_259 = arith.constant 0 : index
      %611 = vector.load %arg2[%610, %c0_258, %c0_259] : memref<64x8x128xf32, #tpu.memory_space<vmem>>, vector<1x8x128xf32>
      %612 = vector.shape_cast %611 : vector<1x8x128xf32> to vector<8x128xf32>
      %c7_i32_260 = arith.constant 7 : i32
      %613 = arith.andi %608, %c7_i32_260 : i32
      %614 = vector.broadcast %613 : i32 to vector<8x1xi32>
      %615 = arith.cmpi eq, %1, %614 : vector<8x1xi32>
      %cst_261 = arith.constant 0.000000e+00 : f32
      %616 = vector.shape_cast %615 : vector<8x1xi1> to vector<8x1xi1>
      %617 = vector.broadcast %616 : vector<8x1xi1> to vector<8x128xi1>
      %618 = vector.broadcast %cst_261 : f32 to vector<8x128xf32>
      %619 = arith.select %617, %612, %618 : vector<8x128xi1>, vector<8x128xf32>
      %cst_262 = arith.constant dense<0.000000e+00> : vector<128xf32>
      %620 = vector.multi_reduction <add>, %619, %cst_262 [0] : vector<8x128xf32> to vector<128xf32>
      %621 = vector.shape_cast %620 : vector<128xf32> to vector<1x128xf32>
      %622 = arith.addf %605, %621 : vector<1x128xf32>
      %c3_i32_263 = arith.constant 3 : i32
      %623 = arith.addi %572, %c3_i32_263 : i32
      %624 = arith.index_cast %623 : i32 to index
      %625 = memref.load %arg1[%624] : memref<2048xi32, #tpu.memory_space<smem>>
      %c3_i32_264 = arith.constant 3 : i32
      %626 = arith.shrsi %625, %c3_i32_264 : i32
      %627 = arith.index_cast %626 : i32 to index
      %c0_265 = arith.constant 0 : index
      %c0_266 = arith.constant 0 : index
      %628 = vector.load %arg2[%627, %c0_265, %c0_266] : memref<64x8x128xf32, #tpu.memory_space<vmem>>, vector<1x8x128xf32>
      %629 = vector.shape_cast %628 : vector<1x8x128xf32> to vector<8x128xf32>
      %c7_i32_267 = arith.constant 7 : i32
      %630 = arith.andi %625, %c7_i32_267 : i32
      %631 = vector.broadcast %630 : i32 to vector<8x1xi32>
      %632 = arith.cmpi eq, %1, %631 : vector<8x1xi32>
      %cst_268 = arith.constant 0.000000e+00 : f32
      %633 = vector.shape_cast %632 : vector<8x1xi1> to vector<8x1xi1>
      %634 = vector.broadcast %633 : vector<8x1xi1> to vector<8x128xi1>
      %635 = vector.broadcast %cst_268 : f32 to vector<8x128xf32>
      %636 = arith.select %634, %629, %635 : vector<8x128xi1>, vector<8x128xf32>
      %cst_269 = arith.constant dense<0.000000e+00> : vector<128xf32>
      %637 = vector.multi_reduction <add>, %636, %cst_269 [0] : vector<8x128xf32> to vector<128xf32>
      %638 = vector.shape_cast %637 : vector<128xf32> to vector<1x128xf32>
      %639 = arith.addf %622, %638 : vector<1x128xf32>
      %c4_i32_270 = arith.constant 4 : i32
      %640 = arith.addi %572, %c4_i32_270 : i32
      %641 = arith.index_cast %640 : i32 to index
      %642 = memref.load %arg1[%641] : memref<2048xi32, #tpu.memory_space<smem>>
      %c3_i32_271 = arith.constant 3 : i32
      %643 = arith.shrsi %642, %c3_i32_271 : i32
      %644 = arith.index_cast %643 : i32 to index
      %c0_272 = arith.constant 0 : index
      %c0_273 = arith.constant 0 : index
      %645 = vector.load %arg2[%644, %c0_272, %c0_273] : memref<64x8x128xf32, #tpu.memory_space<vmem>>, vector<1x8x128xf32>
      %646 = vector.shape_cast %645 : vector<1x8x128xf32> to vector<8x128xf32>
      %c7_i32_274 = arith.constant 7 : i32
      %647 = arith.andi %642, %c7_i32_274 : i32
      %648 = vector.broadcast %647 : i32 to vector<8x1xi32>
      %649 = arith.cmpi eq, %1, %648 : vector<8x1xi32>
      %cst_275 = arith.constant 0.000000e+00 : f32
      %650 = vector.shape_cast %649 : vector<8x1xi1> to vector<8x1xi1>
      %651 = vector.broadcast %650 : vector<8x1xi1> to vector<8x128xi1>
      %652 = vector.broadcast %cst_275 : f32 to vector<8x128xf32>
      %653 = arith.select %651, %646, %652 : vector<8x128xi1>, vector<8x128xf32>
      %cst_276 = arith.constant dense<0.000000e+00> : vector<128xf32>
      %654 = vector.multi_reduction <add>, %653, %cst_276 [0] : vector<8x128xf32> to vector<128xf32>
      %655 = vector.shape_cast %654 : vector<128xf32> to vector<1x128xf32>
      %656 = arith.addf %639, %655 : vector<1x128xf32>
      %c5_i32_277 = arith.constant 5 : i32
      %657 = arith.addi %572, %c5_i32_277 : i32
      %658 = arith.index_cast %657 : i32 to index
      %659 = memref.load %arg1[%658] : memref<2048xi32, #tpu.memory_space<smem>>
      %c3_i32_278 = arith.constant 3 : i32
      %660 = arith.shrsi %659, %c3_i32_278 : i32
      %661 = arith.index_cast %660 : i32 to index
      %c0_279 = arith.constant 0 : index
      %c0_280 = arith.constant 0 : index
      %662 = vector.load %arg2[%661, %c0_279, %c0_280] : memref<64x8x128xf32, #tpu.memory_space<vmem>>, vector<1x8x128xf32>
      %663 = vector.shape_cast %662 : vector<1x8x128xf32> to vector<8x128xf32>
      %c7_i32_281 = arith.constant 7 : i32
      %664 = arith.andi %659, %c7_i32_281 : i32
      %665 = vector.broadcast %664 : i32 to vector<8x1xi32>
      %666 = arith.cmpi eq, %1, %665 : vector<8x1xi32>
      %cst_282 = arith.constant 0.000000e+00 : f32
      %667 = vector.shape_cast %666 : vector<8x1xi1> to vector<8x1xi1>
      %668 = vector.broadcast %667 : vector<8x1xi1> to vector<8x128xi1>
      %669 = vector.broadcast %cst_282 : f32 to vector<8x128xf32>
      %670 = arith.select %668, %663, %669 : vector<8x128xi1>, vector<8x128xf32>
      %cst_283 = arith.constant dense<0.000000e+00> : vector<128xf32>
      %671 = vector.multi_reduction <add>, %670, %cst_283 [0] : vector<8x128xf32> to vector<128xf32>
      %672 = vector.shape_cast %671 : vector<128xf32> to vector<1x128xf32>
      %673 = arith.addf %656, %672 : vector<1x128xf32>
      %c6_i32_284 = arith.constant 6 : i32
      %674 = arith.addi %572, %c6_i32_284 : i32
      %675 = arith.index_cast %674 : i32 to index
      %676 = memref.load %arg1[%675] : memref<2048xi32, #tpu.memory_space<smem>>
      %c3_i32_285 = arith.constant 3 : i32
      %677 = arith.shrsi %676, %c3_i32_285 : i32
      %678 = arith.index_cast %677 : i32 to index
      %c0_286 = arith.constant 0 : index
      %c0_287 = arith.constant 0 : index
      %679 = vector.load %arg2[%678, %c0_286, %c0_287] : memref<64x8x128xf32, #tpu.memory_space<vmem>>, vector<1x8x128xf32>
      %680 = vector.shape_cast %679 : vector<1x8x128xf32> to vector<8x128xf32>
      %c7_i32_288 = arith.constant 7 : i32
      %681 = arith.andi %676, %c7_i32_288 : i32
      %682 = vector.broadcast %681 : i32 to vector<8x1xi32>
      %683 = arith.cmpi eq, %1, %682 : vector<8x1xi32>
      %cst_289 = arith.constant 0.000000e+00 : f32
      %684 = vector.shape_cast %683 : vector<8x1xi1> to vector<8x1xi1>
      %685 = vector.broadcast %684 : vector<8x1xi1> to vector<8x128xi1>
      %686 = vector.broadcast %cst_289 : f32 to vector<8x128xf32>
      %687 = arith.select %685, %680, %686 : vector<8x128xi1>, vector<8x128xf32>
      %cst_290 = arith.constant dense<0.000000e+00> : vector<128xf32>
      %688 = vector.multi_reduction <add>, %687, %cst_290 [0] : vector<8x128xf32> to vector<128xf32>
      %689 = vector.shape_cast %688 : vector<128xf32> to vector<1x128xf32>
      %690 = arith.addf %673, %689 : vector<1x128xf32>
      %c7_i32_291 = arith.constant 7 : i32
      %691 = arith.addi %572, %c7_i32_291 : i32
      %692 = arith.index_cast %691 : i32 to index
      %693 = memref.load %arg1[%692] : memref<2048xi32, #tpu.memory_space<smem>>
      %c3_i32_292 = arith.constant 3 : i32
      %694 = arith.shrsi %693, %c3_i32_292 : i32
      %695 = arith.index_cast %694 : i32 to index
      %c0_293 = arith.constant 0 : index
      %c0_294 = arith.constant 0 : index
      %696 = vector.load %arg2[%695, %c0_293, %c0_294] : memref<64x8x128xf32, #tpu.memory_space<vmem>>, vector<1x8x128xf32>
      %697 = vector.shape_cast %696 : vector<1x8x128xf32> to vector<8x128xf32>
      %c7_i32_295 = arith.constant 7 : i32
      %698 = arith.andi %693, %c7_i32_295 : i32
      %699 = vector.broadcast %698 : i32 to vector<8x1xi32>
      %700 = arith.cmpi eq, %1, %699 : vector<8x1xi32>
      %cst_296 = arith.constant 0.000000e+00 : f32
      %701 = vector.shape_cast %700 : vector<8x1xi1> to vector<8x1xi1>
      %702 = vector.broadcast %701 : vector<8x1xi1> to vector<8x128xi1>
      %703 = vector.broadcast %cst_296 : f32 to vector<8x128xf32>
      %704 = arith.select %702, %697, %703 : vector<8x128xi1>, vector<8x128xf32>
      %cst_297 = arith.constant dense<0.000000e+00> : vector<128xf32>
      %705 = vector.multi_reduction <add>, %704, %cst_297 [0] : vector<8x128xf32> to vector<128xf32>
      %706 = vector.shape_cast %705 : vector<128xf32> to vector<1x128xf32>
      %707 = arith.addf %690, %706 : vector<1x128xf32>
      %c8_i32_298 = arith.constant 8 : i32
      %708 = arith.muli %12, %c8_i32_298 : i32
      %c5_i32_299 = arith.constant 5 : i32
      %709 = arith.addi %708, %c5_i32_299 : i32
      %c8_i32_300 = arith.constant 8 : i32
      %710 = arith.muli %709, %c8_i32_300 : i32
      %711 = arith.addi %0, %710 : i32
      %c0_i32_301 = arith.constant 0 : i32
      %712 = arith.addi %711, %c0_i32_301 : i32
      %713 = arith.index_cast %712 : i32 to index
      %714 = memref.load %arg1[%713] : memref<2048xi32, #tpu.memory_space<smem>>
      %c3_i32_302 = arith.constant 3 : i32
      %715 = arith.shrsi %714, %c3_i32_302 : i32
      %716 = arith.index_cast %715 : i32 to index
      %c0_303 = arith.constant 0 : index
      %c0_304 = arith.constant 0 : index
      %717 = vector.load %arg2[%716, %c0_303, %c0_304] : memref<64x8x128xf32, #tpu.memory_space<vmem>>, vector<1x8x128xf32>
      %718 = vector.shape_cast %717 : vector<1x8x128xf32> to vector<8x128xf32>
      %c7_i32_305 = arith.constant 7 : i32
      %719 = arith.andi %714, %c7_i32_305 : i32
      %720 = vector.broadcast %719 : i32 to vector<8x1xi32>
      %721 = arith.cmpi eq, %1, %720 : vector<8x1xi32>
      %cst_306 = arith.constant 0.000000e+00 : f32
      %722 = vector.shape_cast %721 : vector<8x1xi1> to vector<8x1xi1>
      %723 = vector.broadcast %722 : vector<8x1xi1> to vector<8x128xi1>
      %724 = vector.broadcast %cst_306 : f32 to vector<8x128xf32>
      %725 = arith.select %723, %718, %724 : vector<8x128xi1>, vector<8x128xf32>
      %cst_307 = arith.constant dense<0.000000e+00> : vector<128xf32>
      %726 = vector.multi_reduction <add>, %725, %cst_307 [0] : vector<8x128xf32> to vector<128xf32>
      %727 = vector.shape_cast %726 : vector<128xf32> to vector<1x128xf32>
      %c1_i32_308 = arith.constant 1 : i32
      %728 = arith.addi %711, %c1_i32_308 : i32
      %729 = arith.index_cast %728 : i32 to index
      %730 = memref.load %arg1[%729] : memref<2048xi32, #tpu.memory_space<smem>>
      %c3_i32_309 = arith.constant 3 : i32
      %731 = arith.shrsi %730, %c3_i32_309 : i32
      %732 = arith.index_cast %731 : i32 to index
      %c0_310 = arith.constant 0 : index
      %c0_311 = arith.constant 0 : index
      %733 = vector.load %arg2[%732, %c0_310, %c0_311] : memref<64x8x128xf32, #tpu.memory_space<vmem>>, vector<1x8x128xf32>
      %734 = vector.shape_cast %733 : vector<1x8x128xf32> to vector<8x128xf32>
      %c7_i32_312 = arith.constant 7 : i32
      %735 = arith.andi %730, %c7_i32_312 : i32
      %736 = vector.broadcast %735 : i32 to vector<8x1xi32>
      %737 = arith.cmpi eq, %1, %736 : vector<8x1xi32>
      %cst_313 = arith.constant 0.000000e+00 : f32
      %738 = vector.shape_cast %737 : vector<8x1xi1> to vector<8x1xi1>
      %739 = vector.broadcast %738 : vector<8x1xi1> to vector<8x128xi1>
      %740 = vector.broadcast %cst_313 : f32 to vector<8x128xf32>
      %741 = arith.select %739, %734, %740 : vector<8x128xi1>, vector<8x128xf32>
      %cst_314 = arith.constant dense<0.000000e+00> : vector<128xf32>
      %742 = vector.multi_reduction <add>, %741, %cst_314 [0] : vector<8x128xf32> to vector<128xf32>
      %743 = vector.shape_cast %742 : vector<128xf32> to vector<1x128xf32>
      %744 = arith.addf %727, %743 : vector<1x128xf32>
      %c2_i32_315 = arith.constant 2 : i32
      %745 = arith.addi %711, %c2_i32_315 : i32
      %746 = arith.index_cast %745 : i32 to index
      %747 = memref.load %arg1[%746] : memref<2048xi32, #tpu.memory_space<smem>>
      %c3_i32_316 = arith.constant 3 : i32
      %748 = arith.shrsi %747, %c3_i32_316 : i32
      %749 = arith.index_cast %748 : i32 to index
      %c0_317 = arith.constant 0 : index
      %c0_318 = arith.constant 0 : index
      %750 = vector.load %arg2[%749, %c0_317, %c0_318] : memref<64x8x128xf32, #tpu.memory_space<vmem>>, vector<1x8x128xf32>
      %751 = vector.shape_cast %750 : vector<1x8x128xf32> to vector<8x128xf32>
      %c7_i32_319 = arith.constant 7 : i32
      %752 = arith.andi %747, %c7_i32_319 : i32
      %753 = vector.broadcast %752 : i32 to vector<8x1xi32>
      %754 = arith.cmpi eq, %1, %753 : vector<8x1xi32>
      %cst_320 = arith.constant 0.000000e+00 : f32
      %755 = vector.shape_cast %754 : vector<8x1xi1> to vector<8x1xi1>
      %756 = vector.broadcast %755 : vector<8x1xi1> to vector<8x128xi1>
      %757 = vector.broadcast %cst_320 : f32 to vector<8x128xf32>
      %758 = arith.select %756, %751, %757 : vector<8x128xi1>, vector<8x128xf32>
      %cst_321 = arith.constant dense<0.000000e+00> : vector<128xf32>
      %759 = vector.multi_reduction <add>, %758, %cst_321 [0] : vector<8x128xf32> to vector<128xf32>
      %760 = vector.shape_cast %759 : vector<128xf32> to vector<1x128xf32>
      %761 = arith.addf %744, %760 : vector<1x128xf32>
      %c3_i32_322 = arith.constant 3 : i32
      %762 = arith.addi %711, %c3_i32_322 : i32
      %763 = arith.index_cast %762 : i32 to index
      %764 = memref.load %arg1[%763] : memref<2048xi32, #tpu.memory_space<smem>>
      %c3_i32_323 = arith.constant 3 : i32
      %765 = arith.shrsi %764, %c3_i32_323 : i32
      %766 = arith.index_cast %765 : i32 to index
      %c0_324 = arith.constant 0 : index
      %c0_325 = arith.constant 0 : index
      %767 = vector.load %arg2[%766, %c0_324, %c0_325] : memref<64x8x128xf32, #tpu.memory_space<vmem>>, vector<1x8x128xf32>
      %768 = vector.shape_cast %767 : vector<1x8x128xf32> to vector<8x128xf32>
      %c7_i32_326 = arith.constant 7 : i32
      %769 = arith.andi %764, %c7_i32_326 : i32
      %770 = vector.broadcast %769 : i32 to vector<8x1xi32>
      %771 = arith.cmpi eq, %1, %770 : vector<8x1xi32>
      %cst_327 = arith.constant 0.000000e+00 : f32
      %772 = vector.shape_cast %771 : vector<8x1xi1> to vector<8x1xi1>
      %773 = vector.broadcast %772 : vector<8x1xi1> to vector<8x128xi1>
      %774 = vector.broadcast %cst_327 : f32 to vector<8x128xf32>
      %775 = arith.select %773, %768, %774 : vector<8x128xi1>, vector<8x128xf32>
      %cst_328 = arith.constant dense<0.000000e+00> : vector<128xf32>
      %776 = vector.multi_reduction <add>, %775, %cst_328 [0] : vector<8x128xf32> to vector<128xf32>
      %777 = vector.shape_cast %776 : vector<128xf32> to vector<1x128xf32>
      %778 = arith.addf %761, %777 : vector<1x128xf32>
      %c4_i32_329 = arith.constant 4 : i32
      %779 = arith.addi %711, %c4_i32_329 : i32
      %780 = arith.index_cast %779 : i32 to index
      %781 = memref.load %arg1[%780] : memref<2048xi32, #tpu.memory_space<smem>>
      %c3_i32_330 = arith.constant 3 : i32
      %782 = arith.shrsi %781, %c3_i32_330 : i32
      %783 = arith.index_cast %782 : i32 to index
      %c0_331 = arith.constant 0 : index
      %c0_332 = arith.constant 0 : index
      %784 = vector.load %arg2[%783, %c0_331, %c0_332] : memref<64x8x128xf32, #tpu.memory_space<vmem>>, vector<1x8x128xf32>
      %785 = vector.shape_cast %784 : vector<1x8x128xf32> to vector<8x128xf32>
      %c7_i32_333 = arith.constant 7 : i32
      %786 = arith.andi %781, %c7_i32_333 : i32
      %787 = vector.broadcast %786 : i32 to vector<8x1xi32>
      %788 = arith.cmpi eq, %1, %787 : vector<8x1xi32>
      %cst_334 = arith.constant 0.000000e+00 : f32
      %789 = vector.shape_cast %788 : vector<8x1xi1> to vector<8x1xi1>
      %790 = vector.broadcast %789 : vector<8x1xi1> to vector<8x128xi1>
      %791 = vector.broadcast %cst_334 : f32 to vector<8x128xf32>
      %792 = arith.select %790, %785, %791 : vector<8x128xi1>, vector<8x128xf32>
      %cst_335 = arith.constant dense<0.000000e+00> : vector<128xf32>
      %793 = vector.multi_reduction <add>, %792, %cst_335 [0] : vector<8x128xf32> to vector<128xf32>
      %794 = vector.shape_cast %793 : vector<128xf32> to vector<1x128xf32>
      %795 = arith.addf %778, %794 : vector<1x128xf32>
      %c5_i32_336 = arith.constant 5 : i32
      %796 = arith.addi %711, %c5_i32_336 : i32
      %797 = arith.index_cast %796 : i32 to index
      %798 = memref.load %arg1[%797] : memref<2048xi32, #tpu.memory_space<smem>>
      %c3_i32_337 = arith.constant 3 : i32
      %799 = arith.shrsi %798, %c3_i32_337 : i32
      %800 = arith.index_cast %799 : i32 to index
      %c0_338 = arith.constant 0 : index
      %c0_339 = arith.constant 0 : index
      %801 = vector.load %arg2[%800, %c0_338, %c0_339] : memref<64x8x128xf32, #tpu.memory_space<vmem>>, vector<1x8x128xf32>
      %802 = vector.shape_cast %801 : vector<1x8x128xf32> to vector<8x128xf32>
      %c7_i32_340 = arith.constant 7 : i32
      %803 = arith.andi %798, %c7_i32_340 : i32
      %804 = vector.broadcast %803 : i32 to vector<8x1xi32>
      %805 = arith.cmpi eq, %1, %804 : vector<8x1xi32>
      %cst_341 = arith.constant 0.000000e+00 : f32
      %806 = vector.shape_cast %805 : vector<8x1xi1> to vector<8x1xi1>
      %807 = vector.broadcast %806 : vector<8x1xi1> to vector<8x128xi1>
      %808 = vector.broadcast %cst_341 : f32 to vector<8x128xf32>
      %809 = arith.select %807, %802, %808 : vector<8x128xi1>, vector<8x128xf32>
      %cst_342 = arith.constant dense<0.000000e+00> : vector<128xf32>
      %810 = vector.multi_reduction <add>, %809, %cst_342 [0] : vector<8x128xf32> to vector<128xf32>
      %811 = vector.shape_cast %810 : vector<128xf32> to vector<1x128xf32>
      %812 = arith.addf %795, %811 : vector<1x128xf32>
      %c6_i32_343 = arith.constant 6 : i32
      %813 = arith.addi %711, %c6_i32_343 : i32
      %814 = arith.index_cast %813 : i32 to index
      %815 = memref.load %arg1[%814] : memref<2048xi32, #tpu.memory_space<smem>>
      %c3_i32_344 = arith.constant 3 : i32
      %816 = arith.shrsi %815, %c3_i32_344 : i32
      %817 = arith.index_cast %816 : i32 to index
      %c0_345 = arith.constant 0 : index
      %c0_346 = arith.constant 0 : index
      %818 = vector.load %arg2[%817, %c0_345, %c0_346] : memref<64x8x128xf32, #tpu.memory_space<vmem>>, vector<1x8x128xf32>
      %819 = vector.shape_cast %818 : vector<1x8x128xf32> to vector<8x128xf32>
      %c7_i32_347 = arith.constant 7 : i32
      %820 = arith.andi %815, %c7_i32_347 : i32
      %821 = vector.broadcast %820 : i32 to vector<8x1xi32>
      %822 = arith.cmpi eq, %1, %821 : vector<8x1xi32>
      %cst_348 = arith.constant 0.000000e+00 : f32
      %823 = vector.shape_cast %822 : vector<8x1xi1> to vector<8x1xi1>
      %824 = vector.broadcast %823 : vector<8x1xi1> to vector<8x128xi1>
      %825 = vector.broadcast %cst_348 : f32 to vector<8x128xf32>
      %826 = arith.select %824, %819, %825 : vector<8x128xi1>, vector<8x128xf32>
      %cst_349 = arith.constant dense<0.000000e+00> : vector<128xf32>
      %827 = vector.multi_reduction <add>, %826, %cst_349 [0] : vector<8x128xf32> to vector<128xf32>
      %828 = vector.shape_cast %827 : vector<128xf32> to vector<1x128xf32>
      %829 = arith.addf %812, %828 : vector<1x128xf32>
      %c7_i32_350 = arith.constant 7 : i32
      %830 = arith.addi %711, %c7_i32_350 : i32
      %831 = arith.index_cast %830 : i32 to index
      %832 = memref.load %arg1[%831] : memref<2048xi32, #tpu.memory_space<smem>>
      %c3_i32_351 = arith.constant 3 : i32
      %833 = arith.shrsi %832, %c3_i32_351 : i32
      %834 = arith.index_cast %833 : i32 to index
      %c0_352 = arith.constant 0 : index
      %c0_353 = arith.constant 0 : index
      %835 = vector.load %arg2[%834, %c0_352, %c0_353] : memref<64x8x128xf32, #tpu.memory_space<vmem>>, vector<1x8x128xf32>
      %836 = vector.shape_cast %835 : vector<1x8x128xf32> to vector<8x128xf32>
      %c7_i32_354 = arith.constant 7 : i32
      %837 = arith.andi %832, %c7_i32_354 : i32
      %838 = vector.broadcast %837 : i32 to vector<8x1xi32>
      %839 = arith.cmpi eq, %1, %838 : vector<8x1xi32>
      %cst_355 = arith.constant 0.000000e+00 : f32
      %840 = vector.shape_cast %839 : vector<8x1xi1> to vector<8x1xi1>
      %841 = vector.broadcast %840 : vector<8x1xi1> to vector<8x128xi1>
      %842 = vector.broadcast %cst_355 : f32 to vector<8x128xf32>
      %843 = arith.select %841, %836, %842 : vector<8x128xi1>, vector<8x128xf32>
      %cst_356 = arith.constant dense<0.000000e+00> : vector<128xf32>
      %844 = vector.multi_reduction <add>, %843, %cst_356 [0] : vector<8x128xf32> to vector<128xf32>
      %845 = vector.shape_cast %844 : vector<128xf32> to vector<1x128xf32>
      %846 = arith.addf %829, %845 : vector<1x128xf32>
      %c8_i32_357 = arith.constant 8 : i32
      %847 = arith.muli %12, %c8_i32_357 : i32
      %c6_i32_358 = arith.constant 6 : i32
      %848 = arith.addi %847, %c6_i32_358 : i32
      %c8_i32_359 = arith.constant 8 : i32
      %849 = arith.muli %848, %c8_i32_359 : i32
      %850 = arith.addi %0, %849 : i32
      %c0_i32_360 = arith.constant 0 : i32
      %851 = arith.addi %850, %c0_i32_360 : i32
      %852 = arith.index_cast %851 : i32 to index
      %853 = memref.load %arg1[%852] : memref<2048xi32, #tpu.memory_space<smem>>
      %c3_i32_361 = arith.constant 3 : i32
      %854 = arith.shrsi %853, %c3_i32_361 : i32
      %855 = arith.index_cast %854 : i32 to index
      %c0_362 = arith.constant 0 : index
      %c0_363 = arith.constant 0 : index
      %856 = vector.load %arg2[%855, %c0_362, %c0_363] : memref<64x8x128xf32, #tpu.memory_space<vmem>>, vector<1x8x128xf32>
      %857 = vector.shape_cast %856 : vector<1x8x128xf32> to vector<8x128xf32>
      %c7_i32_364 = arith.constant 7 : i32
      %858 = arith.andi %853, %c7_i32_364 : i32
      %859 = vector.broadcast %858 : i32 to vector<8x1xi32>
      %860 = arith.cmpi eq, %1, %859 : vector<8x1xi32>
      %cst_365 = arith.constant 0.000000e+00 : f32
      %861 = vector.shape_cast %860 : vector<8x1xi1> to vector<8x1xi1>
      %862 = vector.broadcast %861 : vector<8x1xi1> to vector<8x128xi1>
      %863 = vector.broadcast %cst_365 : f32 to vector<8x128xf32>
      %864 = arith.select %862, %857, %863 : vector<8x128xi1>, vector<8x128xf32>
      %cst_366 = arith.constant dense<0.000000e+00> : vector<128xf32>
      %865 = vector.multi_reduction <add>, %864, %cst_366 [0] : vector<8x128xf32> to vector<128xf32>
      %866 = vector.shape_cast %865 : vector<128xf32> to vector<1x128xf32>
      %c1_i32_367 = arith.constant 1 : i32
      %867 = arith.addi %850, %c1_i32_367 : i32
      %868 = arith.index_cast %867 : i32 to index
      %869 = memref.load %arg1[%868] : memref<2048xi32, #tpu.memory_space<smem>>
      %c3_i32_368 = arith.constant 3 : i32
      %870 = arith.shrsi %869, %c3_i32_368 : i32
      %871 = arith.index_cast %870 : i32 to index
      %c0_369 = arith.constant 0 : index
      %c0_370 = arith.constant 0 : index
      %872 = vector.load %arg2[%871, %c0_369, %c0_370] : memref<64x8x128xf32, #tpu.memory_space<vmem>>, vector<1x8x128xf32>
      %873 = vector.shape_cast %872 : vector<1x8x128xf32> to vector<8x128xf32>
      %c7_i32_371 = arith.constant 7 : i32
      %874 = arith.andi %869, %c7_i32_371 : i32
      %875 = vector.broadcast %874 : i32 to vector<8x1xi32>
      %876 = arith.cmpi eq, %1, %875 : vector<8x1xi32>
      %cst_372 = arith.constant 0.000000e+00 : f32
      %877 = vector.shape_cast %876 : vector<8x1xi1> to vector<8x1xi1>
      %878 = vector.broadcast %877 : vector<8x1xi1> to vector<8x128xi1>
      %879 = vector.broadcast %cst_372 : f32 to vector<8x128xf32>
      %880 = arith.select %878, %873, %879 : vector<8x128xi1>, vector<8x128xf32>
      %cst_373 = arith.constant dense<0.000000e+00> : vector<128xf32>
      %881 = vector.multi_reduction <add>, %880, %cst_373 [0] : vector<8x128xf32> to vector<128xf32>
      %882 = vector.shape_cast %881 : vector<128xf32> to vector<1x128xf32>
      %883 = arith.addf %866, %882 : vector<1x128xf32>
      %c2_i32_374 = arith.constant 2 : i32
      %884 = arith.addi %850, %c2_i32_374 : i32
      %885 = arith.index_cast %884 : i32 to index
      %886 = memref.load %arg1[%885] : memref<2048xi32, #tpu.memory_space<smem>>
      %c3_i32_375 = arith.constant 3 : i32
      %887 = arith.shrsi %886, %c3_i32_375 : i32
      %888 = arith.index_cast %887 : i32 to index
      %c0_376 = arith.constant 0 : index
      %c0_377 = arith.constant 0 : index
      %889 = vector.load %arg2[%888, %c0_376, %c0_377] : memref<64x8x128xf32, #tpu.memory_space<vmem>>, vector<1x8x128xf32>
      %890 = vector.shape_cast %889 : vector<1x8x128xf32> to vector<8x128xf32>
      %c7_i32_378 = arith.constant 7 : i32
      %891 = arith.andi %886, %c7_i32_378 : i32
      %892 = vector.broadcast %891 : i32 to vector<8x1xi32>
      %893 = arith.cmpi eq, %1, %892 : vector<8x1xi32>
      %cst_379 = arith.constant 0.000000e+00 : f32
      %894 = vector.shape_cast %893 : vector<8x1xi1> to vector<8x1xi1>
      %895 = vector.broadcast %894 : vector<8x1xi1> to vector<8x128xi1>
      %896 = vector.broadcast %cst_379 : f32 to vector<8x128xf32>
      %897 = arith.select %895, %890, %896 : vector<8x128xi1>, vector<8x128xf32>
      %cst_380 = arith.constant dense<0.000000e+00> : vector<128xf32>
      %898 = vector.multi_reduction <add>, %897, %cst_380 [0] : vector<8x128xf32> to vector<128xf32>
      %899 = vector.shape_cast %898 : vector<128xf32> to vector<1x128xf32>
      %900 = arith.addf %883, %899 : vector<1x128xf32>
      %c3_i32_381 = arith.constant 3 : i32
      %901 = arith.addi %850, %c3_i32_381 : i32
      %902 = arith.index_cast %901 : i32 to index
      %903 = memref.load %arg1[%902] : memref<2048xi32, #tpu.memory_space<smem>>
      %c3_i32_382 = arith.constant 3 : i32
      %904 = arith.shrsi %903, %c3_i32_382 : i32
      %905 = arith.index_cast %904 : i32 to index
      %c0_383 = arith.constant 0 : index
      %c0_384 = arith.constant 0 : index
      %906 = vector.load %arg2[%905, %c0_383, %c0_384] : memref<64x8x128xf32, #tpu.memory_space<vmem>>, vector<1x8x128xf32>
      %907 = vector.shape_cast %906 : vector<1x8x128xf32> to vector<8x128xf32>
      %c7_i32_385 = arith.constant 7 : i32
      %908 = arith.andi %903, %c7_i32_385 : i32
      %909 = vector.broadcast %908 : i32 to vector<8x1xi32>
      %910 = arith.cmpi eq, %1, %909 : vector<8x1xi32>
      %cst_386 = arith.constant 0.000000e+00 : f32
      %911 = vector.shape_cast %910 : vector<8x1xi1> to vector<8x1xi1>
      %912 = vector.broadcast %911 : vector<8x1xi1> to vector<8x128xi1>
      %913 = vector.broadcast %cst_386 : f32 to vector<8x128xf32>
      %914 = arith.select %912, %907, %913 : vector<8x128xi1>, vector<8x128xf32>
      %cst_387 = arith.constant dense<0.000000e+00> : vector<128xf32>
      %915 = vector.multi_reduction <add>, %914, %cst_387 [0] : vector<8x128xf32> to vector<128xf32>
      %916 = vector.shape_cast %915 : vector<128xf32> to vector<1x128xf32>
      %917 = arith.addf %900, %916 : vector<1x128xf32>
      %c4_i32_388 = arith.constant 4 : i32
      %918 = arith.addi %850, %c4_i32_388 : i32
      %919 = arith.index_cast %918 : i32 to index
      %920 = memref.load %arg1[%919] : memref<2048xi32, #tpu.memory_space<smem>>
      %c3_i32_389 = arith.constant 3 : i32
      %921 = arith.shrsi %920, %c3_i32_389 : i32
      %922 = arith.index_cast %921 : i32 to index
      %c0_390 = arith.constant 0 : index
      %c0_391 = arith.constant 0 : index
      %923 = vector.load %arg2[%922, %c0_390, %c0_391] : memref<64x8x128xf32, #tpu.memory_space<vmem>>, vector<1x8x128xf32>
      %924 = vector.shape_cast %923 : vector<1x8x128xf32> to vector<8x128xf32>
      %c7_i32_392 = arith.constant 7 : i32
      %925 = arith.andi %920, %c7_i32_392 : i32
      %926 = vector.broadcast %925 : i32 to vector<8x1xi32>
      %927 = arith.cmpi eq, %1, %926 : vector<8x1xi32>
      %cst_393 = arith.constant 0.000000e+00 : f32
      %928 = vector.shape_cast %927 : vector<8x1xi1> to vector<8x1xi1>
      %929 = vector.broadcast %928 : vector<8x1xi1> to vector<8x128xi1>
      %930 = vector.broadcast %cst_393 : f32 to vector<8x128xf32>
      %931 = arith.select %929, %924, %930 : vector<8x128xi1>, vector<8x128xf32>
      %cst_394 = arith.constant dense<0.000000e+00> : vector<128xf32>
      %932 = vector.multi_reduction <add>, %931, %cst_394 [0] : vector<8x128xf32> to vector<128xf32>
      %933 = vector.shape_cast %932 : vector<128xf32> to vector<1x128xf32>
      %934 = arith.addf %917, %933 : vector<1x128xf32>
      %c5_i32_395 = arith.constant 5 : i32
      %935 = arith.addi %850, %c5_i32_395 : i32
      %936 = arith.index_cast %935 : i32 to index
      %937 = memref.load %arg1[%936] : memref<2048xi32, #tpu.memory_space<smem>>
      %c3_i32_396 = arith.constant 3 : i32
      %938 = arith.shrsi %937, %c3_i32_396 : i32
      %939 = arith.index_cast %938 : i32 to index
      %c0_397 = arith.constant 0 : index
      %c0_398 = arith.constant 0 : index
      %940 = vector.load %arg2[%939, %c0_397, %c0_398] : memref<64x8x128xf32, #tpu.memory_space<vmem>>, vector<1x8x128xf32>
      %941 = vector.shape_cast %940 : vector<1x8x128xf32> to vector<8x128xf32>
      %c7_i32_399 = arith.constant 7 : i32
      %942 = arith.andi %937, %c7_i32_399 : i32
      %943 = vector.broadcast %942 : i32 to vector<8x1xi32>
      %944 = arith.cmpi eq, %1, %943 : vector<8x1xi32>
      %cst_400 = arith.constant 0.000000e+00 : f32
      %945 = vector.shape_cast %944 : vector<8x1xi1> to vector<8x1xi1>
      %946 = vector.broadcast %945 : vector<8x1xi1> to vector<8x128xi1>
      %947 = vector.broadcast %cst_400 : f32 to vector<8x128xf32>
      %948 = arith.select %946, %941, %947 : vector<8x128xi1>, vector<8x128xf32>
      %cst_401 = arith.constant dense<0.000000e+00> : vector<128xf32>
      %949 = vector.multi_reduction <add>, %948, %cst_401 [0] : vector<8x128xf32> to vector<128xf32>
      %950 = vector.shape_cast %949 : vector<128xf32> to vector<1x128xf32>
      %951 = arith.addf %934, %950 : vector<1x128xf32>
      %c6_i32_402 = arith.constant 6 : i32
      %952 = arith.addi %850, %c6_i32_402 : i32
      %953 = arith.index_cast %952 : i32 to index
      %954 = memref.load %arg1[%953] : memref<2048xi32, #tpu.memory_space<smem>>
      %c3_i32_403 = arith.constant 3 : i32
      %955 = arith.shrsi %954, %c3_i32_403 : i32
      %956 = arith.index_cast %955 : i32 to index
      %c0_404 = arith.constant 0 : index
      %c0_405 = arith.constant 0 : index
      %957 = vector.load %arg2[%956, %c0_404, %c0_405] : memref<64x8x128xf32, #tpu.memory_space<vmem>>, vector<1x8x128xf32>
      %958 = vector.shape_cast %957 : vector<1x8x128xf32> to vector<8x128xf32>
      %c7_i32_406 = arith.constant 7 : i32
      %959 = arith.andi %954, %c7_i32_406 : i32
      %960 = vector.broadcast %959 : i32 to vector<8x1xi32>
      %961 = arith.cmpi eq, %1, %960 : vector<8x1xi32>
      %cst_407 = arith.constant 0.000000e+00 : f32
      %962 = vector.shape_cast %961 : vector<8x1xi1> to vector<8x1xi1>
      %963 = vector.broadcast %962 : vector<8x1xi1> to vector<8x128xi1>
      %964 = vector.broadcast %cst_407 : f32 to vector<8x128xf32>
      %965 = arith.select %963, %958, %964 : vector<8x128xi1>, vector<8x128xf32>
      %cst_408 = arith.constant dense<0.000000e+00> : vector<128xf32>
      %966 = vector.multi_reduction <add>, %965, %cst_408 [0] : vector<8x128xf32> to vector<128xf32>
      %967 = vector.shape_cast %966 : vector<128xf32> to vector<1x128xf32>
      %968 = arith.addf %951, %967 : vector<1x128xf32>
      %c7_i32_409 = arith.constant 7 : i32
      %969 = arith.addi %850, %c7_i32_409 : i32
      %970 = arith.index_cast %969 : i32 to index
      %971 = memref.load %arg1[%970] : memref<2048xi32, #tpu.memory_space<smem>>
      %c3_i32_410 = arith.constant 3 : i32
      %972 = arith.shrsi %971, %c3_i32_410 : i32
      %973 = arith.index_cast %972 : i32 to index
      %c0_411 = arith.constant 0 : index
      %c0_412 = arith.constant 0 : index
      %974 = vector.load %arg2[%973, %c0_411, %c0_412] : memref<64x8x128xf32, #tpu.memory_space<vmem>>, vector<1x8x128xf32>
      %975 = vector.shape_cast %974 : vector<1x8x128xf32> to vector<8x128xf32>
      %c7_i32_413 = arith.constant 7 : i32
      %976 = arith.andi %971, %c7_i32_413 : i32
      %977 = vector.broadcast %976 : i32 to vector<8x1xi32>
      %978 = arith.cmpi eq, %1, %977 : vector<8x1xi32>
      %cst_414 = arith.constant 0.000000e+00 : f32
      %979 = vector.shape_cast %978 : vector<8x1xi1> to vector<8x1xi1>
      %980 = vector.broadcast %979 : vector<8x1xi1> to vector<8x128xi1>
      %981 = vector.broadcast %cst_414 : f32 to vector<8x128xf32>
      %982 = arith.select %980, %975, %981 : vector<8x128xi1>, vector<8x128xf32>
      %cst_415 = arith.constant dense<0.000000e+00> : vector<128xf32>
      %983 = vector.multi_reduction <add>, %982, %cst_415 [0] : vector<8x128xf32> to vector<128xf32>
      %984 = vector.shape_cast %983 : vector<128xf32> to vector<1x128xf32>
      %985 = arith.addf %968, %984 : vector<1x128xf32>
      %c8_i32_416 = arith.constant 8 : i32
      %986 = arith.muli %12, %c8_i32_416 : i32
      %c7_i32_417 = arith.constant 7 : i32
      %987 = arith.addi %986, %c7_i32_417 : i32
      %c8_i32_418 = arith.constant 8 : i32
      %988 = arith.muli %987, %c8_i32_418 : i32
      %989 = arith.addi %0, %988 : i32
      %c0_i32_419 = arith.constant 0 : i32
      %990 = arith.addi %989, %c0_i32_419 : i32
      %991 = arith.index_cast %990 : i32 to index
      %992 = memref.load %arg1[%991] : memref<2048xi32, #tpu.memory_space<smem>>
      %c3_i32_420 = arith.constant 3 : i32
      %993 = arith.shrsi %992, %c3_i32_420 : i32
      %994 = arith.index_cast %993 : i32 to index
      %c0_421 = arith.constant 0 : index
      %c0_422 = arith.constant 0 : index
      %995 = vector.load %arg2[%994, %c0_421, %c0_422] : memref<64x8x128xf32, #tpu.memory_space<vmem>>, vector<1x8x128xf32>
      %996 = vector.shape_cast %995 : vector<1x8x128xf32> to vector<8x128xf32>
      %c7_i32_423 = arith.constant 7 : i32
      %997 = arith.andi %992, %c7_i32_423 : i32
      %998 = vector.broadcast %997 : i32 to vector<8x1xi32>
      %999 = arith.cmpi eq, %1, %998 : vector<8x1xi32>
      %cst_424 = arith.constant 0.000000e+00 : f32
      %1000 = vector.shape_cast %999 : vector<8x1xi1> to vector<8x1xi1>
      %1001 = vector.broadcast %1000 : vector<8x1xi1> to vector<8x128xi1>
      %1002 = vector.broadcast %cst_424 : f32 to vector<8x128xf32>
      %1003 = arith.select %1001, %996, %1002 : vector<8x128xi1>, vector<8x128xf32>
      %cst_425 = arith.constant dense<0.000000e+00> : vector<128xf32>
      %1004 = vector.multi_reduction <add>, %1003, %cst_425 [0] : vector<8x128xf32> to vector<128xf32>
      %1005 = vector.shape_cast %1004 : vector<128xf32> to vector<1x128xf32>
      %c1_i32_426 = arith.constant 1 : i32
      %1006 = arith.addi %989, %c1_i32_426 : i32
      %1007 = arith.index_cast %1006 : i32 to index
      %1008 = memref.load %arg1[%1007] : memref<2048xi32, #tpu.memory_space<smem>>
      %c3_i32_427 = arith.constant 3 : i32
      %1009 = arith.shrsi %1008, %c3_i32_427 : i32
      %1010 = arith.index_cast %1009 : i32 to index
      %c0_428 = arith.constant 0 : index
      %c0_429 = arith.constant 0 : index
      %1011 = vector.load %arg2[%1010, %c0_428, %c0_429] : memref<64x8x128xf32, #tpu.memory_space<vmem>>, vector<1x8x128xf32>
      %1012 = vector.shape_cast %1011 : vector<1x8x128xf32> to vector<8x128xf32>
      %c7_i32_430 = arith.constant 7 : i32
      %1013 = arith.andi %1008, %c7_i32_430 : i32
      %1014 = vector.broadcast %1013 : i32 to vector<8x1xi32>
      %1015 = arith.cmpi eq, %1, %1014 : vector<8x1xi32>
      %cst_431 = arith.constant 0.000000e+00 : f32
      %1016 = vector.shape_cast %1015 : vector<8x1xi1> to vector<8x1xi1>
      %1017 = vector.broadcast %1016 : vector<8x1xi1> to vector<8x128xi1>
      %1018 = vector.broadcast %cst_431 : f32 to vector<8x128xf32>
      %1019 = arith.select %1017, %1012, %1018 : vector<8x128xi1>, vector<8x128xf32>
      %cst_432 = arith.constant dense<0.000000e+00> : vector<128xf32>
      %1020 = vector.multi_reduction <add>, %1019, %cst_432 [0] : vector<8x128xf32> to vector<128xf32>
      %1021 = vector.shape_cast %1020 : vector<128xf32> to vector<1x128xf32>
      %1022 = arith.addf %1005, %1021 : vector<1x128xf32>
      %c2_i32_433 = arith.constant 2 : i32
      %1023 = arith.addi %989, %c2_i32_433 : i32
      %1024 = arith.index_cast %1023 : i32 to index
      %1025 = memref.load %arg1[%1024] : memref<2048xi32, #tpu.memory_space<smem>>
      %c3_i32_434 = arith.constant 3 : i32
      %1026 = arith.shrsi %1025, %c3_i32_434 : i32
      %1027 = arith.index_cast %1026 : i32 to index
      %c0_435 = arith.constant 0 : index
      %c0_436 = arith.constant 0 : index
      %1028 = vector.load %arg2[%1027, %c0_435, %c0_436] : memref<64x8x128xf32, #tpu.memory_space<vmem>>, vector<1x8x128xf32>
      %1029 = vector.shape_cast %1028 : vector<1x8x128xf32> to vector<8x128xf32>
      %c7_i32_437 = arith.constant 7 : i32
      %1030 = arith.andi %1025, %c7_i32_437 : i32
      %1031 = vector.broadcast %1030 : i32 to vector<8x1xi32>
      %1032 = arith.cmpi eq, %1, %1031 : vector<8x1xi32>
      %cst_438 = arith.constant 0.000000e+00 : f32
      %1033 = vector.shape_cast %1032 : vector<8x1xi1> to vector<8x1xi1>
      %1034 = vector.broadcast %1033 : vector<8x1xi1> to vector<8x128xi1>
      %1035 = vector.broadcast %cst_438 : f32 to vector<8x128xf32>
      %1036 = arith.select %1034, %1029, %1035 : vector<8x128xi1>, vector<8x128xf32>
      %cst_439 = arith.constant dense<0.000000e+00> : vector<128xf32>
      %1037 = vector.multi_reduction <add>, %1036, %cst_439 [0] : vector<8x128xf32> to vector<128xf32>
      %1038 = vector.shape_cast %1037 : vector<128xf32> to vector<1x128xf32>
      %1039 = arith.addf %1022, %1038 : vector<1x128xf32>
      %c3_i32_440 = arith.constant 3 : i32
      %1040 = arith.addi %989, %c3_i32_440 : i32
      %1041 = arith.index_cast %1040 : i32 to index
      %1042 = memref.load %arg1[%1041] : memref<2048xi32, #tpu.memory_space<smem>>
      %c3_i32_441 = arith.constant 3 : i32
      %1043 = arith.shrsi %1042, %c3_i32_441 : i32
      %1044 = arith.index_cast %1043 : i32 to index
      %c0_442 = arith.constant 0 : index
      %c0_443 = arith.constant 0 : index
      %1045 = vector.load %arg2[%1044, %c0_442, %c0_443] : memref<64x8x128xf32, #tpu.memory_space<vmem>>, vector<1x8x128xf32>
      %1046 = vector.shape_cast %1045 : vector<1x8x128xf32> to vector<8x128xf32>
      %c7_i32_444 = arith.constant 7 : i32
      %1047 = arith.andi %1042, %c7_i32_444 : i32
      %1048 = vector.broadcast %1047 : i32 to vector<8x1xi32>
      %1049 = arith.cmpi eq, %1, %1048 : vector<8x1xi32>
      %cst_445 = arith.constant 0.000000e+00 : f32
      %1050 = vector.shape_cast %1049 : vector<8x1xi1> to vector<8x1xi1>
      %1051 = vector.broadcast %1050 : vector<8x1xi1> to vector<8x128xi1>
      %1052 = vector.broadcast %cst_445 : f32 to vector<8x128xf32>
      %1053 = arith.select %1051, %1046, %1052 : vector<8x128xi1>, vector<8x128xf32>
      %cst_446 = arith.constant dense<0.000000e+00> : vector<128xf32>
      %1054 = vector.multi_reduction <add>, %1053, %cst_446 [0] : vector<8x128xf32> to vector<128xf32>
      %1055 = vector.shape_cast %1054 : vector<128xf32> to vector<1x128xf32>
      %1056 = arith.addf %1039, %1055 : vector<1x128xf32>
      %c4_i32_447 = arith.constant 4 : i32
      %1057 = arith.addi %989, %c4_i32_447 : i32
      %1058 = arith.index_cast %1057 : i32 to index
      %1059 = memref.load %arg1[%1058] : memref<2048xi32, #tpu.memory_space<smem>>
      %c3_i32_448 = arith.constant 3 : i32
      %1060 = arith.shrsi %1059, %c3_i32_448 : i32
      %1061 = arith.index_cast %1060 : i32 to index
      %c0_449 = arith.constant 0 : index
      %c0_450 = arith.constant 0 : index
      %1062 = vector.load %arg2[%1061, %c0_449, %c0_450] : memref<64x8x128xf32, #tpu.memory_space<vmem>>, vector<1x8x128xf32>
      %1063 = vector.shape_cast %1062 : vector<1x8x128xf32> to vector<8x128xf32>
      %c7_i32_451 = arith.constant 7 : i32
      %1064 = arith.andi %1059, %c7_i32_451 : i32
      %1065 = vector.broadcast %1064 : i32 to vector<8x1xi32>
      %1066 = arith.cmpi eq, %1, %1065 : vector<8x1xi32>
      %cst_452 = arith.constant 0.000000e+00 : f32
      %1067 = vector.shape_cast %1066 : vector<8x1xi1> to vector<8x1xi1>
      %1068 = vector.broadcast %1067 : vector<8x1xi1> to vector<8x128xi1>
      %1069 = vector.broadcast %cst_452 : f32 to vector<8x128xf32>
      %1070 = arith.select %1068, %1063, %1069 : vector<8x128xi1>, vector<8x128xf32>
      %cst_453 = arith.constant dense<0.000000e+00> : vector<128xf32>
      %1071 = vector.multi_reduction <add>, %1070, %cst_453 [0] : vector<8x128xf32> to vector<128xf32>
      %1072 = vector.shape_cast %1071 : vector<128xf32> to vector<1x128xf32>
      %1073 = arith.addf %1056, %1072 : vector<1x128xf32>
      %c5_i32_454 = arith.constant 5 : i32
      %1074 = arith.addi %989, %c5_i32_454 : i32
      %1075 = arith.index_cast %1074 : i32 to index
      %1076 = memref.load %arg1[%1075] : memref<2048xi32, #tpu.memory_space<smem>>
      %c3_i32_455 = arith.constant 3 : i32
      %1077 = arith.shrsi %1076, %c3_i32_455 : i32
      %1078 = arith.index_cast %1077 : i32 to index
      %c0_456 = arith.constant 0 : index
      %c0_457 = arith.constant 0 : index
      %1079 = vector.load %arg2[%1078, %c0_456, %c0_457] : memref<64x8x128xf32, #tpu.memory_space<vmem>>, vector<1x8x128xf32>
      %1080 = vector.shape_cast %1079 : vector<1x8x128xf32> to vector<8x128xf32>
      %c7_i32_458 = arith.constant 7 : i32
      %1081 = arith.andi %1076, %c7_i32_458 : i32
      %1082 = vector.broadcast %1081 : i32 to vector<8x1xi32>
      %1083 = arith.cmpi eq, %1, %1082 : vector<8x1xi32>
      %cst_459 = arith.constant 0.000000e+00 : f32
      %1084 = vector.shape_cast %1083 : vector<8x1xi1> to vector<8x1xi1>
      %1085 = vector.broadcast %1084 : vector<8x1xi1> to vector<8x128xi1>
      %1086 = vector.broadcast %cst_459 : f32 to vector<8x128xf32>
      %1087 = arith.select %1085, %1080, %1086 : vector<8x128xi1>, vector<8x128xf32>
      %cst_460 = arith.constant dense<0.000000e+00> : vector<128xf32>
      %1088 = vector.multi_reduction <add>, %1087, %cst_460 [0] : vector<8x128xf32> to vector<128xf32>
      %1089 = vector.shape_cast %1088 : vector<128xf32> to vector<1x128xf32>
      %1090 = arith.addf %1073, %1089 : vector<1x128xf32>
      %c6_i32_461 = arith.constant 6 : i32
      %1091 = arith.addi %989, %c6_i32_461 : i32
      %1092 = arith.index_cast %1091 : i32 to index
      %1093 = memref.load %arg1[%1092] : memref<2048xi32, #tpu.memory_space<smem>>
      %c3_i32_462 = arith.constant 3 : i32
      %1094 = arith.shrsi %1093, %c3_i32_462 : i32
      %1095 = arith.index_cast %1094 : i32 to index
      %c0_463 = arith.constant 0 : index
      %c0_464 = arith.constant 0 : index
      %1096 = vector.load %arg2[%1095, %c0_463, %c0_464] : memref<64x8x128xf32, #tpu.memory_space<vmem>>, vector<1x8x128xf32>
      %1097 = vector.shape_cast %1096 : vector<1x8x128xf32> to vector<8x128xf32>
      %c7_i32_465 = arith.constant 7 : i32
      %1098 = arith.andi %1093, %c7_i32_465 : i32
      %1099 = vector.broadcast %1098 : i32 to vector<8x1xi32>
      %1100 = arith.cmpi eq, %1, %1099 : vector<8x1xi32>
      %cst_466 = arith.constant 0.000000e+00 : f32
      %1101 = vector.shape_cast %1100 : vector<8x1xi1> to vector<8x1xi1>
      %1102 = vector.broadcast %1101 : vector<8x1xi1> to vector<8x128xi1>
      %1103 = vector.broadcast %cst_466 : f32 to vector<8x128xf32>
      %1104 = arith.select %1102, %1097, %1103 : vector<8x128xi1>, vector<8x128xf32>
      %cst_467 = arith.constant dense<0.000000e+00> : vector<128xf32>
      %1105 = vector.multi_reduction <add>, %1104, %cst_467 [0] : vector<8x128xf32> to vector<128xf32>
      %1106 = vector.shape_cast %1105 : vector<128xf32> to vector<1x128xf32>
      %1107 = arith.addf %1090, %1106 : vector<1x128xf32>
      %c7_i32_468 = arith.constant 7 : i32
      %1108 = arith.addi %989, %c7_i32_468 : i32
      %1109 = arith.index_cast %1108 : i32 to index
      %1110 = memref.load %arg1[%1109] : memref<2048xi32, #tpu.memory_space<smem>>
      %c3_i32_469 = arith.constant 3 : i32
      %1111 = arith.shrsi %1110, %c3_i32_469 : i32
      %1112 = arith.index_cast %1111 : i32 to index
      %c0_470 = arith.constant 0 : index
      %c0_471 = arith.constant 0 : index
      %1113 = vector.load %arg2[%1112, %c0_470, %c0_471] : memref<64x8x128xf32, #tpu.memory_space<vmem>>, vector<1x8x128xf32>
      %1114 = vector.shape_cast %1113 : vector<1x8x128xf32> to vector<8x128xf32>
      %c7_i32_472 = arith.constant 7 : i32
      %1115 = arith.andi %1110, %c7_i32_472 : i32
      %1116 = vector.broadcast %1115 : i32 to vector<8x1xi32>
      %1117 = arith.cmpi eq, %1, %1116 : vector<8x1xi32>
      %cst_473 = arith.constant 0.000000e+00 : f32
      %1118 = vector.shape_cast %1117 : vector<8x1xi1> to vector<8x1xi1>
      %1119 = vector.broadcast %1118 : vector<8x1xi1> to vector<8x128xi1>
      %1120 = vector.broadcast %cst_473 : f32 to vector<8x128xf32>
      %1121 = arith.select %1119, %1114, %1120 : vector<8x128xi1>, vector<8x128xf32>
      %cst_474 = arith.constant dense<0.000000e+00> : vector<128xf32>
      %1122 = vector.multi_reduction <add>, %1121, %cst_474 [0] : vector<8x128xf32> to vector<128xf32>
      %1123 = vector.shape_cast %1122 : vector<128xf32> to vector<1x128xf32>
      %1124 = arith.addf %1107, %1123 : vector<1x128xf32>
      %c8_i32_475 = arith.constant 8 : i32
      %1125 = arith.muli %12, %c8_i32_475 : i32
      %1126 = tpu.assume_multiple %1125, 8 : i32
      %1127 = tpu.concatenate %151, %290, %429, %568, %707, %846, %985, %1124 in 0 : vector<1x128xf32>, vector<1x128xf32>, vector<1x128xf32>, vector<1x128xf32>, vector<1x128xf32>, vector<1x128xf32>, vector<1x128xf32>, vector<1x128xf32> -> vector<8x128xf32>
      %1128 = arith.index_cast %1126 : i32 to index
      %c0_476 = arith.constant 0 : index
      %1129 = vector.load %arg6[%1128, %c0_476] : memref<128x128xf32, #tpu.memory_space<vmem>>, vector<8x128xf32>
      tpu.vector_store %arg6[%1128, %c0_476], %1127 {strides = array<i32>} : memref<128x128xf32, #tpu.memory_space<vmem>>, vector<8x128xf32>,
    }
    %c16_i32_0 = arith.constant 16 : i32
    %c0 = arith.constant 0 : index
    %c0_1 = arith.constant 0 : index
    %3 = vector.load %arg6[%c0, %c0_1] : memref<128x128xf32, #tpu.memory_space<vmem>>, vector<128x128xf32>
    %4 = arith.truncf %3 : vector<128x128xf32> to vector<128x128xbf16>
    %c0_2 = arith.constant 0 : index
    %c0_3 = arith.constant 0 : index
    %5 = vector.load %arg3[%c0_2, %c0_3] : memref<128x128xbf16, #tpu.memory_space<vmem>>, vector<128x128xbf16>
    %cst = arith.constant dense<0.000000e+00> : vector<128x128xf32>
    %6 = tpu.matmul %4, %5, %cst {dimension_numbers = #tpu.dot_dimension_numbers<[1], [0], [0], [1], [0, 0, 1, 1], [], []>} : vector<128x128xbf16>, vector<128x128xbf16>, vector<128x128xf32> -> vector<128x128xf32>
    %c0_4 = arith.constant 0 : index
    %c0_5 = arith.constant 0 : index
    %7 = vector.load %arg4[%c0_4, %c0_5] : memref<1x128xf32, #tpu.memory_space<vmem>>, vector<1x128xf32>
    %8 = vector.broadcast %7 : vector<1x128xf32> to vector<128x128xf32>
    %9 = arith.addf %6, %8 : vector<128x128xf32>
    %c0_6 = arith.constant 0 : index
    %c0_7 = arith.constant 0 : index
    %10 = vector.load %arg5[%c0_6, %c0_7] : memref<128x128xf32, #tpu.memory_space<vmem>>, vector<128x128xf32>
    tpu.vector_store %arg5[%c0_6, %c0_7], %9 {strides = array<i32>} : memref<128x128xf32, #tpu.memory_space<vmem>>, vector<128x128xf32>,
    return
  }
  func.func @transform_0(%arg0: i32, %arg1: memref<2048xi32, #tpu.memory_space<smem>>) -> (i32, i32, i32) {
    %c0_i32 = arith.constant 0 : i32
    %c0_i32_0 = arith.constant 0 : i32
    %c0_i32_1 = arith.constant 0 : i32
    %c0_i32_2 = arith.constant 0 : i32
    return %c0_i32, %c0_i32_0, %c0_i32_1 : i32, i32, i32
  }
  func.func @transform_1(%arg0: i32, %arg1: memref<2048xi32, #tpu.memory_space<smem>>) -> (i32, i32) {
    %c0_i32 = arith.constant 0 : i32
    %c0_i32_0 = arith.constant 0 : i32
    %c0_i32_1 = arith.constant 0 : i32
    return %c0_i32, %c0_i32_0 : i32, i32
  }
  func.func @transform_2(%arg0: i32, %arg1: memref<2048xi32, #tpu.memory_space<smem>>) -> (i32, i32) {
    %c0_i32 = arith.constant 0 : i32
    %c0_i32_0 = arith.constant 0 : i32
    %c0_i32_1 = arith.constant 0 : i32
    return %c0_i32, %c0_i32_0 : i32, i32
  }
  func.func @transform_3(%arg0: i32, %arg1: memref<2048xi32, #tpu.memory_space<smem>>) -> (i32, i32) {
    %c0_i32 = arith.constant 0 : i32
    %c0_i32_0 = arith.constant 0 : i32
    return %arg0, %c0_i32 : i32, i32
  }
}

</mosaic_0001>

<llo_original>
// kernel: cbow_forward.1
$region0: #{cbow_forward.1}
  #allocation0 [shape = 'u32[]', space=smem, size = 0x4, offset = 0x4, fixed_abs, tag = 'smem constant byte address 0x4 - core index']
  #allocation1 [shape = 'u32[144,128]{1,0:T(1,128)}', space=vmem, size = 0x12000, scoped, tag = 'internal scratch']
  #allocation2 [shape = 'f32[128,128]{1,0:T(8,128)}', space=vmem, size = 0x10000, scoped, tag = 'scratch operand']
  #allocation3 [shape = 's32[1]{0}', space=sflag, size = 0x4, scoped, tag = 'scoped memory for cbow_forward.1']
  #allocation4 [shape = 'u8[8192]{0}', space=smem, size = 0x2000, scoped, tag = 'prefetched SMEM operand 0']
  %s0 = inlined_call_operand.vmem [shape: s32[2048], index: 0, kind: input, shape index: {}]
  %s1 = inlined_call_operand.vmem [shape: f32[64,8,128], index: 1, kind: input, shape index: {}]
  %s2 = inlined_call_operand.vmem [shape: bf16[128,128], index: 2, kind: input, shape index: {}]
  %s3 = inlined_call_operand.vmem [shape: f32[1,128], index: 3, kind: input, shape index: {}]
  %s4 = inlined_call_operand.hbm [shape: f32[256,128], index: 4, kind: output, shape index: {}]
  %s5 = sld [smem:[#allocation0]]
  $region52: #{cbow_forward.1} parent=0
    _
  %s7 = ssub.s32 1, %s5
  %s8 = scalar_select 0, %s7, %s5
  %s9 = sshll.u32 %s0, 4
  %s10 = int_to_ptr.vmem [resolvable:$true] %s9
  %12 = dma.vmem_to_smem %s10, 256, [#allocation4], [#allocation3]
  %13 = dma.done [#allocation3], 256
  %14 = sfence
  $region1: #{cbow_forward.1} parent=0
    #allocation5 [shape = 'u8[131072]{0}', space=vmem, size = 0x20000, scoped, tag = 'output window, operand 0']
    #allocation6 [shape = 's32[2]{0}', space=sflag, size = 0x8, scoped, tag = 'scoped memory for cbow_forward.1']
    %15 = vsyncpa [#allocation6], 0
    %s16 = scalar_lea.sflag [#allocation6], 1
    %17 = vsyncpa %s16, 0
    loop: start=0, step=1, limit=4
    $region2: #{cbow_forward.1} parent=1 // loop_pre_header
      _
    $region3: #{cbow_forward.1} parent=1 // loop_header
      %s19 = sphi 0, %s23
      %p20 = scmp.ge.s32.totalorder %s19, 4
      %s27 = sphi 0, %s27
      %s29 = sphi 0, %s27
      %s30 = sphi 0, %s29
      %s44 = sphi 0, %s30
      %s48 = sphi 0, %s48
      %s50 = sphi 0, %s48
      %s51 = sphi 0, %s50
      %s65 = sphi 0, %s51
      %s69 = sphi 0, %s69
      %s71 = sphi 0, %s69
      %s72 = sphi 0, %s71
      %s86 = sphi 0, %s72
      %s92 = sphi 0, %s94
      %s95 = sphi 0, %s92
      %s96 = sphi 0, %s95
      %s112 = sphi 0, %s96
    $region4: #{cbow_forward.1} parent=1 // loop_header_branch
      %22 = sbr.rel (%p20) target = $region8
    $region5: #{cbow_forward.1} parent=1 // loop_body
      %s24 = ssub.s32 %s19, 1
      %s25 = ssub.s32 %s19, 2
      %s26 = sadd.s32 %s19, 1
      %s28 = sadd.s32 %s27, 1
      %p31 = scmp.eq.s32.totalorder %s19, 1
      %p32 = scmp.ne.s32.totalorder %s27, %s29
      %p33 = scmp.eq.s32.totalorder %s19, 0
      %p34 = por %p32, %p33
      %p35 = scmp.ne.s32.totalorder %s27, %s29
      %p36 = scmp.eq.s32.totalorder %s24, 1
      %p37 = por %p35, %p36
      %p38 = scmp.ne.s32.totalorder %s29, %s30
      %p39 = scmp.eq.s32.totalorder %s24, 0
      %p40 = por %p38, %p39
      %p41 = scmp.ne.s32.totalorder %s29, %s30
      %p42 = scmp.eq.s32.totalorder %s25, 1
      %p43 = por %p41, %p42
      %p45 = scmp.ne.s32.totalorder %s30, %s44
      %p46 = scmp.eq.s32.totalorder %s25, 0
      %p47 = por %p45, %p46
      %s49 = sadd.s32 %s48, 1
      %p52 = scmp.eq.s32.totalorder %s19, 1
      %p53 = scmp.ne.s32.totalorder %s48, %s50
      %p54 = scmp.eq.s32.totalorder %s19, 0
      %p55 = por %p53, %p54
      %p56 = scmp.ne.s32.totalorder %s48, %s50
      %p57 = scmp.eq.s32.totalorder %s24, 1
      %p58 = por %p56, %p57
      %p59 = scmp.ne.s32.totalorder %s50, %s51
      %p60 = scmp.eq.s32.totalorder %s24, 0
      %p61 = por %p59, %p60
      %p62 = scmp.ne.s32.totalorder %s50, %s51
      %p63 = scmp.eq.s32.totalorder %s25, 1
      %p64 = por %p62, %p63
      %p66 = scmp.ne.s32.totalorder %s51, %s65
      %p67 = scmp.eq.s32.totalorder %s25, 0
      %p68 = por %p66, %p67
      %s70 = sadd.s32 %s69, 1
      %p73 = scmp.eq.s32.totalorder %s19, 1
      %p74 = scmp.ne.s32.totalorder %s69, %s71
      %p75 = scmp.eq.s32.totalorder %s19, 0
      %p76 = por %p74, %p75
      %p77 = scmp.ne.s32.totalorder %s69, %s71
      %p78 = scmp.eq.s32.totalorder %s24, 1
      %p79 = por %p77, %p78
      %p80 = scmp.ne.s32.totalorder %s71, %s72
      %p81 = scmp.eq.s32.totalorder %s24, 0
      %p82 = por %p80, %p81
      %p83 = scmp.ne.s32.totalorder %s71, %s72
      %p84 = scmp.eq.s32.totalorder %s25, 1
      %p85 = por %p83, %p84
      %p87 = scmp.ne.s32.totalorder %s72, %s86
      %p88 = scmp.eq.s32.totalorder %s25, 0
      %p89 = por %p87, %p88
      %s90 = ssub.s32 %s19, %s26
      %p91 = scmp.eq.s32.totalorder %s90, 0
      %s93 = sadd.s32 %s92, 1
      %s94 = scalar_select %p91, %s92, %s93
      %p97 = pneg %p91
      %p98 = scmp.eq.s32.totalorder %s19, 1
      %p99 = por %p97, %p98
      %p100 = scmp.ne.s32.totalorder %s92, %s95
      %p101 = scmp.eq.s32.totalorder %s19, 0
      %p102 = por %p100, %p101
      %p103 = scmp.ne.s32.totalorder %s92, %s95
      %p104 = scmp.eq.s32.totalorder %s24, 1
      %p105 = por %p103, %p104
      %p106 = scmp.ne.s32.totalorder %s95, %s96
      %p107 = scmp.eq.s32.totalorder %s24, 0
      %p108 = por %p106, %p107
      %p109 = scmp.ne.s32.totalorder %s95, %s96
      %p110 = scmp.eq.s32.totalorder %s25, 1
      %p111 = por %p109, %p110
      %p113 = scmp.ne.s32.totalorder %s96, %s112
      %p114 = scmp.eq.s32.totalorder %s25, 0
      %p115 = por %p113, %p114
      %p116 = scmp.le.s32.totalorder 1, %s19
      %p117 = scmp.lt.s32.totalorder %s19, 3
      %p118 = pnand %p116, %p117
      %p119 = pneg %p118
      // Predicated region
      $region9: #{cbow_forward.1} parent=5 // pred_check
        _
      $region10: #{cbow_forward.1} parent=5 // pred_check_branch
        %121 = sbr.rel (%p118) target = $region12
      $region11: #{cbow_forward.1} parent=5 // pred_region
        %s122 = ssub.s32 %s19, 1
        // Predicated region
        $region13: #{cbow_forward.1} parent=11 // pred_check
          %p123 = pneg %p40
        $region14: #{cbow_forward.1} parent=11 // pred_check_branch
          %125 = sbr.rel (%p123) target = $region16
        $region15: #{cbow_forward.1} parent=11 // pred_region
          _
        $region16: #{cbow_forward.1} parent=11 // pred_fallthru
          _
        // Predicated region
        $region17: #{cbow_forward.1} parent=11 // pred_check
          %p126 = pneg %p61
        $region18: #{cbow_forward.1} parent=11 // pred_check_branch
          %128 = sbr.rel (%p126) target = $region20
        $region19: #{cbow_forward.1} parent=11 // pred_region
          _
        $region20: #{cbow_forward.1} parent=11 // pred_fallthru
          _
        // Predicated region
        $region21: #{cbow_forward.1} parent=11 // pred_check
          %p129 = pneg %p82
        $region22: #{cbow_forward.1} parent=11 // pred_check_branch
          %131 = sbr.rel (%p129) target = $region24
        $region23: #{cbow_forward.1} parent=11 // pred_region
          _
        $region24: #{cbow_forward.1} parent=11 // pred_fallthru
          _
      $region12: #{cbow_forward.1} parent=5 // pred_fallthru
        _
      %p132 = scmp.lt.s32.totalorder %s19, 2
      // Predicated region
      $region25: #{cbow_forward.1} parent=5 // pred_check
        %p133 = pneg %p132
      $region26: #{cbow_forward.1} parent=5 // pred_check_branch
        %135 = sbr.rel (%p133) target = $region28
      $region27: #{cbow_forward.1} parent=5 // pred_region
        _
      $region28: #{cbow_forward.1} parent=5 // pred_fallthru
        _
      %p136 = scmp.le.s32.totalorder 1, %s19
      %p137 = scmp.lt.s32.totalorder %s19, 3
      %p138 = pnand %p136, %p137
      %p139 = pneg %p138
      // Predicated region
      $region29: #{cbow_forward.1} parent=5 // pred_check
        _
      $region30: #{cbow_forward.1} parent=5 // pred_check_branch
        %141 = sbr.rel (%p138) target = $region32
      $region31: #{cbow_forward.1} parent=5 // pred_region
        %s142 = ssub.s32 %s19, 1
        %p143 = pneg %p40
        %p144 = pneg %p37
        %p145 = pneg %p61
        %p146 = pneg %p58
        %p147 = pneg %p82
        %p148 = pneg %p79
        %p149 = pneg %p108
        %p150 = pneg %p105
        %s151 = sand.u32 %s95, 1
        %s152 = scalar_lea.sflag [#allocation6], %s151
        %s153 = sand.u32 %s95, 1
        %s154 = smul.addr %s153, 128
        %s155 = scalar_lea.vmem [#allocation5], %s154
        %s156 = smul.u32 16, %s24
        %s158 = smul.u32 %s24, 1024
        %v159 = vlaneseq
        %v160 = vshrl.u32 %v159, 7
        loop: start=0, step=1, limit=16
        $region33: #{cbow_forward.1} parent=31 // loop_pre_header
          _
        $region34: #{cbow_forward.1} parent=31 // loop_header
          %s162 = sphi 0, %s166
          %p163 = scmp.ge.s32.totalorder %s162, 16
        $region35: #{cbow_forward.1} parent=31 // loop_header_branch
          %165 = sbr.rel (%p163) target = $region39
        $region36: #{cbow_forward.1} parent=31 // loop_body
          %s167 = smul.u32 %s162, 64
          %s168 = sadd.s32 %s158, %s167
          %s169 = sld [smem:[#allocation4 + %s168]]
          %s170 = sshra.s32 %s169, 3
          %s171 = smul.u32 %s170, 8
          %s172 = scalar_lea.vmem %s1, %s171
          %v173 = vld [vmem:[%s172] sm:$0xff]
          %s174 = sand.u32 %s169, 7
          %v175 = vstv %s174
          %vm176 = vcmp.eq.s32.totalorder %v160, %v175
          %v177 = vsel %vm176, 1, 0
          %vm178 = vcmp.eq.s32.totalorder %v177, 1
          %v179 = vsel %vm178, %v173, 0.0
          %v180 = vrot.slane %v179, 4
          %v181 = vadd.f32 %v179, %v180
          %v182 = vrot.slane %v181, 2
          %v183 = vadd.f32 %v181, %v182
          %v184 = vrot.slane %v183, 1
          %v185 = vadd.f32 %v183, %v184
          %s186 = sadd.s32 %s168, 1
          %s187 = sld [smem:[#allocation4 + %s186]]
          %s188 = sshra.s32 %s187, 3
          %s189 = smul.u32 %s188, 8
          %s190 = scalar_lea.vmem %s1, %s189
          %v191 = vld [vmem:[%s190] sm:$0xff]
          %s192 = sand.u32 %s187, 7
          %v193 = vstv %s192
          %vm194 = vcmp.eq.s32.totalorder %v160, %v193
          %v195 = vsel %vm194, 1, 0
          %vm196 = vcmp.eq.s32.totalorder %v195, 1
          %v197 = vsel %vm196, %v191, 0.0
          %v198 = vrot.slane %v197, 4
          %v199 = vadd.f32 %v197, %v198
          %v200 = vrot.slane %v199, 2
          %v201 = vadd.f32 %v199, %v200
          %v202 = vrot.slane %v201, 1
          %v203 = vadd.f32 %v201, %v202
          %v204 = vadd.f32 %v185, %v203
          %s205 = sadd.s32 %s168, 2
          %s206 = sld [smem:[#allocation4 + %s205]]
          %s207 = sshra.s32 %s206, 3
          %s208 = smul.u32 %s207, 8
          %s209 = scalar_lea.vmem %s1, %s208
          %v210 = vld [vmem:[%s209] sm:$0xff]
          %s211 = sand.u32 %s206, 7
          %v212 = vstv %s211
          %vm213 = vcmp.eq.s32.totalorder %v160, %v212
          %v214 = vsel %vm213, 1, 0
          %vm215 = vcmp.eq.s32.totalorder %v214, 1
          %v216 = vsel %vm215, %v210, 0.0
          %v217 = vrot.slane %v216, 4
          %v218 = vadd.f32 %v216, %v217
          %v219 = vrot.slane %v218, 2
          %v220 = vadd.f32 %v218, %v219
          %v221 = vrot.slane %v220, 1
          %v222 = vadd.f32 %v220, %v221
          %v223 = vadd.f32 %v204, %v222
          %s224 = sadd.s32 %s168, 3
          %s225 = sld [smem:[#allocation4 + %s224]]
          %s226 = sshra.s32 %s225, 3
          %s227 = smul.u32 %s226, 8
          %s228 = scalar_lea.vmem %s1, %s227
          %v229 = vld [vmem:[%s228] sm:$0xff]
          %s230 = sand.u32 %s225, 7
          %v231 = vstv %s230
          %vm232 = vcmp.eq.s32.totalorder %v160, %v231
          %v233 = vsel %vm232, 1, 0
          %vm234 = vcmp.eq.s32.totalorder %v233, 1
          %v235 = vsel %vm234, %v229, 0.0
          %v236 = vrot.slane %v235, 4
          %v237 = vadd.f32 %v235, %v236
          %v238 = vrot.slane %v237, 2
          %v239 = vadd.f32 %v237, %v238
          %v240 = vrot.slane %v239, 1
          %v241 = vadd.f32 %v239, %v240
          %v242 = vadd.f32 %v223, %v241
          %s243 = sadd.s32 %s168, 4
          %s244 = sld [smem:[#allocation4 + %s243]]
          %s245 = sshra.s32 %s244, 3
          %s246 = smul.u32 %s245, 8
          %s247 = scalar_lea.vmem %s1, %s246
          %v248 = vld [vmem:[%s247] sm:$0xff]
          %s249 = sand.u32 %s244, 7
          %v250 = vstv %s249
          %vm251 = vcmp.eq.s32.totalorder %v160, %v250
          %v252 = vsel %vm251, 1, 0
          %vm253 = vcmp.eq.s32.totalorder %v252, 1
          %v254 = vsel %vm253, %v248, 0.0
          %v255 = vrot.slane %v254, 4
          %v256 = vadd.f32 %v254, %v255
          %v257 = vrot.slane %v256, 2
          %v258 = vadd.f32 %v256, %v257
          %v259 = vrot.slane %v258, 1
          %v260 = vadd.f32 %v258, %v259
          %v261 = vadd.f32 %v242, %v260
          %s262 = sadd.s32 %s168, 5
          %s263 = sld [smem:[#allocation4 + %s262]]
          %s264 = sshra.s32 %s263, 3
          %s265 = smul.u32 %s264, 8
          %s266 = scalar_lea.vmem %s1, %s265
          %v267 = vld [vmem:[%s266] sm:$0xff]
          %s268 = sand.u32 %s263, 7
          %v269 = vstv %s268
          %vm270 = vcmp.eq.s32.totalorder %v160, %v269
          %v271 = vsel %vm270, 1, 0
          %vm272 = vcmp.eq.s32.totalorder %v271, 1
          %v273 = vsel %vm272, %v267, 0.0
          %v274 = vrot.slane %v273, 4
          %v275 = vadd.f32 %v273, %v274
          %v276 = vrot.slane %v275, 2
          %v277 = vadd.f32 %v275, %v276
          %v278 = vrot.slane %v277, 1
          %v279 = vadd.f32 %v277, %v278
          %v280 = vadd.f32 %v261, %v279
          %s281 = sadd.s32 %s168, 6
          %s282 = sld [smem:[#allocation4 + %s281]]
          %s283 = sshra.s32 %s282, 3
          %s284 = smul.u32 %s283, 8
          %s285 = scalar_lea.vmem %s1, %s284
          %v286 = vld [vmem:[%s285] sm:$0xff]
          %s287 = sand.u32 %s282, 7
          %v288 = vstv %s287
          %vm289 = vcmp.eq.s32.totalorder %v160, %v288
          %v290 = vsel %vm289, 1, 0
          %vm291 = vcmp.eq.s32.totalorder %v290, 1
          %v292 = vsel %vm291, %v286, 0.0
          %v293 = vrot.slane %v292, 4
          %v294 = vadd.f32 %v292, %v293
          %v295 = vrot.slane %v294, 2
          %v296 = vadd.f32 %v294, %v295
          %v297 = vrot.slane %v296, 1
          %v298 = vadd.f32 %v296, %v297
          %v299 = vadd.f32 %v280, %v298
          %s300 = sadd.s32 %s168, 7
          %s301 = sld [smem:[#allocation4 + %s300]]
          %s302 = sshra.s32 %s301, 3
          %s303 = smul.u32 %s302, 8
          %s304 = scalar_lea.vmem %s1, %s303
          %v305 = vld [vmem:[%s304] sm:$0xff]
          %s306 = sand.u32 %s301, 7
          %v307 = vstv %s306
          %vm308 = vcmp.eq.s32.totalorder %v160, %v307
          %v309 = vsel %vm308, 1, 0
          %vm310 = vcmp.eq.s32.totalorder %v309, 1
          %v311 = vsel %vm310, %v305, 0.0
          %v312 = vrot.slane %v311, 4
          %v313 = vadd.f32 %v311, %v312
          %v314 = vrot.slane %v313, 2
          %v315 = vadd.f32 %v313, %v314
          %v316 = vrot.slane %v315, 1
          %v317 = vadd.f32 %v315, %v316
          %v318 = vadd.f32 %v299, %v317
          %s319 = smul.u32 %s162, 8
          %s320 = sadd.s32 %s319, 1
          %s321 = smul.u32 %s320, 8
          %s322 = sadd.s32 %s158, %s321
          %s323 = sld [smem:[#allocation4 + %s322]]
          %s324 = sshra.s32 %s323, 3
          %s325 = smul.u32 %s324, 8
          %s326 = scalar_lea.vmem %s1, %s325
          %v327 = vld [vmem:[%s326] sm:$0xff]
          %s328 = sand.u32 %s323, 7
          %v329 = vstv %s328
          %vm330 = vcmp.eq.s32.totalorder %v160, %v329
          %v331 = vsel %vm330, 1, 0
          %vm332 = vcmp.eq.s32.totalorder %v331, 1
          %v333 = vsel %vm332, %v327, 0.0
          %v334 = vrot.slane %v333, 4
          %v335 = vadd.f32 %v333, %v334
          %v336 = vrot.slane %v335, 2
          %v337 = vadd.f32 %v335, %v336
          %v338 = vrot.slane %v337, 1
          %v339 = vadd.f32 %v337, %v338
          %s340 = sadd.s32 %s322, 1
          %s341 = sld [smem:[#allocation4 + %s340]]
          %s342 = sshra.s32 %s341, 3
          %s343 = smul.u32 %s342, 8
          %s344 = scalar_lea.vmem %s1, %s343
          %v345 = vld [vmem:[%s344] sm:$0xff]
          %s346 = sand.u32 %s341, 7
          %v347 = vstv %s346
          %vm348 = vcmp.eq.s32.totalorder %v160, %v347
          %v349 = vsel %vm348, 1, 0
          %vm350 = vcmp.eq.s32.totalorder %v349, 1
          %v351 = vsel %vm350, %v345, 0.0
          %v352 = vrot.slane %v351, 4
          %v353 = vadd.f32 %v351, %v352
          %v354 = vrot.slane %v353, 2
          %v355 = vadd.f32 %v353, %v354
          %v356 = vrot.slane %v355, 1
          %v357 = vadd.f32 %v355, %v356
          %v358 = vadd.f32 %v339, %v357
          %s359 = sadd.s32 %s322, 2
          %s360 = sld [smem:[#allocation4 + %s359]]
          %s361 = sshra.s32 %s360, 3
          %s362 = smul.u32 %s361, 8
          %s363 = scalar_lea.vmem %s1, %s362
          %v364 = vld [vmem:[%s363] sm:$0xff]
          %s365 = sand.u32 %s360, 7
          %v366 = vstv %s365
          %vm367 = vcmp.eq.s32.totalorder %v160, %v366
          %v368 = vsel %vm367, 1, 0
          %vm369 = vcmp.eq.s32.totalorder %v368, 1
          %v370 = vsel %vm369, %v364, 0.0
          %v371 = vrot.slane %v370, 4
          %v372 = vadd.f32 %v370, %v371
          %v373 = vrot.slane %v372, 2
          %v374 = vadd.f32 %v372, %v373
          %v375 = vrot.slane %v374, 1
          %v376 = vadd.f32 %v374, %v375
          %v377 = vadd.f32 %v358, %v376
          %s378 = sadd.s32 %s322, 3
          %s379 = sld [smem:[#allocation4 + %s378]]
          %s380 = sshra.s32 %s379, 3
          %s381 = smul.u32 %s380, 8
          %s382 = scalar_lea.vmem %s1, %s381
          %v383 = vld [vmem:[%s382] sm:$0xff]
          %s384 = sand.u32 %s379, 7
          %v385 = vstv %s384
          %vm386 = vcmp.eq.s32.totalorder %v160, %v385
          %v387 = vsel %vm386, 1, 0
          %vm388 = vcmp.eq.s32.totalorder %v387, 1
          %v389 = vsel %vm388, %v383, 0.0
          %v390 = vrot.slane %v389, 4
          %v391 = vadd.f32 %v389, %v390
          %v392 = vrot.slane %v391, 2
          %v393 = vadd.f32 %v391, %v392
          %v394 = vrot.slane %v393, 1
          %v395 = vadd.f32 %v393, %v394
          %v396 = vadd.f32 %v377, %v395
          %s397 = sadd.s32 %s322, 4
          %s398 = sld [smem:[#allocation4 + %s397]]
          %s399 = sshra.s32 %s398, 3
          %s400 = smul.u32 %s399, 8
          %s401 = scalar_lea.vmem %s1, %s400
          %v402 = vld [vmem:[%s401] sm:$0xff]
          %s403 = sand.u32 %s398, 7
          %v404 = vstv %s403
          %vm405 = vcmp.eq.s32.totalorder %v160, %v404
          %v406 = vsel %vm405, 1, 0
          %vm407 = vcmp.eq.s32.totalorder %v406, 1
          %v408 = vsel %vm407, %v402, 0.0
          %v409 = vrot.slane %v408, 4
          %v410 = vadd.f32 %v408, %v409
          %v411 = vrot.slane %v410, 2
          %v412 = vadd.f32 %v410, %v411
          %v413 = vrot.slane %v412, 1
          %v414 = vadd.f32 %v412, %v413
          %v415 = vadd.f32 %v396, %v414
          %s416 = sadd.s32 %s322, 5
          %s417 = sld [smem:[#allocation4 + %s416]]
          %s418 = sshra.s32 %s417, 3
          %s419 = smul.u32 %s418, 8
          %s420 = scalar_lea.vmem %s1, %s419
          %v421 = vld [vmem:[%s420] sm:$0xff]
          %s422 = sand.u32 %s417, 7
          %v423 = vstv %s422
          %vm424 = vcmp.eq.s32.totalorder %v160, %v423
          %v425 = vsel %vm424, 1, 0
          %vm426 = vcmp.eq.s32.totalorder %v425, 1
          %v427 = vsel %vm426, %v421, 0.0
          %v428 = vrot.slane %v427, 4
          %v429 = vadd.f32 %v427, %v428
          %v430 = vrot.slane %v429, 2
          %v431 = vadd.f32 %v429, %v430
          %v432 = vrot.slane %v431, 1
          %v433 = vadd.f32 %v431, %v432
          %v434 = vadd.f32 %v415, %v433
          %s435 = sadd.s32 %s322, 6
          %s436 = sld [smem:[#allocation4 + %s435]]
          %s437 = sshra.s32 %s436, 3
          %s438 = smul.u32 %s437, 8
          %s439 = scalar_lea.vmem %s1, %s438
          %v440 = vld [vmem:[%s439] sm:$0xff]
          %s441 = sand.u32 %s436, 7
          %v442 = vstv %s441
          %vm443 = vcmp.eq.s32.totalorder %v160, %v442
          %v444 = vsel %vm443, 1, 0
          %vm445 = vcmp.eq.s32.totalorder %v444, 1
          %v446 = vsel %vm445, %v440, 0.0
          %v447 = vrot.slane %v446, 4
          %v448 = vadd.f32 %v446, %v447
          %v449 = vrot.slane %v448, 2
          %v450 = vadd.f32 %v448, %v449
          %v451 = vrot.slane %v450, 1
          %v452 = vadd.f32 %v450, %v451
          %v453 = vadd.f32 %v434, %v452
          %s454 = sadd.s32 %s322, 7
          %s455 = sld [smem:[#allocation4 + %s454]]
          %s456 = sshra.s32 %s455, 3
          %s457 = smul.u32 %s456, 8
          %s458 = scalar_lea.vmem %s1, %s457
          %v459 = vld [vmem:[%s458] sm:$0xff]
          %s460 = sand.u32 %s455, 7
          %v461 = vstv %s460
          %vm462 = vcmp.eq.s32.totalorder %v160, %v461
          %v463 = vsel %vm462, 1, 0
          %vm464 = vcmp.eq.s32.totalorder %v463, 1
          %v465 = vsel %vm464, %v459, 0.0
          %v466 = vrot.slane %v465, 4
          %v467 = vadd.f32 %v465, %v466
          %v468 = vrot.slane %v467, 2
          %v469 = vadd.f32 %v467, %v468
          %v470 = vrot.slane %v469, 1
          %v471 = vadd.f32 %v469, %v470
          %v472 = vadd.f32 %v453, %v471
          %s473 = sadd.s32 %s319, 2
          %s474 = smul.u32 %s473, 8
          %s475 = sadd.s32 %s158, %s474
          %s476 = sld [smem:[#allocation4 + %s475]]
          %s477 = sshra.s32 %s476, 3
          %s478 = smul.u32 %s477, 8
          %s479 = scalar_lea.vmem %s1, %s478
          %v480 = vld [vmem:[%s479] sm:$0xff]
          %s481 = sand.u32 %s476, 7
          %v482 = vstv %s481
          %vm483 = vcmp.eq.s32.totalorder %v160, %v482
          %v484 = vsel %vm483, 1, 0
          %vm485 = vcmp.eq.s32.totalorder %v484, 1
          %v486 = vsel %vm485, %v480, 0.0
          %v487 = vrot.slane %v486, 4
          %v488 = vadd.f32 %v486, %v487
          %v489 = vrot.slane %v488, 2
          %v490 = vadd.f32 %v488, %v489
          %v491 = vrot.slane %v490, 1
          %v492 = vadd.f32 %v490, %v491
          %s493 = sadd.s32 %s475, 1
          %s494 = sld [smem:[#allocation4 + %s493]]
          %s495 = sshra.s32 %s494, 3
          %s496 = smul.u32 %s495, 8
          %s497 = scalar_lea.vmem %s1, %s496
          %v498 = vld [vmem:[%s497] sm:$0xff]
          %s499 = sand.u32 %s494, 7
          %v500 = vstv %s499
          %vm501 = vcmp.eq.s32.totalorder %v160, %v500
          %v502 = vsel %vm501, 1, 0
          %vm503 = vcmp.eq.s32.totalorder %v502, 1
          %v504 = vsel %vm503, %v498, 0.0
          %v505 = vrot.slane %v504, 4
          %v506 = vadd.f32 %v504, %v505
          %v507 = vrot.slane %v506, 2
          %v508 = vadd.f32 %v506, %v507
          %v509 = vrot.slane %v508, 1
          %v510 = vadd.f32 %v508, %v509
          %v511 = vadd.f32 %v492, %v510
          %s512 = sadd.s32 %s475, 2
          %s513 = sld [smem:[#allocation4 + %s512]]
          %s514 = sshra.s32 %s513, 3
          %s515 = smul.u32 %s514, 8
          %s516 = scalar_lea.vmem %s1, %s515
          %v517 = vld [vmem:[%s516] sm:$0xff]
          %s518 = sand.u32 %s513, 7
          %v519 = vstv %s518
          %vm520 = vcmp.eq.s32.totalorder %v160, %v519
          %v521 = vsel %vm520, 1, 0
          %vm522 = vcmp.eq.s32.totalorder %v521, 1
          %v523 = vsel %vm522, %v517, 0.0
          %v524 = vrot.slane %v523, 4
          %v525 = vadd.f32 %v523, %v524
          %v526 = vrot.slane %v525, 2
          %v527 = vadd.f32 %v525, %v526
          %v528 = vrot.slane %v527, 1
          %v529 = vadd.f32 %v527, %v528
          %v530 = vadd.f32 %v511, %v529
          %s531 = sadd.s32 %s475, 3
          %s532 = sld [smem:[#allocation4 + %s531]]
          %s533 = sshra.s32 %s532, 3
          %s534 = smul.u32 %s533, 8
          %s535 = scalar_lea.vmem %s1, %s534
          %v536 = vld [vmem:[%s535] sm:$0xff]
          %s537 = sand.u32 %s532, 7
          %v538 = vstv %s537
          %vm539 = vcmp.eq.s32.totalorder %v160, %v538
          %v540 = vsel %vm539, 1, 0
          %vm541 = vcmp.eq.s32.totalorder %v540, 1
          %v542 = vsel %vm541, %v536, 0.0
          %v543 = vrot.slane %v542, 4
          %v544 = vadd.f32 %v542, %v543
          %v545 = vrot.slane %v544, 2
          %v546 = vadd.f32 %v544, %v545
          %v547 = vrot.slane %v546, 1
          %v548 = vadd.f32 %v546, %v547
          %v549 = vadd.f32 %v530, %v548
          %s550 = sadd.s32 %s475, 4
          %s551 = sld [smem:[#allocation4 + %s550]]
          %s552 = sshra.s32 %s551, 3
          %s553 = smul.u32 %s552, 8
          %s554 = scalar_lea.vmem %s1, %s553
          %v555 = vld [vmem:[%s554] sm:$0xff]
          %s556 = sand.u32 %s551, 7
          %v557 = vstv %s556
          %vm558 = vcmp.eq.s32.totalorder %v160, %v557
          %v559 = vsel %vm558, 1, 0
          %vm560 = vcmp.eq.s32.totalorder %v559, 1
          %v561 = vsel %vm560, %v555, 0.0
          %v562 = vrot.slane %v561, 4
          %v563 = vadd.f32 %v561, %v562
          %v564 = vrot.slane %v563, 2
          %v565 = vadd.f32 %v563, %v564
          %v566 = vrot.slane %v565, 1
          %v567 = vadd.f32 %v565, %v566
          %v568 = vadd.f32 %v549, %v567
          %s569 = sadd.s32 %s475, 5
          %s570 = sld [smem:[#allocation4 + %s569]]
          %s571 = sshra.s32 %s570, 3
          %s572 = smul.u32 %s571, 8
          %s573 = scalar_lea.vmem %s1, %s572
          %v574 = vld [vmem:[%s573] sm:$0xff]
          %s575 = sand.u32 %s570, 7
          %v576 = vstv %s575
          %vm577 = vcmp.eq.s32.totalorder %v160, %v576
          %v578 = vsel %vm577, 1, 0
          %vm579 = vcmp.eq.s32.totalorder %v578, 1
          %v580 = vsel %vm579, %v574, 0.0
          %v581 = vrot.slane %v580, 4
          %v582 = vadd.f32 %v580, %v581
          %v583 = vrot.slane %v582, 2
          %v584 = vadd.f32 %v582, %v583
          %v585 = vrot.slane %v584, 1
          %v586 = vadd.f32 %v584, %v585
          %v587 = vadd.f32 %v568, %v586
          %s588 = sadd.s32 %s475, 6
          %s589 = sld [smem:[#allocation4 + %s588]]
          %s590 = sshra.s32 %s589, 3
          %s591 = smul.u32 %s590, 8
          %s592 = scalar_lea.vmem %s1, %s591
          %v593 = vld [vmem:[%s592] sm:$0xff]
          %s594 = sand.u32 %s589, 7
          %v595 = vstv %s594
          %vm596 = vcmp.eq.s32.totalorder %v160, %v595
          %v597 = vsel %vm596, 1, 0
          %vm598 = vcmp.eq.s32.totalorder %v597, 1
          %v599 = vsel %vm598, %v593, 0.0
          %v600 = vrot.slane %v599, 4
          %v601 = vadd.f32 %v599, %v600
          %v602 = vrot.slane %v601, 2
          %v603 = vadd.f32 %v601, %v602
          %v604 = vrot.slane %v603, 1
          %v605 = vadd.f32 %v603, %v604
          %v606 = vadd.f32 %v587, %v605
          %s607 = sadd.s32 %s475, 7
          %s608 = sld [smem:[#allocation4 + %s607]]
          %s609 = sshra.s32 %s608, 3
          %s610 = smul.u32 %s609, 8
          %s611 = scalar_lea.vmem %s1, %s610
          %v612 = vld [vmem:[%s611] sm:$0xff]
          %s613 = sand.u32 %s608, 7
          %v614 = vstv %s613
          %vm615 = vcmp.eq.s32.totalorder %v160, %v614
          %v616 = vsel %vm615, 1, 0
          %vm617 = vcmp.eq.s32.totalorder %v616, 1
          %v618 = vsel %vm617, %v612, 0.0
          %v619 = vrot.slane %v618, 4
          %v620 = vadd.f32 %v618, %v619
          %v621 = vrot.slane %v620, 2
          %v622 = vadd.f32 %v620, %v621
          %v623 = vrot.slane %v622, 1
          %v624 = vadd.f32 %v622, %v623
          %v625 = vadd.f32 %v606, %v624
          %s626 = sadd.s32 %s319, 3
          %s627 = smul.u32 %s626, 8
          %s628 = sadd.s32 %s158, %s627
          %s629 = sld [smem:[#allocation4 + %s628]]
          %s630 = sshra.s32 %s629, 3
          %s631 = smul.u32 %s630, 8
          %s632 = scalar_lea.vmem %s1, %s631
          %v633 = vld [vmem:[%s632] sm:$0xff]
          %s634 = sand.u32 %s629, 7
          %v635 = vstv %s634
          %vm636 = vcmp.eq.s32.totalorder %v160, %v635
          %v637 = vsel %vm636, 1, 0
          %vm638 = vcmp.eq.s32.totalorder %v637, 1
          %v639 = vsel %vm638, %v633, 0.0
          %v640 = vrot.slane %v639, 4
          %v641 = vadd.f32 %v639, %v640
          %v642 = vrot.slane %v641, 2
          %v643 = vadd.f32 %v641, %v642
          %v644 = vrot.slane %v643, 1
          %v645 = vadd.f32 %v643, %v644
          %s646 = sadd.s32 %s628, 1
          %s647 = sld [smem:[#allocation4 + %s646]]
          %s648 = sshra.s32 %s647, 3
          %s649 = smul.u32 %s648, 8
          %s650 = scalar_lea.vmem %s1, %s649
          %v651 = vld [vmem:[%s650] sm:$0xff]
          %s652 = sand.u32 %s647, 7
          %v653 = vstv %s652
          %vm654 = vcmp.eq.s32.totalorder %v160, %v653
          %v655 = vsel %vm654, 1, 0
          %vm656 = vcmp.eq.s32.totalorder %v655, 1
          %v657 = vsel %vm656, %v651, 0.0
          %v658 = vrot.slane %v657, 4
          %v659 = vadd.f32 %v657, %v658
          %v660 = vrot.slane %v659, 2
          %v661 = vadd.f32 %v659, %v660
          %v662 = vrot.slane %v661, 1
          %v663 = vadd.f32 %v661, %v662
          %v664 = vadd.f32 %v645, %v663
          %s665 = sadd.s32 %s628, 2
          %s666 = sld [smem:[#allocation4 + %s665]]
          %s667 = sshra.s32 %s666, 3
          %s668 = smul.u32 %s667, 8
          %s669 = scalar_lea.vmem %s1, %s668
          %v670 = vld [vmem:[%s669] sm:$0xff]
          %s671 = sand.u32 %s666, 7
          %v672 = vstv %s671
          %vm673 = vcmp.eq.s32.totalorder %v160, %v672
          %v674 = vsel %vm673, 1, 0
          %vm675 = vcmp.eq.s32.totalorder %v674, 1
          %v676 = vsel %vm675, %v670, 0.0
          %v677 = vrot.slane %v676, 4
          %v678 = vadd.f32 %v676, %v677
          %v679 = vrot.slane %v678, 2
          %v680 = vadd.f32 %v678, %v679
          %v681 = vrot.slane %v680, 1
          %v682 = vadd.f32 %v680, %v681
          %v683 = vadd.f32 %v664, %v682
          %s684 = sadd.s32 %s628, 3
          %s685 = sld [smem:[#allocation4 + %s684]]
          %s686 = sshra.s32 %s685, 3
          %s687 = smul.u32 %s686, 8
          %s688 = scalar_lea.vmem %s1, %s687
          %v689 = vld [vmem:[%s688] sm:$0xff]
          %s690 = sand.u32 %s685, 7
          %v691 = vstv %s690
          %vm692 = vcmp.eq.s32.totalorder %v160, %v691
          %v693 = vsel %vm692, 1, 0
          %vm694 = vcmp.eq.s32.totalorder %v693, 1
          %v695 = vsel %vm694, %v689, 0.0
          %v696 = vrot.slane %v695, 4
          %v697 = vadd.f32 %v695, %v696
          %v698 = vrot.slane %v697, 2
          %v699 = vadd.f32 %v697, %v698
          %v700 = vrot.slane %v699, 1
          %v701 = vadd.f32 %v699, %v700
          %v702 = vadd.f32 %v683, %v701
          %s703 = sadd.s32 %s628, 4
          %s704 = sld [smem:[#allocation4 + %s703]]
          %s705 = sshra.s32 %s704, 3
          %s706 = smul.u32 %s705, 8
          %s707 = scalar_lea.vmem %s1, %s706
          %v708 = vld [vmem:[%s707] sm:$0xff]
          %s709 = sand.u32 %s704, 7
          %v710 = vstv %s709
          %vm711 = vcmp.eq.s32.totalorder %v160, %v710
          %v712 = vsel %vm711, 1, 0
          %vm713 = vcmp.eq.s32.totalorder %v712, 1
          %v714 = vsel %vm713, %v708, 0.0
          %v715 = vrot.slane %v714, 4
          %v716 = vadd.f32 %v714, %v715
          %v717 = vrot.slane %v716, 2
          %v718 = vadd.f32 %v716, %v717
          %v719 = vrot.slane %v718, 1
          %v720 = vadd.f32 %v718, %v719
          %v721 = vadd.f32 %v702, %v720
          %s722 = sadd.s32 %s628, 5
          %s723 = sld [smem:[#allocation4 + %s722]]
          %s724 = sshra.s32 %s723, 3
          %s725 = smul.u32 %s724, 8
          %s726 = scalar_lea.vmem %s1, %s725
          %v727 = vld [vmem:[%s726] sm:$0xff]
          %s728 = sand.u32 %s723, 7
          %v729 = vstv %s728
          %vm730 = vcmp.eq.s32.totalorder %v160, %v729
          %v731 = vsel %vm730, 1, 0
          %vm732 = vcmp.eq.s32.totalorder %v731, 1
          %v733 = vsel %vm732, %v727, 0.0
          %v734 = vrot.slane %v733, 4
          %v735 = vadd.f32 %v733, %v734
          %v736 = vrot.slane %v735, 2
          %v737 = vadd.f32 %v735, %v736
          %v738 = vrot.slane %v737, 1
          %v739 = vadd.f32 %v737, %v738
          %v740 = vadd.f32 %v721, %v739
          %s741 = sadd.s32 %s628, 6
          %s742 = sld [smem:[#allocation4 + %s741]]
          %s743 = sshra.s32 %s742, 3
          %s744 = smul.u32 %s743, 8
          %s745 = scalar_lea.vmem %s1, %s744
          %v746 = vld [vmem:[%s745] sm:$0xff]
          %s747 = sand.u32 %s742, 7
          %v748 = vstv %s747
          %vm749 = vcmp.eq.s32.totalorder %v160, %v748
          %v750 = vsel %vm749, 1, 0
          %vm751 = vcmp.eq.s32.totalorder %v750, 1
          %v752 = vsel %vm751, %v746, 0.0
          %v753 = vrot.slane %v752, 4
          %v754 = vadd.f32 %v752, %v753
          %v755 = vrot.slane %v754, 2
          %v756 = vadd.f32 %v754, %v755
          %v757 = vrot.slane %v756, 1
          %v758 = vadd.f32 %v756, %v757
          %v759 = vadd.f32 %v740, %v758
          %s760 = sadd.s32 %s628, 7
          %s761 = sld [smem:[#allocation4 + %s760]]
          %s762 = sshra.s32 %s761, 3
          %s763 = smul.u32 %s762, 8
          %s764 = scalar_lea.vmem %s1, %s763
          %v765 = vld [vmem:[%s764] sm:$0xff]
          %s766 = sand.u32 %s761, 7
          %v767 = vstv %s766
          %vm768 = vcmp.eq.s32.totalorder %v160, %v767
          %v769 = vsel %vm768, 1, 0
          %vm770 = vcmp.eq.s32.totalorder %v769, 1
          %v771 = vsel %vm770, %v765, 0.0
          %v772 = vrot.slane %v771, 4
          %v773 = vadd.f32 %v771, %v772
          %v774 = vrot.slane %v773, 2
          %v775 = vadd.f32 %v773, %v774
          %v776 = vrot.slane %v775, 1
          %v777 = vadd.f32 %v775, %v776
          %v778 = vadd.f32 %v759, %v777
          %s779 = sadd.s32 %s319, 4
          %s780 = smul.u32 %s779, 8
          %s781 = sadd.s32 %s158, %s780
          %s782 = sld [smem:[#allocation4 + %s781]]
          %s783 = sshra.s32 %s782, 3
          %s784 = smul.u32 %s783, 8
          %s785 = scalar_lea.vmem %s1, %s784
          %v786 = vld [vmem:[%s785] sm:$0xff]
          %s787 = sand.u32 %s782, 7
          %v788 = vstv %s787
          %vm789 = vcmp.eq.s32.totalorder %v160, %v788
          %v790 = vsel %vm789, 1, 0
          %vm791 = vcmp.eq.s32.totalorder %v790, 1
          %v792 = vsel %vm791, %v786, 0.0
          %v793 = vrot.slane %v792, 4
          %v794 = vadd.f32 %v792, %v793
          %v795 = vrot.slane %v794, 2
          %v796 = vadd.f32 %v794, %v795
          %v797 = vrot.slane %v796, 1
          %v798 = vadd.f32 %v796, %v797
          %s799 = sadd.s32 %s781, 1
          %s800 = sld [smem:[#allocation4 + %s799]]
          %s801 = sshra.s32 %s800, 3
          %s802 = smul.u32 %s801, 8
          %s803 = scalar_lea.vmem %s1, %s802
          %v804 = vld [vmem:[%s803] sm:$0xff]
          %s805 = sand.u32 %s800, 7
          %v806 = vstv %s805
          %vm807 = vcmp.eq.s32.totalorder %v160, %v806
          %v808 = vsel %vm807, 1, 0
          %vm809 = vcmp.eq.s32.totalorder %v808, 1
          %v810 = vsel %vm809, %v804, 0.0
          %v811 = vrot.slane %v810, 4
          %v812 = vadd.f32 %v810, %v811
          %v813 = vrot.slane %v812, 2
          %v814 = vadd.f32 %v812, %v813
          %v815 = vrot.slane %v814, 1
          %v816 = vadd.f32 %v814, %v815
          %v817 = vadd.f32 %v798, %v816
          %s818 = sadd.s32 %s781, 2
          %s819 = sld [smem:[#allocation4 + %s818]]
          %s820 = sshra.s32 %s819, 3
          %s821 = smul.u32 %s820, 8
          %s822 = scalar_lea.vmem %s1, %s821
          %v823 = vld [vmem:[%s822] sm:$0xff]
          %s824 = sand.u32 %s819, 7
          %v825 = vstv %s824
          %vm826 = vcmp.eq.s32.totalorder %v160, %v825
          %v827 = vsel %vm826, 1, 0
          %vm828 = vcmp.eq.s32.totalorder %v827, 1
          %v829 = vsel %vm828, %v823, 0.0
          %v830 = vrot.slane %v829, 4
          %v831 = vadd.f32 %v829, %v830
          %v832 = vrot.slane %v831, 2
          %v833 = vadd.f32 %v831, %v832
          %v834 = vrot.slane %v833, 1
          %v835 = vadd.f32 %v833, %v834
          %v836 = vadd.f32 %v817, %v835
          %s837 = sadd.s32 %s781, 3
          %s838 = sld [smem:[#allocation4 + %s837]]
          %s839 = sshra.s32 %s838, 3
          %s840 = smul.u32 %s839, 8
          %s841 = scalar_lea.vmem %s1, %s840
          %v842 = vld [vmem:[%s841] sm:$0xff]
          %s843 = sand.u32 %s838, 7
          %v844 = vstv %s843
          %vm845 = vcmp.eq.s32.totalorder %v160, %v844
          %v846 = vsel %vm845, 1, 0
          %vm847 = vcmp.eq.s32.totalorder %v846, 1
          %v848 = vsel %vm847, %v842, 0.0
          %v849 = vrot.slane %v848, 4
          %v850 = vadd.f32 %v848, %v849
          %v851 = vrot.slane %v850, 2
          %v852 = vadd.f32 %v850, %v851
          %v853 = vrot.slane %v852, 1
          %v854 = vadd.f32 %v852, %v853
          %v855 = vadd.f32 %v836, %v854
          %s856 = sadd.s32 %s781, 4
          %s857 = sld [smem:[#allocation4 + %s856]]
          %s858 = sshra.s32 %s857, 3
          %s859 = smul.u32 %s858, 8
          %s860 = scalar_lea.vmem %s1, %s859
          %v861 = vld [vmem:[%s860] sm:$0xff]
          %s862 = sand.u32 %s857, 7
          %v863 = vstv %s862
          %vm864 = vcmp.eq.s32.totalorder %v160, %v863
          %v865 = vsel %vm864, 1, 0
          %vm866 = vcmp.eq.s32.totalorder %v865, 1
          %v867 = vsel %vm866, %v861, 0.0
          %v868 = vrot.slane %v867, 4
          %v869 = vadd.f32 %v867, %v868
          %v870 = vrot.slane %v869, 2
          %v871 = vadd.f32 %v869, %v870
          %v872 = vrot.slane %v871, 1
          %v873 = vadd.f32 %v871, %v872
          %v874 = vadd.f32 %v855, %v873
          %s875 = sadd.s32 %s781, 5
          %s876 = sld [smem:[#allocation4 + %s875]]
          %s877 = sshra.s32 %s876, 3
          %s878 = smul.u32 %s877, 8
          %s879 = scalar_lea.vmem %s1, %s878
          %v880 = vld [vmem:[%s879] sm:$0xff]
          %s881 = sand.u32 %s876, 7
          %v882 = vstv %s881
          %vm883 = vcmp.eq.s32.totalorder %v160, %v882
          %v884 = vsel %vm883, 1, 0
          %vm885 = vcmp.eq.s32.totalorder %v884, 1
          %v886 = vsel %vm885, %v880, 0.0
          %v887 = vrot.slane %v886, 4
          %v888 = vadd.f32 %v886, %v887
          %v889 = vrot.slane %v888, 2
          %v890 = vadd.f32 %v888, %v889
          %v891 = vrot.slane %v890, 1
          %v892 = vadd.f32 %v890, %v891
          %v893 = vadd.f32 %v874, %v892
          %s894 = sadd.s32 %s781, 6
          %s895 = sld [smem:[#allocation4 + %s894]]
          %s896 = sshra.s32 %s895, 3
          %s897 = smul.u32 %s896, 8
          %s898 = scalar_lea.vmem %s1, %s897
          %v899 = vld [vmem:[%s898] sm:$0xff]
          %s900 = sand.u32 %s895, 7
          %v901 = vstv %s900
          %vm902 = vcmp.eq.s32.totalorder %v160, %v901
          %v903 = vsel %vm902, 1, 0
          %vm904 = vcmp.eq.s32.totalorder %v903, 1
          %v905 = vsel %vm904, %v899, 0.0
          %v906 = vrot.slane %v905, 4
          %v907 = vadd.f32 %v905, %v906
          %v908 = vrot.slane %v907, 2
          %v909 = vadd.f32 %v907, %v908
          %v910 = vrot.slane %v909, 1
          %v911 = vadd.f32 %v909, %v910
          %v912 = vadd.f32 %v893, %v911
          %s913 = sadd.s32 %s781, 7
          %s914 = sld [smem:[#allocation4 + %s913]]
          %s915 = sshra.s32 %s914, 3
          %s916 = smul.u32 %s915, 8
          %s917 = scalar_lea.vmem %s1, %s916
          %v918 = vld [vmem:[%s917] sm:$0xff]
          %s919 = sand.u32 %s914, 7
          %v920 = vstv %s919
          %vm921 = vcmp.eq.s32.totalorder %v160, %v920
          %v922 = vsel %vm921, 1, 0
          %vm923 = vcmp.eq.s32.totalorder %v922, 1
          %v924 = vsel %vm923, %v918, 0.0
          %v925 = vrot.slane %v924, 4
          %v926 = vadd.f32 %v924, %v925
          %v927 = vrot.slane %v926, 2
          %v928 = vadd.f32 %v926, %v927
          %v929 = vrot.slane %v928, 1
          %v930 = vadd.f32 %v928, %v929
          %v931 = vadd.f32 %v912, %v930
          %s932 = sadd.s32 %s319, 5
          %s933 = smul.u32 %s932, 8
          %s934 = sadd.s32 %s158, %s933
          %s935 = sld [smem:[#allocation4 + %s934]]
          %s936 = sshra.s32 %s935, 3
          %s937 = smul.u32 %s936, 8
          %s938 = scalar_lea.vmem %s1, %s937
          %v939 = vld [vmem:[%s938] sm:$0xff]
          %s940 = sand.u32 %s935, 7
          %v941 = vstv %s940
          %vm942 = vcmp.eq.s32.totalorder %v160, %v941
          %v943 = vsel %vm942, 1, 0
          %vm944 = vcmp.eq.s32.totalorder %v943, 1
          %v945 = vsel %vm944, %v939, 0.0
          %v946 = vrot.slane %v945, 4
          %v947 = vadd.f32 %v945, %v946
          %v948 = vrot.slane %v947, 2
          %v949 = vadd.f32 %v947, %v948
          %v950 = vrot.slane %v949, 1
          %v951 = vadd.f32 %v949, %v950
          %s952 = sadd.s32 %s934, 1
          %s953 = sld [smem:[#allocation4 + %s952]]
          %s954 = sshra.s32 %s953, 3
          %s955 = smul.u32 %s954, 8
          %s956 = scalar_lea.vmem %s1, %s955
          %v957 = vld [vmem:[%s956] sm:$0xff]
          %s958 = sand.u32 %s953, 7
          %v959 = vstv %s958
          %vm960 = vcmp.eq.s32.totalorder %v160, %v959
          %v961 = vsel %vm960, 1, 0
          %vm962 = vcmp.eq.s32.totalorder %v961, 1
          %v963 = vsel %vm962, %v957, 0.0
          %v964 = vrot.slane %v963, 4
          %v965 = vadd.f32 %v963, %v964
          %v966 = vrot.slane %v965, 2
          %v967 = vadd.f32 %v965, %v966
          %v968 = vrot.slane %v967, 1
          %v969 = vadd.f32 %v967, %v968
          %v970 = vadd.f32 %v951, %v969
          %s971 = sadd.s32 %s934, 2
          %s972 = sld [smem:[#allocation4 + %s971]]
          %s973 = sshra.s32 %s972, 3
          %s974 = smul.u32 %s973, 8
          %s975 = scalar_lea.vmem %s1, %s974
          %v976 = vld [vmem:[%s975] sm:$0xff]
          %s977 = sand.u32 %s972, 7
          %v978 = vstv %s977
          %vm979 = vcmp.eq.s32.totalorder %v160, %v978
          %v980 = vsel %vm979, 1, 0
          %vm981 = vcmp.eq.s32.totalorder %v980, 1
          %v982 = vsel %vm981, %v976, 0.0
          %v983 = vrot.slane %v982, 4
          %v984 = vadd.f32 %v982, %v983
          %v985 = vrot.slane %v984, 2
          %v986 = vadd.f32 %v984, %v985
          %v987 = vrot.slane %v986, 1
          %v988 = vadd.f32 %v986, %v987
          %v989 = vadd.f32 %v970, %v988
          %s990 = sadd.s32 %s934, 3
          %s991 = sld [smem:[#allocation4 + %s990]]
          %s992 = sshra.s32 %s991, 3
          %s993 = smul.u32 %s992, 8
          %s994 = scalar_lea.vmem %s1, %s993
          %v995 = vld [vmem:[%s994] sm:$0xff]
          %s996 = sand.u32 %s991, 7
          %v997 = vstv %s996
          %vm998 = vcmp.eq.s32.totalorder %v160, %v997
          %v999 = vsel %vm998, 1, 0
          %vm1000 = vcmp.eq.s32.totalorder %v999, 1
          %v1001 = vsel %vm1000, %v995, 0.0
          %v1002 = vrot.slane %v1001, 4
          %v1003 = vadd.f32 %v1001, %v1002
          %v1004 = vrot.slane %v1003, 2
          %v1005 = vadd.f32 %v1003, %v1004
          %v1006 = vrot.slane %v1005, 1
          %v1007 = vadd.f32 %v1005, %v1006
          %v1008 = vadd.f32 %v989, %v1007
          %s1009 = sadd.s32 %s934, 4
          %s1010 = sld [smem:[#allocation4 + %s1009]]
          %s1011 = sshra.s32 %s1010, 3
          %s1012 = smul.u32 %s1011, 8
          %s1013 = scalar_lea.vmem %s1, %s1012
          %v1014 = vld [vmem:[%s1013] sm:$0xff]
          %s1015 = sand.u32 %s1010, 7
          %v1016 = vstv %s1015
          %vm1017 = vcmp.eq.s32.totalorder %v160, %v1016
          %v1018 = vsel %vm1017, 1, 0
          %vm1019 = vcmp.eq.s32.totalorder %v1018, 1
          %v1020 = vsel %vm1019, %v1014, 0.0
          %v1021 = vrot.slane %v1020, 4
          %v1022 = vadd.f32 %v1020, %v1021
          %v1023 = vrot.slane %v1022, 2
          %v1024 = vadd.f32 %v1022, %v1023
          %v1025 = vrot.slane %v1024, 1
          %v1026 = vadd.f32 %v1024, %v1025
          %v1027 = vadd.f32 %v1008, %v1026
          %s1028 = sadd.s32 %s934, 5
          %s1029 = sld [smem:[#allocation4 + %s1028]]
          %s1030 = sshra.s32 %s1029, 3
          %s1031 = smul.u32 %s1030, 8
          %s1032 = scalar_lea.vmem %s1, %s1031
          %v1033 = vld [vmem:[%s1032] sm:$0xff]
          %s1034 = sand.u32 %s1029, 7
          %v1035 = vstv %s1034
          %vm1036 = vcmp.eq.s32.totalorder %v160, %v1035
          %v1037 = vsel %vm1036, 1, 0
          %vm1038 = vcmp.eq.s32.totalorder %v1037, 1
          %v1039 = vsel %vm1038, %v1033, 0.0
          %v1040 = vrot.slane %v1039, 4
          %v1041 = vadd.f32 %v1039, %v1040
          %v1042 = vrot.slane %v1041, 2
          %v1043 = vadd.f32 %v1041, %v1042
          %v1044 = vrot.slane %v1043, 1
          %v1045 = vadd.f32 %v1043, %v1044
          %v1046 = vadd.f32 %v1027, %v1045
          %s1047 = sadd.s32 %s934, 6
          %s1048 = sld [smem:[#allocation4 + %s1047]]
          %s1049 = sshra.s32 %s1048, 3
          %s1050 = smul.u32 %s1049, 8
          %s1051 = scalar_lea.vmem %s1, %s1050
          %v1052 = vld [vmem:[%s1051] sm:$0xff]
          %s1053 = sand.u32 %s1048, 7
          %v1054 = vstv %s1053
          %vm1055 = vcmp.eq.s32.totalorder %v160, %v1054
          %v1056 = vsel %vm1055, 1, 0
          %vm1057 = vcmp.eq.s32.totalorder %v1056, 1
          %v1058 = vsel %vm1057, %v1052, 0.0
          %v1059 = vrot.slane %v1058, 4
          %v1060 = vadd.f32 %v1058, %v1059
          %v1061 = vrot.slane %v1060, 2
          %v1062 = vadd.f32 %v1060, %v1061
          %v1063 = vrot.slane %v1062, 1
          %v1064 = vadd.f32 %v1062, %v1063
          %v1065 = vadd.f32 %v1046, %v1064
          %s1066 = sadd.s32 %s934, 7
          %s1067 = sld [smem:[#allocation4 + %s1066]]
          %s1068 = sshra.s32 %s1067, 3
          %s1069 = smul.u32 %s1068, 8
          %s1070 = scalar_lea.vmem %s1, %s1069
          %v1071 = vld [vmem:[%s1070] sm:$0xff]
          %s1072 = sand.u32 %s1067, 7
          %v1073 = vstv %s1072
          %vm1074 = vcmp.eq.s32.totalorder %v160, %v1073
          %v1075 = vsel %vm1074, 1, 0
          %vm1076 = vcmp.eq.s32.totalorder %v1075, 1
          %v1077 = vsel %vm1076, %v1071, 0.0
          %v1078 = vrot.slane %v1077, 4
          %v1079 = vadd.f32 %v1077, %v1078
          %v1080 = vrot.slane %v1079, 2
          %v1081 = vadd.f32 %v1079, %v1080
          %v1082 = vrot.slane %v1081, 1
          %v1083 = vadd.f32 %v1081, %v1082
          %v1084 = vadd.f32 %v1065, %v1083
          %s1085 = sadd.s32 %s319, 6
          %s1086 = smul.u32 %s1085, 8
          %s1087 = sadd.s32 %s158, %s1086
          %s1088 = sld [smem:[#allocation4 + %s1087]]
          %s1089 = sshra.s32 %s1088, 3
          %s1090 = smul.u32 %s1089, 8
          %s1091 = scalar_lea.vmem %s1, %s1090
          %v1092 = vld [vmem:[%s1091] sm:$0xff]
          %s1093 = sand.u32 %s1088, 7
          %v1094 = vstv %s1093
          %vm1095 = vcmp.eq.s32.totalorder %v160, %v1094
          %v1096 = vsel %vm1095, 1, 0
          %vm1097 = vcmp.eq.s32.totalorder %v1096, 1
          %v1098 = vsel %vm1097, %v1092, 0.0
          %v1099 = vrot.slane %v1098, 4
          %v1100 = vadd.f32 %v1098, %v1099
          %v1101 = vrot.slane %v1100, 2
          %v1102 = vadd.f32 %v1100, %v1101
          %v1103 = vrot.slane %v1102, 1
          %v1104 = vadd.f32 %v1102, %v1103
          %s1105 = sadd.s32 %s1087, 1
          %s1106 = sld [smem:[#allocation4 + %s1105]]
          %s1107 = sshra.s32 %s1106, 3
          %s1108 = smul.u32 %s1107, 8
          %s1109 = scalar_lea.vmem %s1, %s1108
          %v1110 = vld [vmem:[%s1109] sm:$0xff]
          %s1111 = sand.u32 %s1106, 7
          %v1112 = vstv %s1111
          %vm1113 = vcmp.eq.s32.totalorder %v160, %v1112
          %v1114 = vsel %vm1113, 1, 0
          %vm1115 = vcmp.eq.s32.totalorder %v1114, 1
          %v1116 = vsel %vm1115, %v1110, 0.0
          %v1117 = vrot.slane %v1116, 4
          %v1118 = vadd.f32 %v1116, %v1117
          %v1119 = vrot.slane %v1118, 2
          %v1120 = vadd.f32 %v1118, %v1119
          %v1121 = vrot.slane %v1120, 1
          %v1122 = vadd.f32 %v1120, %v1121
          %v1123 = vadd.f32 %v1104, %v1122
          %s1124 = sadd.s32 %s1087, 2
          %s1125 = sld [smem:[#allocation4 + %s1124]]
          %s1126 = sshra.s32 %s1125, 3
          %s1127 = smul.u32 %s1126, 8
          %s1128 = scalar_lea.vmem %s1, %s1127
          %v1129 = vld [vmem:[%s1128] sm:$0xff]
          %s1130 = sand.u32 %s1125, 7
          %v1131 = vstv %s1130
          %vm1132 = vcmp.eq.s32.totalorder %v160, %v1131
          %v1133 = vsel %vm1132, 1, 0
          %vm1134 = vcmp.eq.s32.totalorder %v1133, 1
          %v1135 = vsel %vm1134, %v1129, 0.0
          %v1136 = vrot.slane %v1135, 4
          %v1137 = vadd.f32 %v1135, %v1136
          %v1138 = vrot.slane %v1137, 2
          %v1139 = vadd.f32 %v1137, %v1138
          %v1140 = vrot.slane %v1139, 1
          %v1141 = vadd.f32 %v1139, %v1140
          %v1142 = vadd.f32 %v1123, %v1141
          %s1143 = sadd.s32 %s1087, 3
          %s1144 = sld [smem:[#allocation4 + %s1143]]
          %s1145 = sshra.s32 %s1144, 3
          %s1146 = smul.u32 %s1145, 8
          %s1147 = scalar_lea.vmem %s1, %s1146
          %v1148 = vld [vmem:[%s1147] sm:$0xff]
          %s1149 = sand.u32 %s1144, 7
          %v1150 = vstv %s1149
          %vm1151 = vcmp.eq.s32.totalorder %v160, %v1150
          %v1152 = vsel %vm1151, 1, 0
          %vm1153 = vcmp.eq.s32.totalorder %v1152, 1
          %v1154 = vsel %vm1153, %v1148, 0.0
          %v1155 = vrot.slane %v1154, 4
          %v1156 = vadd.f32 %v1154, %v1155
          %v1157 = vrot.slane %v1156, 2
          %v1158 = vadd.f32 %v1156, %v1157
          %v1159 = vrot.slane %v1158, 1
          %v1160 = vadd.f32 %v1158, %v1159
          %v1161 = vadd.f32 %v1142, %v1160
          %s1162 = sadd.s32 %s1087, 4
          %s1163 = sld [smem:[#allocation4 + %s1162]]
          %s1164 = sshra.s32 %s1163, 3
          %s1165 = smul.u32 %s1164, 8
          %s1166 = scalar_lea.vmem %s1, %s1165
          %v1167 = vld [vmem:[%s1166] sm:$0xff]
          %s1168 = sand.u32 %s1163, 7
          %v1169 = vstv %s1168
          %vm1170 = vcmp.eq.s32.totalorder %v160, %v1169
          %v1171 = vsel %vm1170, 1, 0
          %vm1172 = vcmp.eq.s32.totalorder %v1171, 1
          %v1173 = vsel %vm1172, %v1167, 0.0
          %v1174 = vrot.slane %v1173, 4
          %v1175 = vadd.f32 %v1173, %v1174
          %v1176 = vrot.slane %v1175, 2
          %v1177 = vadd.f32 %v1175, %v1176
          %v1178 = vrot.slane %v1177, 1
          %v1179 = vadd.f32 %v1177, %v1178
          %v1180 = vadd.f32 %v1161, %v1179
          %s1181 = sadd.s32 %s1087, 5
          %s1182 = sld [smem:[#allocation4 + %s1181]]
          %s1183 = sshra.s32 %s1182, 3
          %s1184 = smul.u32 %s1183, 8
          %s1185 = scalar_lea.vmem %s1, %s1184
          %v1186 = vld [vmem:[%s1185] sm:$0xff]
          %s1187 = sand.u32 %s1182, 7
          %v1188 = vstv %s1187
          %vm1189 = vcmp.eq.s32.totalorder %v160, %v1188
          %v1190 = vsel %vm1189, 1, 0
          %vm1191 = vcmp.eq.s32.totalorder %v1190, 1
          %v1192 = vsel %vm1191, %v1186, 0.0
          %v1193 = vrot.slane %v1192, 4
          %v1194 = vadd.f32 %v1192, %v1193
          %v1195 = vrot.slane %v1194, 2
          %v1196 = vadd.f32 %v1194, %v1195
          %v1197 = vrot.slane %v1196, 1
          %v1198 = vadd.f32 %v1196, %v1197
          %v1199 = vadd.f32 %v1180, %v1198
          %s1200 = sadd.s32 %s1087, 6
          %s1201 = sld [smem:[#allocation4 + %s1200]]
          %s1202 = sshra.s32 %s1201, 3
          %s1203 = smul.u32 %s1202, 8
          %s1204 = scalar_lea.vmem %s1, %s1203
          %v1205 = vld [vmem:[%s1204] sm:$0xff]
          %s1206 = sand.u32 %s1201, 7
          %v1207 = vstv %s1206
          %vm1208 = vcmp.eq.s32.totalorder %v160, %v1207
          %v1209 = vsel %vm1208, 1, 0
          %vm1210 = vcmp.eq.s32.totalorder %v1209, 1
          %v1211 = vsel %vm1210, %v1205, 0.0
          %v1212 = vrot.slane %v1211, 4
          %v1213 = vadd.f32 %v1211, %v1212
          %v1214 = vrot.slane %v1213, 2
          %v1215 = vadd.f32 %v1213, %v1214
          %v1216 = vrot.slane %v1215, 1
          %v1217 = vadd.f32 %v1215, %v1216
          %v1218 = vadd.f32 %v1199, %v1217
          %s1219 = sadd.s32 %s1087, 7
          %s1220 = sld [smem:[#allocation4 + %s1219]]
          %s1221 = sshra.s32 %s1220, 3
          %s1222 = smul.u32 %s1221, 8
          %s1223 = scalar_lea.vmem %s1, %s1222
          %v1224 = vld [vmem:[%s1223] sm:$0xff]
          %s1225 = sand.u32 %s1220, 7
          %v1226 = vstv %s1225
          %vm1227 = vcmp.eq.s32.totalorder %v160, %v1226
          %v1228 = vsel %vm1227, 1, 0
          %vm1229 = vcmp.eq.s32.totalorder %v1228, 1
          %v1230 = vsel %vm1229, %v1224, 0.0
          %v1231 = vrot.slane %v1230, 4
          %v1232 = vadd.f32 %v1230, %v1231
          %v1233 = vrot.slane %v1232, 2
          %v1234 = vadd.f32 %v1232, %v1233
          %v1235 = vrot.slane %v1234, 1
          %v1236 = vadd.f32 %v1234, %v1235
          %v1237 = vadd.f32 %v1218, %v1236
          %s1238 = sadd.s32 %s319, 7
          %s1239 = smul.u32 %s1238, 8
          %s1240 = sadd.s32 %s158, %s1239
          %s1241 = sld [smem:[#allocation4 + %s1240]]
          %s1242 = sshra.s32 %s1241, 3
          %s1243 = smul.u32 %s1242, 8
          %s1244 = scalar_lea.vmem %s1, %s1243
          %v1245 = vld [vmem:[%s1244] sm:$0xff]
          %s1246 = sand.u32 %s1241, 7
          %v1247 = vstv %s1246
          %vm1248 = vcmp.eq.s32.totalorder %v160, %v1247
          %v1249 = vsel %vm1248, 1, 0
          %vm1250 = vcmp.eq.s32.totalorder %v1249, 1
          %v1251 = vsel %vm1250, %v1245, 0.0
          %v1252 = vrot.slane %v1251, 4
          %v1253 = vadd.f32 %v1251, %v1252
          %v1254 = vrot.slane %v1253, 2
          %v1255 = vadd.f32 %v1253, %v1254
          %v1256 = vrot.slane %v1255, 1
          %v1257 = vadd.f32 %v1255, %v1256
          %s1258 = sadd.s32 %s1240, 1
          %s1259 = sld [smem:[#allocation4 + %s1258]]
          %s1260 = sshra.s32 %s1259, 3
          %s1261 = smul.u32 %s1260, 8
          %s1262 = scalar_lea.vmem %s1, %s1261
          %v1263 = vld [vmem:[%s1262] sm:$0xff]
          %s1264 = sand.u32 %s1259, 7
          %v1265 = vstv %s1264
          %vm1266 = vcmp.eq.s32.totalorder %v160, %v1265
          %v1267 = vsel %vm1266, 1, 0
          %vm1268 = vcmp.eq.s32.totalorder %v1267, 1
          %v1269 = vsel %vm1268, %v1263, 0.0
          %v1270 = vrot.slane %v1269, 4
          %v1271 = vadd.f32 %v1269, %v1270
          %v1272 = vrot.slane %v1271, 2
          %v1273 = vadd.f32 %v1271, %v1272
          %v1274 = vrot.slane %v1273, 1
          %v1275 = vadd.f32 %v1273, %v1274
          %v1276 = vadd.f32 %v1257, %v1275
          %s1277 = sadd.s32 %s1240, 2
          %s1278 = sld [smem:[#allocation4 + %s1277]]
          %s1279 = sshra.s32 %s1278, 3
          %s1280 = smul.u32 %s1279, 8
          %s1281 = scalar_lea.vmem %s1, %s1280
          %v1282 = vld [vmem:[%s1281] sm:$0xff]
          %s1283 = sand.u32 %s1278, 7
          %v1284 = vstv %s1283
          %vm1285 = vcmp.eq.s32.totalorder %v160, %v1284
          %v1286 = vsel %vm1285, 1, 0
          %vm1287 = vcmp.eq.s32.totalorder %v1286, 1
          %v1288 = vsel %vm1287, %v1282, 0.0
          %v1289 = vrot.slane %v1288, 4
          %v1290 = vadd.f32 %v1288, %v1289
          %v1291 = vrot.slane %v1290, 2
          %v1292 = vadd.f32 %v1290, %v1291
          %v1293 = vrot.slane %v1292, 1
          %v1294 = vadd.f32 %v1292, %v1293
          %v1295 = vadd.f32 %v1276, %v1294
          %s1296 = sadd.s32 %s1240, 3
          %s1297 = sld [smem:[#allocation4 + %s1296]]
          %s1298 = sshra.s32 %s1297, 3
          %s1299 = smul.u32 %s1298, 8
          %s1300 = scalar_lea.vmem %s1, %s1299
          %v1301 = vld [vmem:[%s1300] sm:$0xff]
          %s1302 = sand.u32 %s1297, 7
          %v1303 = vstv %s1302
          %vm1304 = vcmp.eq.s32.totalorder %v160, %v1303
          %v1305 = vsel %vm1304, 1, 0
          %vm1306 = vcmp.eq.s32.totalorder %v1305, 1
          %v1307 = vsel %vm1306, %v1301, 0.0
          %v1308 = vrot.slane %v1307, 4
          %v1309 = vadd.f32 %v1307, %v1308
          %v1310 = vrot.slane %v1309, 2
          %v1311 = vadd.f32 %v1309, %v1310
          %v1312 = vrot.slane %v1311, 1
          %v1313 = vadd.f32 %v1311, %v1312
          %v1314 = vadd.f32 %v1295, %v1313
          %s1315 = sadd.s32 %s1240, 4
          %s1316 = sld [smem:[#allocation4 + %s1315]]
          %s1317 = sshra.s32 %s1316, 3
          %s1318 = smul.u32 %s1317, 8
          %s1319 = scalar_lea.vmem %s1, %s1318
          %v1320 = vld [vmem:[%s1319] sm:$0xff]
          %s1321 = sand.u32 %s1316, 7
          %v1322 = vstv %s1321
          %vm1323 = vcmp.eq.s32.totalorder %v160, %v1322
          %v1324 = vsel %vm1323, 1, 0
          %vm1325 = vcmp.eq.s32.totalorder %v1324, 1
          %v1326 = vsel %vm1325, %v1320, 0.0
          %v1327 = vrot.slane %v1326, 4
          %v1328 = vadd.f32 %v1326, %v1327
          %v1329 = vrot.slane %v1328, 2
          %v1330 = vadd.f32 %v1328, %v1329
          %v1331 = vrot.slane %v1330, 1
          %v1332 = vadd.f32 %v1330, %v1331
          %v1333 = vadd.f32 %v1314, %v1332
          %s1334 = sadd.s32 %s1240, 5
          %s1335 = sld [smem:[#allocation4 + %s1334]]
          %s1336 = sshra.s32 %s1335, 3
          %s1337 = smul.u32 %s1336, 8
          %s1338 = scalar_lea.vmem %s1, %s1337
          %v1339 = vld [vmem:[%s1338] sm:$0xff]
          %s1340 = sand.u32 %s1335, 7
          %v1341 = vstv %s1340
          %vm1342 = vcmp.eq.s32.totalorder %v160, %v1341
          %v1343 = vsel %vm1342, 1, 0
          %vm1344 = vcmp.eq.s32.totalorder %v1343, 1
          %v1345 = vsel %vm1344, %v1339, 0.0
          %v1346 = vrot.slane %v1345, 4
          %v1347 = vadd.f32 %v1345, %v1346
          %v1348 = vrot.slane %v1347, 2
          %v1349 = vadd.f32 %v1347, %v1348
          %v1350 = vrot.slane %v1349, 1
          %v1351 = vadd.f32 %v1349, %v1350
          %v1352 = vadd.f32 %v1333, %v1351
          %s1353 = sadd.s32 %s1240, 6
          %s1354 = sld [smem:[#allocation4 + %s1353]]
          %s1355 = sshra.s32 %s1354, 3
          %s1356 = smul.u32 %s1355, 8
          %s1357 = scalar_lea.vmem %s1, %s1356
          %v1358 = vld [vmem:[%s1357] sm:$0xff]
          %s1359 = sand.u32 %s1354, 7
          %v1360 = vstv %s1359
          %vm1361 = vcmp.eq.s32.totalorder %v160, %v1360
          %v1362 = vsel %vm1361, 1, 0
          %vm1363 = vcmp.eq.s32.totalorder %v1362, 1
          %v1364 = vsel %vm1363, %v1358, 0.0
          %v1365 = vrot.slane %v1364, 4
          %v1366 = vadd.f32 %v1364, %v1365
          %v1367 = vrot.slane %v1366, 2
          %v1368 = vadd.f32 %v1366, %v1367
          %v1369 = vrot.slane %v1368, 1
          %v1370 = vadd.f32 %v1368, %v1369
          %v1371 = vadd.f32 %v1352, %v1370
          %s1372 = sadd.s32 %s1240, 7
          %s1373 = sld [smem:[#allocation4 + %s1372]]
          %s1374 = sshra.s32 %s1373, 3
          %s1375 = smul.u32 %s1374, 8
          %s1376 = scalar_lea.vmem %s1, %s1375
          %v1377 = vld [vmem:[%s1376] sm:$0xff]
          %s1378 = sand.u32 %s1373, 7
          %v1379 = vstv %s1378
          %vm1380 = vcmp.eq.s32.totalorder %v160, %v1379
          %v1381 = vsel %vm1380, 1, 0
          %vm1382 = vcmp.eq.s32.totalorder %v1381, 1
          %v1383 = vsel %vm1382, %v1377, 0.0
          %v1384 = vrot.slane %v1383, 4
          %v1385 = vadd.f32 %v1383, %v1384
          %v1386 = vrot.slane %v1385, 2
          %v1387 = vadd.f32 %v1385, %v1386
          %v1388 = vrot.slane %v1387, 1
          %v1389 = vadd.f32 %v1387, %v1388
          %v1390 = vadd.f32 %v1371, %v1389
          %vm1391 = vcmask 1040384
          %v1392 = vsel %vm1391, %v318, %v472
          %vm1393 = vcmask 1041408
          %v1394 = vsel %vm1393, %v1392, %v625
          %vm1395 = vcmask 1042432
          %v1396 = vsel %vm1395, %v1394, %v778
          %vm1397 = vcmask 1043456
          %v1398 = vsel %vm1397, %v1396, %v931
          %vm1399 = vcmask 1044480
          %v1400 = vsel %vm1399, %v1398, %v1084
          %vm1401 = vcmask 1045504
          %v1402 = vsel %vm1401, %v1400, %v1237
          %vm1403 = vcmask 1046528
          %v1404 = vsel %vm1403, %v1402, %v1390
          %s1405 = scalar_lea.vmem [#allocation2], %s319
          %1406 = vst [vmem:[%s1405] sm:$0xff] %v1404
        $region37: #{cbow_forward.1} parent=31 // loop_footer
          %s166 = sadd.s32 1, %s162
        $region38: #{cbow_forward.1} parent=31 // loop_footer_branch
          %161 = sbr.rel target = $region34
        $region39: #{cbow_forward.1} parent=31 // loop_exit
          _
        %v1407 = vld [vmem:[#allocation2] sm:$0xff]
        %v1408 = vld [vmem:[#allocation2 + $0x8] sm:$0xff]
        %v1409 = vld [vmem:[#allocation2 + $0x10] sm:$0xff]
        %v1410 = vld [vmem:[#allocation2 + $0x18] sm:$0xff]
        %v1411 = vld [vmem:[#allocation2 + $0x20] sm:$0xff]
        %v1412 = vld [vmem:[#allocation2 + $0x28] sm:$0xff]
        %v1413 = vld [vmem:[#allocation2 + $0x30] sm:$0xff]
        %v1414 = vld [vmem:[#allocation2 + $0x38] sm:$0xff]
        %v1415 = vld [vmem:[#allocation2 + $0x40] sm:$0xff]
        %v1416 = vld [vmem:[#allocation2 + $0x48] sm:$0xff]
        %v1417 = vld [vmem:[#allocation2 + $0x50] sm:$0xff]
        %v1418 = vld [vmem:[#allocation2 + $0x58] sm:$0xff]
        %v1419 = vld [vmem:[#allocation2 + $0x60] sm:$0xff]
        %v1420 = vld [vmem:[#allocation2 + $0x68] sm:$0xff]
        %v1421 = vld [vmem:[#allocation2 + $0x70] sm:$0xff]
        %v1422 = vld [vmem:[#allocation2 + $0x78] sm:$0xff]
        %v1423 = vpack.c.bf16 %v1408, %v1407
        %v1424 = vpack.c.bf16 %v1410, %v1409
        %v1425 = vpack.c.bf16 %v1412, %v1411
        %v1426 = vpack.c.bf16 %v1414, %v1413
        %v1427 = vpack.c.bf16 %v1416, %v1415
        %v1428 = vpack.c.bf16 %v1418, %v1417
        %v1429 = vpack.c.bf16 %v1420, %v1419
        %v1430 = vpack.c.bf16 %v1422, %v1421
        %v1431 = vld [vmem:[%s2] sm:$0xf]
        %v1432 = vld [vmem:[%s2 + $0x4] sm:$0xf]
        %v1433 = vld [vmem:[%s2 + $0x8] sm:$0xf]
        %v1434 = vld [vmem:[%s2 + $0xc] sm:$0xf]
        %v1435 = vld [vmem:[%s2 + $0x10] sm:$0xf]
        %v1436 = vld [vmem:[%s2 + $0x14] sm:$0xf]
        %v1437 = vld [vmem:[%s2 + $0x18] sm:$0xf]
        %v1438 = vld [vmem:[%s2 + $0x1c] sm:$0xf]
        %v1439 = vld [vmem:[%s2 + $0x20] sm:$0xf]
        %v1440 = vld [vmem:[%s2 + $0x24] sm:$0xf]
        %v1441 = vld [vmem:[%s2 + $0x28] sm:$0xf]
        %v1442 = vld [vmem:[%s2 + $0x2c] sm:$0xf]
        %v1443 = vld [vmem:[%s2 + $0x30] sm:$0xf]
        %v1444 = vld [vmem:[%s2 + $0x34] sm:$0xf]
        %v1445 = vld [vmem:[%s2 + $0x38] sm:$0xf]
        %v1446 = vld [vmem:[%s2 + $0x3c] sm:$0xf]
        %v1447 = vld [vmem:[%s3] sm:$0x1]
        %v1449 = vlaneseq
        %v1450 = vshrl.u32 %v1449, 7
        %v1451 = vsub.s32 0, %v1450
        %v1452 = vrot.slane %v1447, %v1451
        %v1470 = vunpack.c.l.b16 %v1431
        %v1471 = vunpack.c.l.b16 %v1432
        %v1472 = vunpack.c.l.b16 %v1433
        %v1473 = vunpack.c.l.b16 %v1434
        %v1474 = vunpack.c.l.b16 %v1435
        %v1475 = vunpack.c.l.b16 %v1436
        %v1476 = vunpack.c.l.b16 %v1437
        %v1477 = vunpack.c.l.b16 %v1438
        %v1478 = vunpack.c.l.b16 %v1439
        %v1479 = vunpack.c.l.b16 %v1440
        %v1480 = vunpack.c.l.b16 %v1441
        %v1481 = vunpack.c.l.b16 %v1442
        %v1482 = vunpack.c.l.b16 %v1443
        %v1483 = vunpack.c.l.b16 %v1444
        %v1484 = vunpack.c.l.b16 %v1445
        %v1485 = vunpack.c.l.b16 %v1446
        %v1486 = vpack.c.b16 %v1471, %v1470
        %v1487 = vpack.c.b16 %v1473, %v1472
        %v1488 = vpack.c.b16 %v1475, %v1474
        %v1489 = vpack.c.b16 %v1477, %v1476
        %v1490 = vpack.c.b16 %v1479, %v1478
        %v1491 = vpack.c.b16 %v1481, %v1480
        %v1492 = vpack.c.b16 %v1483, %v1482
        %v1493 = vpack.c.b16 %v1485, %v1484
        %1502 = vmatprep.subr.bf16.mxu0 0
        %1503 = vmatpush1.bf16.msra.mxu0 %v1486
        %1504 = vmatprep.subr.bf16.mxu0 0
        %1505 = vmatpush1.bf16.msra.mxu0 %v1487
        %1506 = vmatprep.subr.bf16.mxu0 0
        %1507 = vmatpush1.bf16.msra.mxu0 %v1488
        %1508 = vmatprep.subr.bf16.mxu0 0
        %1509 = vmatpush1.bf16.msra.mxu0 %v1489
        %1510 = vmatprep.subr.bf16.mxu0 0
        %1511 = vmatpush1.bf16.msra.mxu0 %v1490
        %1512 = vmatprep.subr.bf16.mxu0 0
        %1513 = vmatpush1.bf16.msra.mxu0 %v1491
        %1514 = vmatprep.subr.bf16.mxu0 0
        %1515 = vmatpush1.bf16.msra.mxu0 %v1492
        %1516 = vmatprep.subr.bf16.mxu0 0
        %1517 = vmatpush1.bf16.msra.mxu0 %v1493
        %1518 = vmatprep.subr.bf16.mxu0 0
        %1519 = vmatpush1.bf16.msra.mxu0 0
        %1520 = vmatprep.subr.bf16.mxu0 0
        %1521 = vmatpush1.bf16.msra.mxu0 0
        %1522 = vmatprep.subr.bf16.mxu0 0
        %1523 = vmatpush1.bf16.msra.mxu0 0
        %1524 = vmatprep.subr.bf16.mxu0 0
        %1525 = vmatpush1.bf16.msra.mxu0 0
        %1526 = vmatprep.subr.bf16.mxu0 0
        %1527 = vmatpush1.bf16.msra.mxu0 0
        %1528 = vmatprep.subr.bf16.mxu0 0
        %1529 = vmatpush1.bf16.msra.mxu0 0
        %1530 = vmatprep.subr.bf16.mxu0 0
        %1531 = vmatpush1.bf16.msra.mxu0 0
        %1532 = vmatprep.subr.bf16.mxu0 0
        %1533 = vmatpush1.bf16.msra.mxu0 0
        %1534 = vmatprep.mubr.bf16.mxu0 0
        %1535 = vmatmul.mubr.bf16.gmra.mrb[0].mxu0 %v1423
        %v1536 = vpop.f32.mrb[0].mxu0
        %v1537 = vadd.f32 %v1452, %v1536
        %v1538 = vpop.f32.mrb[0].mxu0
        %v1539 = vpop.f32.mrb[0].mxu0
        %v1540 = vadd.f32 %v1452, %v1539
        %v1541 = vpop.f32.mrb[0].mxu0
        %1542 = vmatprep.mubr.bf16.mxu0 0
        %1543 = vmatmul.mubr.bf16.gmra.mrb[0].mxu0 %v1424
        %v1544 = vpop.f32.mrb[0].mxu0
        %v1545 = vadd.f32 %v1452, %v1544
        %v1546 = vpop.f32.mrb[0].mxu0
        %v1547 = vpop.f32.mrb[0].mxu0
        %v1548 = vadd.f32 %v1452, %v1547
        %v1549 = vpop.f32.mrb[0].mxu0
        %1550 = vmatprep.mubr.bf16.mxu0 0
        %1551 = vmatmul.mubr.bf16.gmra.mrb[0].mxu0 %v1425
        %v1552 = vpop.f32.mrb[0].mxu0
        %v1553 = vadd.f32 %v1452, %v1552
        %v1554 = vpop.f32.mrb[0].mxu0
        %v1555 = vpop.f32.mrb[0].mxu0
        %v1556 = vadd.f32 %v1452, %v1555
        %v1557 = vpop.f32.mrb[0].mxu0
        %1558 = vmatprep.mubr.bf16.mxu0 0
        %1559 = vmatmul.mubr.bf16.gmra.mrb[0].mxu0 %v1426
        %v1560 = vpop.f32.mrb[0].mxu0
        %v1561 = vadd.f32 %v1452, %v1560
        %v1562 = vpop.f32.mrb[0].mxu0
        %v1563 = vpop.f32.mrb[0].mxu0
        %v1564 = vadd.f32 %v1452, %v1563
        %v1565 = vpop.f32.mrb[0].mxu0
        %1566 = vmatprep.mubr.bf16.mxu0 0
        %1567 = vmatmul.mubr.bf16.gmra.mrb[0].mxu0 %v1427
        %v1568 = vpop.f32.mrb[0].mxu0
        %v1569 = vadd.f32 %v1452, %v1568
        %v1570 = vpop.f32.mrb[0].mxu0
        %v1571 = vpop.f32.mrb[0].mxu0
        %v1572 = vadd.f32 %v1452, %v1571
        %v1573 = vpop.f32.mrb[0].mxu0
        %1574 = vmatprep.mubr.bf16.mxu0 0
        %1575 = vmatmul.mubr.bf16.gmra.mrb[0].mxu0 %v1428
        %v1576 = vpop.f32.mrb[0].mxu0
        %v1577 = vadd.f32 %v1452, %v1576
        %v1578 = vpop.f32.mrb[0].mxu0
        %v1579 = vpop.f32.mrb[0].mxu0
        %v1580 = vadd.f32 %v1452, %v1579
        %v1581 = vpop.f32.mrb[0].mxu0
        %1582 = vmatprep.mubr.bf16.mxu0 0
        %1583 = vmatmul.mubr.bf16.gmra.mrb[0].mxu0 %v1429
        %v1584 = vpop.f32.mrb[0].mxu0
        %v1585 = vadd.f32 %v1452, %v1584
        %v1586 = vpop.f32.mrb[0].mxu0
        %v1587 = vpop.f32.mrb[0].mxu0
        %v1588 = vadd.f32 %v1452, %v1587
        %v1589 = vpop.f32.mrb[0].mxu0
        %1590 = vmatprep.mubr.bf16.mxu0 0
        %1591 = vmatmul.mubr.bf16.gmra.mrb[0].mxu0 %v1430
        %v1592 = vpop.f32.mrb[0].mxu0
        %v1593 = vadd.f32 %v1452, %v1592
        %v1594 = vpop.f32.mrb[0].mxu0
        %v1595 = vpop.f32.mrb[0].mxu0
        %v1596 = vadd.f32 %v1452, %v1595
        %v1597 = vpop.f32.mrb[0].mxu0
        %1598 = vdwg.mxu0
        %1599 = vst [vmem:[%s155] sm:$0xff] %v1537
        %1600 = vst [vmem:[%s155 + $0x8] sm:$0xff] %v1540
        %1601 = vst [vmem:[%s155 + $0x10] sm:$0xff] %v1545
        %1602 = vst [vmem:[%s155 + $0x18] sm:$0xff] %v1548
        %1603 = vst [vmem:[%s155 + $0x20] sm:$0xff] %v1553
        %1604 = vst [vmem:[%s155 + $0x28] sm:$0xff] %v1556
        %1605 = vst [vmem:[%s155 + $0x30] sm:$0xff] %v1561
        %1606 = vst [vmem:[%s155 + $0x38] sm:$0xff] %v1564
        %1607 = vst [vmem:[%s155 + $0x40] sm:$0xff] %v1569
        %1608 = vst [vmem:[%s155 + $0x48] sm:$0xff] %v1572
        %1609 = vst [vmem:[%s155 + $0x50] sm:$0xff] %v1577
        %1610 = vst [vmem:[%s155 + $0x58] sm:$0xff] %v1580
        %1611 = vst [vmem:[%s155 + $0x60] sm:$0xff] %v1585
        %1612 = vst [vmem:[%s155 + $0x68] sm:$0xff] %v1588
        %1613 = vst [vmem:[%s155 + $0x70] sm:$0xff] %v1593
        %1614 = vst [vmem:[%s155 + $0x78] sm:$0xff] %v1596
        %s1615 = sand.u32 %s95, 1
        %s1616 = scalar_lea.sflag [#allocation6], %s1615
        %s1617 = sand.u32 %s95, 1
        %s1618 = smul.addr %s1617, 128
        %s1619 = scalar_lea.vmem [#allocation5], %s1618
        // Predicated region
        $region40: #{cbow_forward.1} parent=31 // pred_check
          %p1620 = pneg %p105
        $region41: #{cbow_forward.1} parent=31 // pred_check_branch
          %1622 = sbr.rel (%p1620) target = $region43
        $region42: #{cbow_forward.1} parent=31 // pred_region
          %s1623 = smul.u32 16, %s24
          %s1625 = ssub.s32 2048, 2048
          %1626 = vsyncadd %s1616, %s1625
          %s1627 = smul.addr %s1623, 128
          %s1628 = scalar_lea.hbm %s4, %s1627
          %s1629 = sshll.u32 %s1619, 4
          %s1630 = int_to_ptr.vmem [resolvable:$true] %s1629
          %1635 = dma.vmem_to_hbm [thread:$0]  %s1630, 2048, %s1628, %s1616, 128, 128, 8
        $region43: #{cbow_forward.1} parent=31 // pred_fallthru
          _
      $region32: #{cbow_forward.1} parent=5 // pred_fallthru
        _
      %p1636 = scmp.le.s32.totalorder 2, %s19
      // Predicated region
      $region44: #{cbow_forward.1} parent=5 // pred_check
        %p1637 = pneg %p1636
      $region45: #{cbow_forward.1} parent=5 // pred_check_branch
        %1639 = sbr.rel (%p1637) target = $region47
      $region46: #{cbow_forward.1} parent=5 // pred_region
        %s1640 = ssub.s32 %s19, 2
        // Predicated region
        $region48: #{cbow_forward.1} parent=46 // pred_check
          %p1641 = pneg %p111
        $region49: #{cbow_forward.1} parent=46 // pred_check_branch
          %1643 = sbr.rel (%p1641) target = $region51
        $region50: #{cbow_forward.1} parent=46 // pred_region
          %s1644 = sand.u32 %s96, 1
          %s1645 = scalar_lea.sflag [#allocation6], %s1644
          %s1646 = sand.u32 %s96, 1
          %s1647 = smul.addr %s1646, 128
          %s1648 = scalar_lea.vmem [#allocation5], %s1647
          %1649 = dma.done %s1645, 2048
        $region51: #{cbow_forward.1} parent=46 // pred_fallthru
          _
      $region47: #{cbow_forward.1} parent=5 // pred_fallthru
        _
    $region6: #{cbow_forward.1} parent=1 // loop_footer
      %s23 = sadd.s32 1, %s19
    $region7: #{cbow_forward.1} parent=1 // loop_footer_branch
      %18 = sbr.rel target = $region3
    $region8: #{cbow_forward.1} parent=1 // loop_exit
      _
    %1650 = vsyncpa [#allocation6], 1
    %s1651 = scalar_lea.sflag [#allocation6], 1
    %1652 = vsyncpa %s1651, 1

</llo_original>
